<compile_context>
chip_gen: v6e
topology: v6e:2x2x1
jax: 0.10.0
libtpu: 0.0.40
codegen_flags: <defaults>
</compile_context>

<pallas_src>
import jax
import jax.numpy as jnp
from jax.experimental import pallas as pl
from jax.experimental.pallas import tpu as pltpu

_HI = jax.lax.Precision.HIGHEST


# -----------------------------------------------------------------------------
# Small (24-joint) pose math: Rodrigues + kinematic chain (plain XLA).
# -----------------------------------------------------------------------------
def _rodrigues(r):
    """Axis-angle (N, J, 3) -> rotation matrices (N, J, 3, 3)."""
    theta = jnp.sqrt(jnp.sum(r * r, axis=-1, keepdims=True) + 1e-16)  # (N,J,1)
    u = r / theta
    cos = jnp.cos(theta)[..., None]                                   # (N,J,1,1)
    sin = jnp.sin(theta)[..., None]
    outer = u[..., :, None] * u[..., None, :]                         # (N,J,3,3)
    ux, uy, uz = u[..., 0], u[..., 1], u[..., 2]
    zero = jnp.zeros_like(ux)
    skew = jnp.stack([
        jnp.stack([zero, -uz, uy], axis=-1),
        jnp.stack([uz, zero, -ux], axis=-1),
        jnp.stack([-uy, ux, zero], axis=-1)], axis=-2)                # (N,J,3,3)
    eye = jnp.eye(3, dtype=r.dtype)
    return cos * eye + (1.0 - cos) * outer + sin * skew


def _global_rigid_transform(R, joints, parents):
    """R: (N,24,3,3), joints: (N,24,3) -> relative rigid transforms (N,24,4,4)."""
    N, J = joints.shape[0], joints.shape[1]
    dt = R.dtype
    bottom = jnp.broadcast_to(jnp.array([0.0, 0.0, 0.0, 1.0], dt), (N, 1, 4))

    def with_zeros(rot, t):                       # (N,3,3), (N,3) -> (N,4,4)
        top = jnp.concatenate([rot, t[:, :, None]], axis=2)
        return jnp.concatenate([top, bottom], axis=1)

    results = [with_zeros(R[:, 0], joints[:, 0])]
    for i in range(1, J):
        a_i = with_zeros(R[:, i], joints[:, i] - joints[:, parents[i]])
        results.append(jnp.matmul(results[parents[i]], a_i))
    G = jnp.stack(results, axis=1)                                     # (N,24,4,4)
    jh = jnp.concatenate([joints, jnp.zeros((N, J, 1), dt)], axis=-1)  # (N,24,4)
    t = jnp.matmul(G, jh[..., None])[..., 0]                           # (N,24,4)
    return G - jnp.zeros_like(G).at[:, :, :, 3].set(t)


# -----------------------------------------------------------------------------
# Fused Pallas kernel: all per-vertex SMPL work for one batch element.
# Layout: vertices on the lane axis (Vp lanes, multiple of 128), xyz on rows.
# -----------------------------------------------------------------------------
def _smpl_lbs_kernel(betas_ref, lrot_ref, g_ref, offs_ref,
                     vtemp_ref, sdirs_ref, pdirs_ref, w_ref,
                     vshaped_ref, vpers_ref, verts_ref):
    # betas_ref : (3, 3*KB)  block-diagonal betas
    # lrot_ref  : (3, 3*KP)  block-diagonal pose feature vec(R[1:]-I)
    # g_ref     : (16, 32)   rigid transforms (col 24 carries trans)
    # offs_ref  : (3, Vp)    per-vertex personal offsets
    # vtemp_ref : (3, Vp)    template vertices
    # sdirs_ref : (3*KB, Vp) shape blend dirs
    # pdirs_ref : (3*KP, Vp) pose blend dirs
    # w_ref     : (32, Vp)   LBS weights^T (+ all-ones translation row)
    # outputs   : (3, Vp)    v_shaped / v_shaped_personal / vertices

    # shape blend, personal offsets, pose blend: two MXU matmuls + adds.
    vshaped = vtemp_ref[...] + jnp.dot(
        betas_ref[...], sdirs_ref[...], preferred_element_type=jnp.float32)
    vpers = vshaped + offs_ref[...]
    vposed = vpers + jnp.dot(
        lrot_ref[...], pdirs_ref[...], preferred_element_type=jnp.float32)

    vshaped_ref[...] = vshaped
    vpers_ref[...] = vpers

    # LBS skinning (+ global translation via the all-ones weight row):
    #   T[a*4+b, v] = sum_j G_aug[a*4+b, j] * W_aug[j, v]
    T = jnp.dot(g_ref[...], w_ref[...], preferred_element_type=jnp.float32)

    # vertices[a, v] = sum_b T[a*4+b, v] * [v_posed; 1][b, v]
    rows = []
    for a in range(3):
        rows.append(T[4 * a + 0:4 * a + 1, :] * vposed[0:1, :]
                    + T[4 * a + 1:4 * a + 2, :] * vposed[1:2, :]
                    + T[4 * a + 2:4 * a + 3, :] * vposed[2:3, :]
                    + T[4 * a + 3:4 * a + 4, :])
    verts_ref[...] = jnp.concatenate(rows, axis=0)


def _smpl_lbs_call(betas_blk, lrot_blk, g_aug, offs_T,
                   vtemp_T, sdirs_mat, pdirs_mat, w_aug):
    N = betas_blk.shape[0]
    KB3 = betas_blk.shape[2]
    KP3 = lrot_blk.shape[2]
    Vp = vtemp_T.shape[1]
    out = jax.ShapeDtypeStruct((N, 3, Vp), jnp.float32)

    return pl.pallas_call(
        _smpl_lbs_kernel,
        out_shape=(out, out, out),
        grid=(N,),
        in_specs=[
            pl.BlockSpec((None, 3, KB3), lambda n: (n, 0, 0)),      # betas_blk
            pl.BlockSpec((None, 3, KP3), lambda n: (n, 0, 0)),      # lrot_blk
            pl.BlockSpec((None, 16, 32), lambda n: (n, 0, 0)),      # g_aug
            pl.BlockSpec((None, 3, Vp), lambda n: (n, 0, 0)),       # offsets
            pl.BlockSpec((3, Vp), lambda n: (0, 0)),                # v_template
            pl.BlockSpec((KB3, Vp), lambda n: (0, 0)),              # shapedirs
            pl.BlockSpec((KP3, Vp), lambda n: (0, 0)),              # posedirs
            pl.BlockSpec((32, Vp), lambda n: (0, 0)),               # weights
        ],
        out_specs=(
            pl.BlockSpec((None, 3, Vp), lambda n: (n, 0, 0)),
            pl.BlockSpec((None, 3, Vp), lambda n: (n, 0, 0)),
            pl.BlockSpec((None, 3, Vp), lambda n: (n, 0, 0)),
        ),
        compiler_params=pltpu.CompilerParams(
            dimension_semantics=("parallel",),
            vmem_limit_bytes=32 * 1024 * 1024),
    )(betas_blk, lrot_blk, g_aug, offs_T, vtemp_T, sdirs_mat, pdirs_mat, w_aug)


# -----------------------------------------------------------------------------
# Synthetic SMPL model parameters, pre-laid-out once at init (kernel-ready).
# -----------------------------------------------------------------------------
def init_smpl_params(key, num_verts=890, num_joints=24, num_betas=10):
    V, J = num_verts, num_joints
    KB0, KP0 = num_betas, (J - 1) * 9           # 10, 207
    KB, KP = 16, 208                            # contraction dims padded to 8x
    Vp = ((V + 127) // 128) * 128               # vertices padded to 128 lanes

    k0, k1, k2, k3, k4 = jax.random.split(key, 5)
    v_template = 0.3 * jax.random.normal(k0, (V, 3), jnp.float32)
    shapedirs = 0.03 * jax.random.normal(k1, (V, 3, KB0), jnp.float32)
    posedirs = 0.01 * jax.random.normal(k2, (V, 3, KP0), jnp.float32)
    J_regressor = jax.nn.softmax(
        2.0 * jax.random.normal(k3, (J, V), jnp.float32), axis=-1)
    weights = jax.nn.softmax(
        4.0 * jax.random.normal(k4, (V, J), jnp.float32), axis=-1)
    parents = (0, 0, 0, 0, 1, 2, 3, 4, 5, 6, 7, 8, 9, 9, 9, 12, 13, 14,
               16, 17, 18, 19, 20, 21)

    def dirs_mat(dirs, k0_, k_):
        m = jnp.transpose(dirs, (1, 2, 0))                     # (3, K0, V)
        m = jnp.pad(m, ((0, 0), (0, k_ - k0_), (0, Vp - V)))   # (3, K, Vp)
        return m.reshape(3 * k_, Vp)

    w_aug = jnp.zeros((32, Vp), jnp.float32)
    w_aug = w_aug.at[:J, :V].set(weights.T)
    w_aug = w_aug.at[J, :V].set(1.0)            # homogeneous / translation row

    return dict(
        # raw tensors (kept only for the pure-JAX reference check)
        v_template=v_template, shapedirs=shapedirs, posedirs=posedirs,
        J_regressor=J_regressor, weights=weights, parents=parents,
        num_verts=V, num_joints=J, v_pad=Vp, kb=KB, kp=KP,
        # kernel-ready, pre-laid-out tensors (built ONCE here, not per call)
        v_template_T=jnp.pad(v_template.T, ((0, 0), (0, Vp - V))),   # (3, Vp)
        shapedirs_mat=dirs_mat(shapedirs, KB0, KB),                  # (48, Vp)
        posedirs_mat=dirs_mat(posedirs, KP0, KP),                    # (624, Vp)
        weights_aug=w_aug,                                           # (32, Vp)
        J_template=jnp.matmul(J_regressor, v_template, precision=_HI),
        J_dirs=jnp.einsum("jv,vdk->jdk", J_regressor, shapedirs,
                          precision=_HI),                            # (24,3,10)
    )


# -----------------------------------------------------------------------------
# Forward pass of smpl_tpose_layer.
# -----------------------------------------------------------------------------
def smpl_tpose_forward(params, betas, pose, trans, offsets):
    f32 = jnp.float32
    betas = betas.astype(f32)
    pose = pose.astype(f32)
    trans = trans.astype(f32)
    offsets = offsets.astype(f32)

    N = betas.shape[0]
    V, Vp = params["num_verts"], params["v_pad"]
    J = params["num_joints"]
    KB, KP = params["kb"], params["kp"]

    # ---- tiny per-pose math (24 joints) in plain XLA ----
    R = _rodrigues(pose.reshape(N, J, 3))                            # (N,24,3,3)
    lrot = (R[:, 1:] - jnp.eye(3, dtype=f32)).reshape(N, (J - 1) * 9)
    # J_regressor @ v_shaped, folded (at init) into a linear map of betas.
    joints = params["J_template"][None] + jnp.einsum(
        "jdk,nk->njd", params["J_dirs"], betas, precision=_HI)       # (N,24,3)
    G = _global_rigid_transform(R, joints, params["parents"])        # (N,24,4,4)

    # pack G (+ trans, consumed by the all-ones weight row) for the kernel.
    g_flat = jnp.transpose(G, (0, 2, 3, 1)).reshape(N, 16, J)        # (N,16,24)
    trans_col = jnp.zeros((N, 16), f32)
    trans_col = trans_col.at[:, 3].set(trans[:, 0])
    trans_col = trans_col.at[:, 7].set(trans[:, 1])
    trans_col = trans_col.at[:, 11].set(trans[:, 2])
    g_aug = jnp.concatenate(
        [g_flat, trans_col[:, :, None], jnp.zeros((N, 16, 32 - J - 1), f32)],
        axis=-1)                                                     # (N,16,32)

    # block-diagonal LHS so each blend is a single MXU matmul in the kernel.
    eye3 = jnp.eye(3, dtype=f32)
    betas_p = jnp.pad(betas, ((0, 0), (0, KB - betas.shape[1])))
    lrot_p = jnp.pad(lrot, ((0, 0), (0, KP - lrot.shape[1])))
    betas_blk = (eye3[None, :, :, None]
                 * betas_p[:, None, None, :]).reshape(N, 3, 3 * KB)
    lrot_blk = (eye3[None, :, :, None]
                * lrot_p[:, None, None, :]).reshape(N, 3, 3 * KP)

    offs_T = jnp.pad(jnp.transpose(offsets, (0, 2, 1)),
                     ((0, 0), (0, 0), (0, Vp - V)))                  # (N,3,Vp)

    vshaped_T, vpers_T, verts_T = _smpl_lbs_call(
        betas_blk, lrot_blk, g_aug, offs_T,
        params["v_template_T"], params["shapedirs_mat"],
        params["posedirs_mat"], params["weights_aug"])

    def to_nv3(x):  # (N,3,Vp) -> (N,V,3); tiny wrapper-side relayout
        return jnp.transpose(x, (0, 2, 1))[:, :V, :]

    return to_nv3(verts_T), to_nv3(vshaped_T), to_nv3(vpers_T), offsets


# -----------------------------------------------------------------------------
# Pure-JAX reference (mirrors SMPLModel.forward) for a correctness check.
# -----------------------------------------------------------------------------
def smpl_reference_forward(params, betas, pose, trans, offsets):
    V, J = params["num_verts"], params["num_joints"]
    N = betas.shape[0]
    v_shaped = jnp.einsum("vdk,nk->nvd", params["shapedirs"], betas,
                          precision=_HI) + params["v_template"]
    v_personal = v_shaped + offsets
    joints = jnp.einsum("jv,nvd->njd", params["J_regressor"], v_shaped,
                        precision=_HI)
    R = _rodrigues(pose.reshape(N, J, 3))
    lrot = (R[:, 1:] - jnp.eye(3, dtype=betas.dtype)).reshape(N, (J - 1) * 9)
    v_posed = v_personal + jnp.einsum("vdp,np->nvd", params["posedirs"], lrot,
                                      precision=_HI)
    G = _global_rigid_transform(R, joints, params["parents"])
    T = jnp.einsum("njab,vj->nvab", G, params["weights"], precision=_HI)
    vph = jnp.concatenate([v_posed, jnp.ones((N, V, 1), betas.dtype)], axis=-1)
    verts = jnp.einsum("nvab,nvb->nva", T, vph, precision=_HI)[..., :3]
    verts = verts + trans[:, None, :]
    return verts, v_shaped, v_personal, offsets


# -----------------------------------------------------------------------------
if __name__ == "__main__":
    N, V = 2, 890
    key = jax.random.PRNGKey(0)
    k_model, k_b, k_p, k_t, k_o = jax.random.split(key, 5)

    params = init_smpl_params(k_model, num_verts=V)
    betas = 0.5 * jax.random.normal(k_b, (N, 10), jnp.float32)
    pose = 0.3 * jax.random.normal(k_p, (N, 72), jnp.float32)
    trans = jax.random.normal(k_t, (N, 3), jnp.float32)
    offsets = 0.01 * jax.random.normal(k_o, (N, V, 3), jnp.float32)

    fwd = jax.jit(lambda b, p, t, o: smpl_tpose_forward(params, b, p, t, o))
    verts, v_shaped, v_pers, v_offs = jax.block_until_ready(
        fwd(betas, pose, trans, offsets))

    assert verts.shape == (N, V, 3) and verts.dtype == jnp.float32
    assert v_shaped.shape == (N, V, 3)
    assert v_pers.shape == (N, V, 3)
    assert v_offs.shape == (N, V, 3)
    for t in (verts, v_shaped, v_pers):
        assert bool(jnp.all(jnp.isfinite(t)))
    assert bool(jnp.all(v_offs == offsets))

    # validate the Pallas path against the plain-JAX reference
    r_verts, r_vs, r_vp, _ = smpl_reference_forward(
        params, betas, pose, trans, offsets)

    def maxdiff(a, b):
        return float(jnp.max(jnp.abs(a - b)))

    assert maxdiff(v_shaped, r_vs) < 5e-3, maxdiff(v_shaped, r_vs)
    assert maxdiff(v_pers, r_vp) < 5e-3, maxdiff(v_pers, r_vp)
    assert maxdiff(verts, r_verts) < 5e-2, maxdiff(verts, r_verts)

    print("KERNEL_OK")
</pallas_src>

<mosaic_0001>
module attributes {stable_mosaic.version = 11 : i64} {
  func.func @_smpl_lbs_kernel(%arg0: i32, %arg1: memref<1x3x48xf32, #tpu.memory_space<vmem>>, %arg2: memref<1x3x624xf32, #tpu.memory_space<vmem>>, %arg3: memref<1x16x32xf32, #tpu.memory_space<vmem>>, %arg4: memref<1x3x896xf32, #tpu.memory_space<vmem>>, %arg5: memref<3x896xf32, #tpu.memory_space<vmem>>, %arg6: memref<48x896xf32, #tpu.memory_space<vmem>>, %arg7: memref<624x896xf32, #tpu.memory_space<vmem>>, %arg8: memref<32x896xf32, #tpu.memory_space<vmem>>, %arg9: memref<1x3x896xf32, #tpu.memory_space<vmem>>, %arg10: memref<1x3x896xf32, #tpu.memory_space<vmem>>, %arg11: memref<1x3x896xf32, #tpu.memory_space<vmem>>) attributes {dimension_semantics = [#tpu.dimension_semantics<parallel>], iteration_bounds = array<i64: 2>, scalar_prefetch = 0 : i64, scratch_operands = 0 : i64, tpu.core_type = #tpu.core_type<tc>, window_params = [{transform_indices = @transform_0, window_bounds = array<i64: 1, 3, 48>}, {transform_indices = @transform_1, window_bounds = array<i64: 1, 3, 624>}, {transform_indices = @transform_2, window_bounds = array<i64: 1, 16, 32>}, {transform_indices = @transform_3, window_bounds = array<i64: 1, 3, 896>}, {pipeline_mode = #tpu.pipeline_mode<synchronous>, transform_indices = @transform_4, window_bounds = array<i64: 3, 896>}, {pipeline_mode = #tpu.pipeline_mode<synchronous>, transform_indices = @transform_5, window_bounds = array<i64: 48, 896>}, {pipeline_mode = #tpu.pipeline_mode<synchronous>, transform_indices = @transform_6, window_bounds = array<i64: 624, 896>}, {pipeline_mode = #tpu.pipeline_mode<synchronous>, transform_indices = @transform_7, window_bounds = array<i64: 32, 896>}, {transform_indices = @transform_8, window_bounds = array<i64: 1, 3, 896>}, {transform_indices = @transform_9, window_bounds = array<i64: 1, 3, 896>}, {transform_indices = @transform_10, window_bounds = array<i64: 1, 3, 896>}]} {
    %c0 = arith.constant 0 : index
    %c0_0 = arith.constant 0 : index
    %0 = vector.load %arg5[%c0, %c0_0] : memref<3x896xf32, #tpu.memory_space<vmem>>, vector<3x896xf32>
    %c0_1 = arith.constant 0 : index
    %c0_2 = arith.constant 0 : index
    %c0_3 = arith.constant 0 : index
    %1 = vector.load %arg1[%c0_1, %c0_2, %c0_3] : memref<1x3x48xf32, #tpu.memory_space<vmem>>, vector<1x3x48xf32>
    %2 = vector.shape_cast %1 : vector<1x3x48xf32> to vector<3x48xf32>
    %c0_4 = arith.constant 0 : index
    %c0_5 = arith.constant 0 : index
    %3 = vector.load %arg6[%c0_4, %c0_5] : memref<48x896xf32, #tpu.memory_space<vmem>>, vector<48x896xf32>
    %cst = arith.constant dense<0.000000e+00> : vector<3x896xf32>
    %4 = tpu.matmul %2, %3, %cst {dimension_numbers = #tpu.dot_dimension_numbers<[1], [0], [0], [1], [0, 0, 1, 1], [], []>} : vector<3x48xf32>, vector<48x896xf32>, vector<3x896xf32> -> vector<3x896xf32>
    %5 = arith.addf %0, %4 : vector<3x896xf32>
    %c0_6 = arith.constant 0 : index
    %c0_7 = arith.constant 0 : index
    %c0_8 = arith.constant 0 : index
    %6 = vector.load %arg4[%c0_6, %c0_7, %c0_8] : memref<1x3x896xf32, #tpu.memory_space<vmem>>, vector<1x3x896xf32>
    %7 = vector.shape_cast %6 : vector<1x3x896xf32> to vector<3x896xf32>
    %8 = arith.addf %5, %7 : vector<3x896xf32>
    %c0_9 = arith.constant 0 : index
    %c0_10 = arith.constant 0 : index
    %c0_11 = arith.constant 0 : index
    %9 = vector.load %arg2[%c0_9, %c0_10, %c0_11] : memref<1x3x624xf32, #tpu.memory_space<vmem>>, vector<1x3x624xf32>
    %10 = vector.shape_cast %9 : vector<1x3x624xf32> to vector<3x624xf32>
    %c0_12 = arith.constant 0 : index
    %c0_13 = arith.constant 0 : index
    %11 = vector.load %arg7[%c0_12, %c0_13] : memref<624x896xf32, #tpu.memory_space<vmem>>, vector<624x896xf32>
    %cst_14 = arith.constant dense<0.000000e+00> : vector<3x896xf32>
    %12 = tpu.matmul %10, %11, %cst_14 {dimension_numbers = #tpu.dot_dimension_numbers<[1], [0], [0], [1], [0, 0, 1, 1], [], []>} : vector<3x624xf32>, vector<624x896xf32>, vector<3x896xf32> -> vector<3x896xf32>
    %13 = arith.addf %8, %12 : vector<3x896xf32>
    %c0_15 = arith.constant 0 : index
    %c0_16 = arith.constant 0 : index
    %c0_17 = arith.constant 0 : index
    %14 = vector.load %arg9[%c0_15, %c0_16, %c0_17] : memref<1x3x896xf32, #tpu.memory_space<vmem>>, vector<1x3x896xf32>
    %15 = vector.shape_cast %14 : vector<1x3x896xf32> to vector<3x896xf32>
    %16 = vector.shape_cast %5 : vector<3x896xf32> to vector<1x3x896xf32>
    tpu.vector_store %arg9[%c0_15, %c0_16, %c0_17], %16 {strides = array<i32>} : memref<1x3x896xf32, #tpu.memory_space<vmem>>, vector<1x3x896xf32>,
    %c0_18 = arith.constant 0 : index
    %c0_19 = arith.constant 0 : index
    %c0_20 = arith.constant 0 : index
    %17 = vector.load %arg10[%c0_18, %c0_19, %c0_20] : memref<1x3x896xf32, #tpu.memory_space<vmem>>, vector<1x3x896xf32>
    %18 = vector.shape_cast %17 : vector<1x3x896xf32> to vector<3x896xf32>
    %19 = vector.shape_cast %8 : vector<3x896xf32> to vector<1x3x896xf32>
    tpu.vector_store %arg10[%c0_18, %c0_19, %c0_20], %19 {strides = array<i32>} : memref<1x3x896xf32, #tpu.memory_space<vmem>>, vector<1x3x896xf32>,
    %c0_21 = arith.constant 0 : index
    %c0_22 = arith.constant 0 : index
    %c0_23 = arith.constant 0 : index
    %20 = vector.load %arg3[%c0_21, %c0_22, %c0_23] : memref<1x16x32xf32, #tpu.memory_space<vmem>>, vector<1x16x32xf32>
    %21 = vector.shape_cast %20 : vector<1x16x32xf32> to vector<16x32xf32>
    %c0_24 = arith.constant 0 : index
    %c0_25 = arith.constant 0 : index
    %22 = vector.load %arg8[%c0_24, %c0_25] : memref<32x896xf32, #tpu.memory_space<vmem>>, vector<32x896xf32>
    %cst_26 = arith.constant dense<0.000000e+00> : vector<16x896xf32>
    %23 = tpu.matmul %21, %22, %cst_26 {dimension_numbers = #tpu.dot_dimension_numbers<[1], [0], [0], [1], [0, 0, 1, 1], [], []>} : vector<16x32xf32>, vector<32x896xf32>, vector<16x896xf32> -> vector<16x896xf32>
    %24 = vector.extract_strided_slice %23 {offsets = [0, 0], sizes = [1, 896], strides = [1, 1]} : vector<16x896xf32> to vector<1x896xf32>
    %25 = vector.extract_strided_slice %13 {offsets = [0, 0], sizes = [1, 896], strides = [1, 1]} : vector<3x896xf32> to vector<1x896xf32>
    %26 = arith.mulf %24, %25 : vector<1x896xf32>
    %27 = vector.extract_strided_slice %23 {offsets = [1, 0], sizes = [1, 896], strides = [1, 1]} : vector<16x896xf32> to vector<1x896xf32>
    %28 = vector.extract_strided_slice %13 {offsets = [1, 0], sizes = [1, 896], strides = [1, 1]} : vector<3x896xf32> to vector<1x896xf32>
    %29 = arith.mulf %27, %28 : vector<1x896xf32>
    %30 = arith.addf %26, %29 : vector<1x896xf32>
    %31 = vector.extract_strided_slice %23 {offsets = [2, 0], sizes = [1, 896], strides = [1, 1]} : vector<16x896xf32> to vector<1x896xf32>
    %32 = vector.extract_strided_slice %13 {offsets = [2, 0], sizes = [1, 896], strides = [1, 1]} : vector<3x896xf32> to vector<1x896xf32>
    %33 = arith.mulf %31, %32 : vector<1x896xf32>
    %34 = arith.addf %30, %33 : vector<1x896xf32>
    %35 = vector.extract_strided_slice %23 {offsets = [3, 0], sizes = [1, 896], strides = [1, 1]} : vector<16x896xf32> to vector<1x896xf32>
    %36 = arith.addf %34, %35 : vector<1x896xf32>
    %37 = vector.extract_strided_slice %23 {offsets = [4, 0], sizes = [1, 896], strides = [1, 1]} : vector<16x896xf32> to vector<1x896xf32>
    %38 = vector.extract_strided_slice %13 {offsets = [0, 0], sizes = [1, 896], strides = [1, 1]} : vector<3x896xf32> to vector<1x896xf32>
    %39 = arith.mulf %37, %38 : vector<1x896xf32>
    %40 = vector.extract_strided_slice %23 {offsets = [5, 0], sizes = [1, 896], strides = [1, 1]} : vector<16x896xf32> to vector<1x896xf32>
    %41 = vector.extract_strided_slice %13 {offsets = [1, 0], sizes = [1, 896], strides = [1, 1]} : vector<3x896xf32> to vector<1x896xf32>
    %42 = arith.mulf %40, %41 : vector<1x896xf32>
    %43 = arith.addf %39, %42 : vector<1x896xf32>
    %44 = vector.extract_strided_slice %23 {offsets = [6, 0], sizes = [1, 896], strides = [1, 1]} : vector<16x896xf32> to vector<1x896xf32>
    %45 = vector.extract_strided_slice %13 {offsets = [2, 0], sizes = [1, 896], strides = [1, 1]} : vector<3x896xf32> to vector<1x896xf32>
    %46 = arith.mulf %44, %45 : vector<1x896xf32>
    %47 = arith.addf %43, %46 : vector<1x896xf32>
    %48 = vector.extract_strided_slice %23 {offsets = [7, 0], sizes = [1, 896], strides = [1, 1]} : vector<16x896xf32> to vector<1x896xf32>
    %49 = arith.addf %47, %48 : vector<1x896xf32>
    %50 = vector.extract_strided_slice %23 {offsets = [8, 0], sizes = [1, 896], strides = [1, 1]} : vector<16x896xf32> to vector<1x896xf32>
    %51 = vector.extract_strided_slice %13 {offsets = [0, 0], sizes = [1, 896], strides = [1, 1]} : vector<3x896xf32> to vector<1x896xf32>
    %52 = arith.mulf %50, %51 : vector<1x896xf32>
    %53 = vector.extract_strided_slice %23 {offsets = [9, 0], sizes = [1, 896], strides = [1, 1]} : vector<16x896xf32> to vector<1x896xf32>
    %54 = vector.extract_strided_slice %13 {offsets = [1, 0], sizes = [1, 896], strides = [1, 1]} : vector<3x896xf32> to vector<1x896xf32>
    %55 = arith.mulf %53, %54 : vector<1x896xf32>
    %56 = arith.addf %52, %55 : vector<1x896xf32>
    %57 = vector.extract_strided_slice %23 {offsets = [10, 0], sizes = [1, 896], strides = [1, 1]} : vector<16x896xf32> to vector<1x896xf32>
    %58 = vector.extract_strided_slice %13 {offsets = [2, 0], sizes = [1, 896], strides = [1, 1]} : vector<3x896xf32> to vector<1x896xf32>
    %59 = arith.mulf %57, %58 : vector<1x896xf32>
    %60 = arith.addf %56, %59 : vector<1x896xf32>
    %61 = vector.extract_strided_slice %23 {offsets = [11, 0], sizes = [1, 896], strides = [1, 1]} : vector<16x896xf32> to vector<1x896xf32>
    %62 = arith.addf %60, %61 : vector<1x896xf32>
    %63 = tpu.concatenate %36, %49, %62 in 0 : vector<1x896xf32>, vector<1x896xf32>, vector<1x896xf32> -> vector<3x896xf32>
    %c0_27 = arith.constant 0 : index
    %c0_28 = arith.constant 0 : index
    %c0_29 = arith.constant 0 : index
    %64 = vector.load %arg11[%c0_27, %c0_28, %c0_29] : memref<1x3x896xf32, #tpu.memory_space<vmem>>, vector<1x3x896xf32>
    %65 = vector.shape_cast %64 : vector<1x3x896xf32> to vector<3x896xf32>
    %66 = vector.shape_cast %63 : vector<3x896xf32> to vector<1x3x896xf32>
    tpu.vector_store %arg11[%c0_27, %c0_28, %c0_29], %66 {strides = array<i32>} : memref<1x3x896xf32, #tpu.memory_space<vmem>>, vector<1x3x896xf32>,
    return
  }
  func.func @transform_0(%arg0: i32) -> (i32, i32, i32) {
    %c0_i32 = arith.constant 0 : i32
    %c0_i32_0 = arith.constant 0 : i32
    %c0_i32_1 = arith.constant 0 : i32
    return %arg0, %c0_i32, %c0_i32_0 : i32, i32, i32
  }
  func.func @transform_1(%arg0: i32) -> (i32, i32, i32) {
    %c0_i32 = arith.constant 0 : i32
    %c0_i32_0 = arith.constant 0 : i32
    %c0_i32_1 = arith.constant 0 : i32
    return %arg0, %c0_i32, %c0_i32_0 : i32, i32, i32
  }
  func.func @transform_2(%arg0: i32) -> (i32, i32, i32) {
    %c0_i32 = arith.constant 0 : i32
    %c0_i32_0 = arith.constant 0 : i32
    %c0_i32_1 = arith.constant 0 : i32
    return %arg0, %c0_i32, %c0_i32_0 : i32, i32, i32
  }
  func.func @transform_3(%arg0: i32) -> (i32, i32, i32) {
    %c0_i32 = arith.constant 0 : i32
    %c0_i32_0 = arith.constant 0 : i32
    %c0_i32_1 = arith.constant 0 : i32
    return %arg0, %c0_i32, %c0_i32_0 : i32, i32, i32
  }
  func.func @transform_4(%arg0: i32) -> (i32, i32) {
    %c0_i32 = arith.constant 0 : i32
    %c0_i32_0 = arith.constant 0 : i32
    %c0_i32_1 = arith.constant 0 : i32
    return %c0_i32, %c0_i32_0 : i32, i32
  }
  func.func @transform_5(%arg0: i32) -> (i32, i32) {
    %c0_i32 = arith.constant 0 : i32
    %c0_i32_0 = arith.constant 0 : i32
    %c0_i32_1 = arith.constant 0 : i32
    return %c0_i32, %c0_i32_0 : i32, i32
  }
  func.func @transform_6(%arg0: i32) -> (i32, i32) {
    %c0_i32 = arith.constant 0 : i32
    %c0_i32_0 = arith.constant 0 : i32
    %c0_i32_1 = arith.constant 0 : i32
    return %c0_i32, %c0_i32_0 : i32, i32
  }
  func.func @transform_7(%arg0: i32) -> (i32, i32) {
    %c0_i32 = arith.constant 0 : i32
    %c0_i32_0 = arith.constant 0 : i32
    %c0_i32_1 = arith.constant 0 : i32
    return %c0_i32, %c0_i32_0 : i32, i32
  }
  func.func @transform_8(%arg0: i32) -> (i32, i32, i32) {
    %c0_i32 = arith.constant 0 : i32
    %c0_i32_0 = arith.constant 0 : i32
    %c0_i32_1 = arith.constant 0 : i32
    return %arg0, %c0_i32, %c0_i32_0 : i32, i32, i32
  }
  func.func @transform_9(%arg0: i32) -> (i32, i32, i32) {
    %c0_i32 = arith.constant 0 : i32
    %c0_i32_0 = arith.constant 0 : i32
    %c0_i32_1 = arith.constant 0 : i32
    return %arg0, %c0_i32, %c0_i32_0 : i32, i32, i32
  }
  func.func @transform_10(%arg0: i32) -> (i32, i32, i32) {
    %c0_i32 = arith.constant 0 : i32
    %c0_i32_0 = arith.constant 0 : i32
    %c0_i32_1 = arith.constant 0 : i32
    return %arg0, %c0_i32, %c0_i32_0 : i32, i32, i32
  }
}

</mosaic_0001>

<llo_original>
// kernel: _lambda_.1
$region0: #{_lambda_.1}
  #allocation0 [shape = 'u32[]', space=smem, size = 0x4, offset = 0x4, fixed_abs, tag = 'smem constant byte address 0x4 - core index']
  #allocation1 [shape = 'u32[144,128]{1,0:T(1,128)}', space=vmem, size = 0x12000, scoped, tag = 'internal scratch']
  %s0 = inlined_call_operand.vmem [shape: f32[2,3,48], index: 0, kind: input, shape index: {}]
  %s1 = inlined_call_operand.vmem [shape: f32[2,3,624], index: 1, kind: input, shape index: {}]
  %s2 = inlined_call_operand.vmem [shape: f32[2,16,32], index: 2, kind: input, shape index: {}]
  %s3 = inlined_call_operand.vmem [shape: f32[2,3,896], index: 3, kind: input, shape index: {}]
  %s4 = inlined_call_operand.vmem [shape: f32[3,896], index: 4, kind: input, shape index: {}]
  %s5 = inlined_call_operand.vmem [shape: f32[48,896], index: 5, kind: input, shape index: {}]
  %s6 = inlined_call_operand.vmem [shape: f32[624,896], index: 6, kind: input, shape index: {}]
  %s7 = inlined_call_operand.vmem [shape: f32[32,896], index: 7, kind: input, shape index: {}]
  %s8 = inlined_call_operand.vmem [shape: f32[2,3,896], index: 8, kind: output, shape index: {0}]
  %s9 = inlined_call_operand.vmem [shape: f32[2,3,896], index: 9, kind: output, shape index: {1}]
  %s10 = inlined_call_operand.vmem [shape: f32[2,3,896], index: 10, kind: output, shape index: {2}]
  %11 = xla_tuple %s8, %s9, %s10
  %s12 = sld [smem:[#allocation0]]
  $region81: #{_lambda_.1} parent=0
    _
  %s14 = ssub.s32 1, %s12
  %s15 = scalar_select 0, %s14, %s12
  loop: start=0, step=1, limit=4
  $region2: #{_lambda_.1} parent=0 // loop_pre_header
    _
  $region3: #{_lambda_.1} parent=0 // loop_header
    %s17 = sphi 0, %s21
    %p18 = scmp.ge.s32.totalorder %s17, 4
    %s27 = sphi 0, %s29
    %s30 = sphi 0, %s27
    %s31 = sphi 0, %s30
    %s47 = sphi 0, %s31
    %s53 = sphi 0, %s55
    %s56 = sphi 0, %s53
    %s57 = sphi 0, %s56
    %s73 = sphi 0, %s57
    %s79 = sphi 0, %s81
    %s82 = sphi 0, %s79
    %s83 = sphi 0, %s82
    %s99 = sphi 0, %s83
    %s105 = sphi 0, %s107
    %s108 = sphi 0, %s105
    %s109 = sphi 0, %s108
    %s125 = sphi 0, %s109
    %s129 = sphi 0, %s129
    %s131 = sphi 0, %s129
    %s132 = sphi 0, %s131
    %s146 = sphi 0, %s132
    %s150 = sphi 0, %s150
    %s152 = sphi 0, %s150
    %s153 = sphi 0, %s152
    %s167 = sphi 0, %s153
    %s171 = sphi 0, %s171
    %s173 = sphi 0, %s171
    %s174 = sphi 0, %s173
    %s188 = sphi 0, %s174
    %s192 = sphi 0, %s192
    %s194 = sphi 0, %s192
    %s195 = sphi 0, %s194
    %s209 = sphi 0, %s195
    %s215 = sphi 0, %s217
    %s218 = sphi 0, %s215
    %s219 = sphi 0, %s218
    %s235 = sphi 0, %s219
    %s241 = sphi 0, %s243
    %s244 = sphi 0, %s241
    %s245 = sphi 0, %s244
    %s261 = sphi 0, %s245
    %s267 = sphi 0, %s269
    %s270 = sphi 0, %s267
    %s271 = sphi 0, %s270
    %s287 = sphi 0, %s271
  $region4: #{_lambda_.1} parent=0 // loop_header_branch
    %20 = sbr.rel (%p18) target = $region8
  $region5: #{_lambda_.1} parent=0 // loop_body
    %s22 = ssub.s32 %s17, 1
    %s23 = ssub.s32 %s17, 2
    %s24 = sadd.s32 %s17, 1
    %s25 = ssub.s32 %s17, %s24
    %p26 = scmp.eq.s32.totalorder %s25, 0
    %s28 = sadd.s32 %s27, 1
    %s29 = scalar_select %p26, %s27, %s28
    %p32 = pneg %p26
    %p33 = scmp.eq.s32.totalorder %s17, 1
    %p34 = por %p32, %p33
    %p35 = scmp.ne.s32.totalorder %s27, %s30
    %p36 = scmp.eq.s32.totalorder %s17, 0
    %p37 = por %p35, %p36
    %p38 = scmp.ne.s32.totalorder %s27, %s30
    %p39 = scmp.eq.s32.totalorder %s22, 1
    %p40 = por %p38, %p39
    %p41 = scmp.ne.s32.totalorder %s30, %s31
    %p42 = scmp.eq.s32.totalorder %s22, 0
    %p43 = por %p41, %p42
    %p44 = scmp.ne.s32.totalorder %s30, %s31
    %p45 = scmp.eq.s32.totalorder %s23, 1
    %p46 = por %p44, %p45
    %p48 = scmp.ne.s32.totalorder %s31, %s47
    %p49 = scmp.eq.s32.totalorder %s23, 0
    %p50 = por %p48, %p49
    %s51 = ssub.s32 %s17, %s24
    %p52 = scmp.eq.s32.totalorder %s51, 0
    %s54 = sadd.s32 %s53, 1
    %s55 = scalar_select %p52, %s53, %s54
    %p58 = pneg %p52
    %p59 = scmp.eq.s32.totalorder %s17, 1
    %p60 = por %p58, %p59
    %p61 = scmp.ne.s32.totalorder %s53, %s56
    %p62 = scmp.eq.s32.totalorder %s17, 0
    %p63 = por %p61, %p62
    %p64 = scmp.ne.s32.totalorder %s53, %s56
    %p65 = scmp.eq.s32.totalorder %s22, 1
    %p66 = por %p64, %p65
    %p67 = scmp.ne.s32.totalorder %s56, %s57
    %p68 = scmp.eq.s32.totalorder %s22, 0
    %p69 = por %p67, %p68
    %p70 = scmp.ne.s32.totalorder %s56, %s57
    %p71 = scmp.eq.s32.totalorder %s23, 1
    %p72 = por %p70, %p71
    %p74 = scmp.ne.s32.totalorder %s57, %s73
    %p75 = scmp.eq.s32.totalorder %s23, 0
    %p76 = por %p74, %p75
    %s77 = ssub.s32 %s17, %s24
    %p78 = scmp.eq.s32.totalorder %s77, 0
    %s80 = sadd.s32 %s79, 1
    %s81 = scalar_select %p78, %s79, %s80
    %p84 = pneg %p78
    %p85 = scmp.eq.s32.totalorder %s17, 1
    %p86 = por %p84, %p85
    %p87 = scmp.ne.s32.totalorder %s79, %s82
    %p88 = scmp.eq.s32.totalorder %s17, 0
    %p89 = por %p87, %p88
    %p90 = scmp.ne.s32.totalorder %s79, %s82
    %p91 = scmp.eq.s32.totalorder %s22, 1
    %p92 = por %p90, %p91
    %p93 = scmp.ne.s32.totalorder %s82, %s83
    %p94 = scmp.eq.s32.totalorder %s22, 0
    %p95 = por %p93, %p94
    %p96 = scmp.ne.s32.totalorder %s82, %s83
    %p97 = scmp.eq.s32.totalorder %s23, 1
    %p98 = por %p96, %p97
    %p100 = scmp.ne.s32.totalorder %s83, %s99
    %p101 = scmp.eq.s32.totalorder %s23, 0
    %p102 = por %p100, %p101
    %s103 = ssub.s32 %s17, %s24
    %p104 = scmp.eq.s32.totalorder %s103, 0
    %s106 = sadd.s32 %s105, 1
    %s107 = scalar_select %p104, %s105, %s106
    %p110 = pneg %p104
    %p111 = scmp.eq.s32.totalorder %s17, 1
    %p112 = por %p110, %p111
    %p113 = scmp.ne.s32.totalorder %s105, %s108
    %p114 = scmp.eq.s32.totalorder %s17, 0
    %p115 = por %p113, %p114
    %p116 = scmp.ne.s32.totalorder %s105, %s108
    %p117 = scmp.eq.s32.totalorder %s22, 1
    %p118 = por %p116, %p117
    %p119 = scmp.ne.s32.totalorder %s108, %s109
    %p120 = scmp.eq.s32.totalorder %s22, 0
    %p121 = por %p119, %p120
    %p122 = scmp.ne.s32.totalorder %s108, %s109
    %p123 = scmp.eq.s32.totalorder %s23, 1
    %p124 = por %p122, %p123
    %p126 = scmp.ne.s32.totalorder %s109, %s125
    %p127 = scmp.eq.s32.totalorder %s23, 0
    %p128 = por %p126, %p127
    %s130 = sadd.s32 %s129, 1
    %p133 = scmp.eq.s32.totalorder %s17, 1
    %p134 = scmp.ne.s32.totalorder %s129, %s131
    %p135 = scmp.eq.s32.totalorder %s17, 0
    %p136 = por %p134, %p135
    %p137 = scmp.ne.s32.totalorder %s129, %s131
    %p138 = scmp.eq.s32.totalorder %s22, 1
    %p139 = por %p137, %p138
    %p140 = scmp.ne.s32.totalorder %s131, %s132
    %p141 = scmp.eq.s32.totalorder %s22, 0
    %p142 = por %p140, %p141
    %p143 = scmp.ne.s32.totalorder %s131, %s132
    %p144 = scmp.eq.s32.totalorder %s23, 1
    %p145 = por %p143, %p144
    %p147 = scmp.ne.s32.totalorder %s132, %s146
    %p148 = scmp.eq.s32.totalorder %s23, 0
    %p149 = por %p147, %p148
    %s151 = sadd.s32 %s150, 1
    %p154 = scmp.eq.s32.totalorder %s17, 1
    %p155 = scmp.ne.s32.totalorder %s150, %s152
    %p156 = scmp.eq.s32.totalorder %s17, 0
    %p157 = por %p155, %p156
    %p158 = scmp.ne.s32.totalorder %s150, %s152
    %p159 = scmp.eq.s32.totalorder %s22, 1
    %p160 = por %p158, %p159
    %p161 = scmp.ne.s32.totalorder %s152, %s153
    %p162 = scmp.eq.s32.totalorder %s22, 0
    %p163 = por %p161, %p162
    %p164 = scmp.ne.s32.totalorder %s152, %s153
    %p165 = scmp.eq.s32.totalorder %s23, 1
    %p166 = por %p164, %p165
    %p168 = scmp.ne.s32.totalorder %s153, %s167
    %p169 = scmp.eq.s32.totalorder %s23, 0
    %p170 = por %p168, %p169
    %s172 = sadd.s32 %s171, 1
    %p175 = scmp.eq.s32.totalorder %s17, 1
    %p176 = scmp.ne.s32.totalorder %s171, %s173
    %p177 = scmp.eq.s32.totalorder %s17, 0
    %p178 = por %p176, %p177
    %p179 = scmp.ne.s32.totalorder %s171, %s173
    %p180 = scmp.eq.s32.totalorder %s22, 1
    %p181 = por %p179, %p180
    %p182 = scmp.ne.s32.totalorder %s173, %s174
    %p183 = scmp.eq.s32.totalorder %s22, 0
    %p184 = por %p182, %p183
    %p185 = scmp.ne.s32.totalorder %s173, %s174
    %p186 = scmp.eq.s32.totalorder %s23, 1
    %p187 = por %p185, %p186
    %p189 = scmp.ne.s32.totalorder %s174, %s188
    %p190 = scmp.eq.s32.totalorder %s23, 0
    %p191 = por %p189, %p190
    %s193 = sadd.s32 %s192, 1
    %p196 = scmp.eq.s32.totalorder %s17, 1
    %p197 = scmp.ne.s32.totalorder %s192, %s194
    %p198 = scmp.eq.s32.totalorder %s17, 0
    %p199 = por %p197, %p198
    %p200 = scmp.ne.s32.totalorder %s192, %s194
    %p201 = scmp.eq.s32.totalorder %s22, 1
    %p202 = por %p200, %p201
    %p203 = scmp.ne.s32.totalorder %s194, %s195
    %p204 = scmp.eq.s32.totalorder %s22, 0
    %p205 = por %p203, %p204
    %p206 = scmp.ne.s32.totalorder %s194, %s195
    %p207 = scmp.eq.s32.totalorder %s23, 1
    %p208 = por %p206, %p207
    %p210 = scmp.ne.s32.totalorder %s195, %s209
    %p211 = scmp.eq.s32.totalorder %s23, 0
    %p212 = por %p210, %p211
    %s213 = ssub.s32 %s17, %s24
    %p214 = scmp.eq.s32.totalorder %s213, 0
    %s216 = sadd.s32 %s215, 1
    %s217 = scalar_select %p214, %s215, %s216
    %p220 = pneg %p214
    %p221 = scmp.eq.s32.totalorder %s17, 1
    %p222 = por %p220, %p221
    %p223 = scmp.ne.s32.totalorder %s215, %s218
    %p224 = scmp.eq.s32.totalorder %s17, 0
    %p225 = por %p223, %p224
    %p226 = scmp.ne.s32.totalorder %s215, %s218
    %p227 = scmp.eq.s32.totalorder %s22, 1
    %p228 = por %p226, %p227
    %p229 = scmp.ne.s32.totalorder %s218, %s219
    %p230 = scmp.eq.s32.totalorder %s22, 0
    %p231 = por %p229, %p230
    %p232 = scmp.ne.s32.totalorder %s218, %s219
    %p233 = scmp.eq.s32.totalorder %s23, 1
    %p234 = por %p232, %p233
    %p236 = scmp.ne.s32.totalorder %s219, %s235
    %p237 = scmp.eq.s32.totalorder %s23, 0
    %p238 = por %p236, %p237
    %s239 = ssub.s32 %s17, %s24
    %p240 = scmp.eq.s32.totalorder %s239, 0
    %s242 = sadd.s32 %s241, 1
    %s243 = scalar_select %p240, %s241, %s242
    %p246 = pneg %p240
    %p247 = scmp.eq.s32.totalorder %s17, 1
    %p248 = por %p246, %p247
    %p249 = scmp.ne.s32.totalorder %s241, %s244
    %p250 = scmp.eq.s32.totalorder %s17, 0
    %p251 = por %p249, %p250
    %p252 = scmp.ne.s32.totalorder %s241, %s244
    %p253 = scmp.eq.s32.totalorder %s22, 1
    %p254 = por %p252, %p253
    %p255 = scmp.ne.s32.totalorder %s244, %s245
    %p256 = scmp.eq.s32.totalorder %s22, 0
    %p257 = por %p255, %p256
    %p258 = scmp.ne.s32.totalorder %s244, %s245
    %p259 = scmp.eq.s32.totalorder %s23, 1
    %p260 = por %p258, %p259
    %p262 = scmp.ne.s32.totalorder %s245, %s261
    %p263 = scmp.eq.s32.totalorder %s23, 0
    %p264 = por %p262, %p263
    %s265 = ssub.s32 %s17, %s24
    %p266 = scmp.eq.s32.totalorder %s265, 0
    %s268 = sadd.s32 %s267, 1
    %s269 = scalar_select %p266, %s267, %s268
    %p272 = pneg %p266
    %p273 = scmp.eq.s32.totalorder %s17, 1
    %p274 = por %p272, %p273
    %p275 = scmp.ne.s32.totalorder %s267, %s270
    %p276 = scmp.eq.s32.totalorder %s17, 0
    %p277 = por %p275, %p276
    %p278 = scmp.ne.s32.totalorder %s267, %s270
    %p279 = scmp.eq.s32.totalorder %s22, 1
    %p280 = por %p278, %p279
    %p281 = scmp.ne.s32.totalorder %s270, %s271
    %p282 = scmp.eq.s32.totalorder %s22, 0
    %p283 = por %p281, %p282
    %p284 = scmp.ne.s32.totalorder %s270, %s271
    %p285 = scmp.eq.s32.totalorder %s23, 1
    %p286 = por %p284, %p285
    %p288 = scmp.ne.s32.totalorder %s271, %s287
    %p289 = scmp.eq.s32.totalorder %s23, 0
    %p290 = por %p288, %p289
    %p291 = scmp.le.s32.totalorder 1, %s17
    %p292 = scmp.lt.s32.totalorder %s17, 3
    %p293 = pnand %p291, %p292
    %p294 = pneg %p293
    // Predicated region
    $region9: #{_lambda_.1} parent=5 // pred_check
      _
    $region10: #{_lambda_.1} parent=5 // pred_check_branch
      %296 = sbr.rel (%p293) target = $region12
    $region11: #{_lambda_.1} parent=5 // pred_region
      %s297 = ssub.s32 %s17, 1
      // Predicated region
      $region13: #{_lambda_.1} parent=11 // pred_check
        %p298 = pneg %p142
      $region14: #{_lambda_.1} parent=11 // pred_check_branch
        %300 = sbr.rel (%p298) target = $region16
      $region15: #{_lambda_.1} parent=11 // pred_region
        _
      $region16: #{_lambda_.1} parent=11 // pred_fallthru
        _
      // Predicated region
      $region17: #{_lambda_.1} parent=11 // pred_check
        %p301 = pneg %p163
      $region18: #{_lambda_.1} parent=11 // pred_check_branch
        %303 = sbr.rel (%p301) target = $region20
      $region19: #{_lambda_.1} parent=11 // pred_region
        _
      $region20: #{_lambda_.1} parent=11 // pred_fallthru
        _
      // Predicated region
      $region21: #{_lambda_.1} parent=11 // pred_check
        %p304 = pneg %p184
      $region22: #{_lambda_.1} parent=11 // pred_check_branch
        %306 = sbr.rel (%p304) target = $region24
      $region23: #{_lambda_.1} parent=11 // pred_region
        _
      $region24: #{_lambda_.1} parent=11 // pred_fallthru
        _
      // Predicated region
      $region25: #{_lambda_.1} parent=11 // pred_check
        %p307 = pneg %p205
      $region26: #{_lambda_.1} parent=11 // pred_check_branch
        %309 = sbr.rel (%p307) target = $region28
      $region27: #{_lambda_.1} parent=11 // pred_region
        _
      $region28: #{_lambda_.1} parent=11 // pred_fallthru
        _
    $region12: #{_lambda_.1} parent=5 // pred_fallthru
      _
    %p310 = scmp.lt.s32.totalorder %s17, 2
    // Predicated region
    $region29: #{_lambda_.1} parent=5 // pred_check
      %p311 = pneg %p310
    $region30: #{_lambda_.1} parent=5 // pred_check_branch
      %313 = sbr.rel (%p311) target = $region32
    $region31: #{_lambda_.1} parent=5 // pred_region
      // Predicated region
      $region33: #{_lambda_.1} parent=31 // pred_check
        %p314 = pneg %p37
      $region34: #{_lambda_.1} parent=31 // pred_check_branch
        %316 = sbr.rel (%p314) target = $region36
      $region35: #{_lambda_.1} parent=31 // pred_region
        %p317 = scmp.lt.s32.totalorder %s17, 1
        %s318 = scalar_select %p317, %s17, 1
        %s319 = smul.addr %s318, 4
        %s320 = scalar_lea.vmem %s0, %s319
      $region36: #{_lambda_.1} parent=31 // pred_fallthru
        _
      // Predicated region
      $region37: #{_lambda_.1} parent=31 // pred_check
        %p321 = pneg %p63
      $region38: #{_lambda_.1} parent=31 // pred_check_branch
        %323 = sbr.rel (%p321) target = $region40
      $region39: #{_lambda_.1} parent=31 // pred_region
        %p324 = scmp.lt.s32.totalorder %s17, 1
        %s325 = scalar_select %p324, %s17, 1
        %s326 = smul.addr %s325, 5
        %s327 = smul.addr %s326, 4
        %s328 = scalar_lea.vmem %s1, %s327
      $region40: #{_lambda_.1} parent=31 // pred_fallthru
        _
      // Predicated region
      $region41: #{_lambda_.1} parent=31 // pred_check
        %p329 = pneg %p89
      $region42: #{_lambda_.1} parent=31 // pred_check_branch
        %331 = sbr.rel (%p329) target = $region44
      $region43: #{_lambda_.1} parent=31 // pred_region
        %p332 = scmp.lt.s32.totalorder %s17, 1
        %s333 = scalar_select %p332, %s17, 1
        %s334 = smul.addr %s333, 2
        %s335 = smul.addr %s334, 8
        %s336 = scalar_lea.vmem %s2, %s335
      $region44: #{_lambda_.1} parent=31 // pred_fallthru
        _
      // Predicated region
      $region45: #{_lambda_.1} parent=31 // pred_check
        %p337 = pneg %p115
      $region46: #{_lambda_.1} parent=31 // pred_check_branch
        %339 = sbr.rel (%p337) target = $region48
      $region47: #{_lambda_.1} parent=31 // pred_region
        %p340 = scmp.lt.s32.totalorder %s17, 1
        %s341 = scalar_select %p340, %s17, 1
        %s342 = smul.addr %s341, 7
        %s343 = smul.addr %s342, 4
        %s344 = scalar_lea.vmem %s3, %s343
      $region48: #{_lambda_.1} parent=31 // pred_fallthru
        _
    $region32: #{_lambda_.1} parent=5 // pred_fallthru
      _
    %p345 = scmp.le.s32.totalorder 1, %s17
    %p346 = scmp.lt.s32.totalorder %s17, 3
    %p347 = pnand %p345, %p346
    %p348 = pneg %p347
    // Predicated region
    $region49: #{_lambda_.1} parent=5 // pred_check
      _
    $region50: #{_lambda_.1} parent=5 // pred_check_branch
      %350 = sbr.rel (%p347) target = $region52
    $region51: #{_lambda_.1} parent=5 // pred_region
      %s351 = ssub.s32 %s17, 1
      %p352 = scmp.lt.s32.totalorder %s22, 1
      %s353 = scalar_select %p352, %s22, 1
      %s354 = smul.addr %s353, 4
      %s355 = scalar_lea.vmem %s0, %s354
      %p356 = pneg %p43
      %p357 = pneg %p40
      %p358 = scmp.lt.s32.totalorder %s22, 1
      %s359 = scalar_select %p358, %s22, 1
      %s360 = smul.addr %s359, 5
      %s361 = smul.addr %s360, 4
      %s362 = scalar_lea.vmem %s1, %s361
      %p363 = pneg %p69
      %p364 = pneg %p66
      %p365 = scmp.lt.s32.totalorder %s22, 1
      %s366 = scalar_select %p365, %s22, 1
      %s367 = smul.addr %s366, 2
      %s368 = smul.addr %s367, 8
      %s369 = scalar_lea.vmem %s2, %s368
      %p370 = pneg %p95
      %p371 = pneg %p92
      %p372 = scmp.lt.s32.totalorder %s22, 1
      %s373 = scalar_select %p372, %s22, 1
      %s374 = smul.addr %s373, 7
      %s375 = smul.addr %s374, 4
      %s376 = scalar_lea.vmem %s3, %s375
      %p377 = pneg %p121
      %p378 = pneg %p118
      %p379 = pneg %p142
      %p380 = pneg %p139
      %p381 = pneg %p163
      %p382 = pneg %p160
      %p383 = pneg %p184
      %p384 = pneg %p181
      %p385 = pneg %p205
      %p386 = pneg %p202
      %p387 = pneg %p231
      %p388 = pneg %p228
      %p389 = scmp.lt.s32.totalorder %s22, 1
      %s390 = scalar_select %p389, %s22, 1
      %s391 = smul.addr %s390, 7
      %s392 = smul.addr %s391, 4
      %s393 = scalar_lea.vmem %s8, %s392
      %p394 = pneg %p257
      %p395 = pneg %p254
      %p396 = scmp.lt.s32.totalorder %s22, 1
      %s397 = scalar_select %p396, %s22, 1
      %s398 = smul.addr %s397, 7
      %s399 = smul.addr %s398, 4
      %s400 = scalar_lea.vmem %s9, %s399
      %p401 = pneg %p283
      %p402 = pneg %p280
      %p403 = scmp.lt.s32.totalorder %s22, 1
      %s404 = scalar_select %p403, %s22, 1
      %s405 = smul.addr %s404, 7
      %s406 = smul.addr %s405, 4
      %s407 = scalar_lea.vmem %s10, %s406
      %p408 = scmp.lt.s32.totalorder %s22, 1
      %s409 = scalar_select %p408, %s22, 1
      %s410 = smul.addr %s409, 4
      %s411 = scalar_lea.vmem %s0, %s410
      %p412 = scmp.lt.s32.totalorder %s22, 1
      %s413 = scalar_select %p412, %s22, 1
      %s414 = smul.addr %s413, 5
      %s415 = smul.addr %s414, 4
      %s416 = scalar_lea.vmem %s1, %s415
      %p417 = scmp.lt.s32.totalorder %s22, 1
      %s418 = scalar_select %p417, %s22, 1
      %s419 = smul.addr %s418, 2
      %s420 = smul.addr %s419, 8
      %s421 = scalar_lea.vmem %s2, %s420
      %p422 = scmp.lt.s32.totalorder %s22, 1
      %s423 = scalar_select %p422, %s22, 1
      %s424 = smul.addr %s423, 7
      %s425 = smul.addr %s424, 4
      %s426 = scalar_lea.vmem %s3, %s425
      %p427 = scmp.lt.s32.totalorder %s22, 1
      %s428 = scalar_select %p427, %s22, 1
      %s429 = smul.addr %s428, 7
      %s430 = smul.addr %s429, 4
      %s431 = scalar_lea.vmem %s8, %s430
      %p432 = scmp.lt.s32.totalorder %s22, 1
      %s433 = scalar_select %p432, %s22, 1
      %s434 = smul.addr %s433, 7
      %s435 = smul.addr %s434, 4
      %s436 = scalar_lea.vmem %s9, %s435
      %p437 = scmp.lt.s32.totalorder %s22, 1
      %s438 = scalar_select %p437, %s22, 1
      %s439 = smul.addr %s438, 7
      %s440 = smul.addr %s439, 4
      %s441 = scalar_lea.vmem %s10, %s440
      %v442 = vld [vmem:[%s4] sm:$0x77]
      %v443 = vld [vmem:[%s4 + $0x8] sm:$0x77]
      %v444 = vld [vmem:[%s4 + $0x10] sm:$0x77]
      %v445 = vld [vmem:[%s4 + $0x18] sm:$0x7]
      %v446 = vld [vmem:[%s411] sm:$0x7]
      %v447 = vld [vmem:[%s5] sm:$0xff]
      %v448 = vld [vmem:[%s5 + $0x8] sm:$0xff]
      %v449 = vld [vmem:[%s5 + $0x10] sm:$0xff]
      %v450 = vld [vmem:[%s5 + $0x18] sm:$0xff]
      %v451 = vld [vmem:[%s5 + $0x20] sm:$0xff]
      %v452 = vld [vmem:[%s5 + $0x28] sm:$0xff]
      %v453 = vld [vmem:[%s5 + $0x30] sm:$0xff]
      %v454 = vld [vmem:[%s5 + $0x38] sm:$0xff]
      %v455 = vld [vmem:[%s5 + $0x40] sm:$0xff]
      %v456 = vld [vmem:[%s5 + $0x48] sm:$0xff]
      %v457 = vld [vmem:[%s5 + $0x50] sm:$0xff]
      %v458 = vld [vmem:[%s5 + $0x58] sm:$0xff]
      %v459 = vld [vmem:[%s5 + $0x60] sm:$0xff]
      %v460 = vld [vmem:[%s5 + $0x68] sm:$0xff]
      %v461 = vld [vmem:[%s5 + $0x70] sm:$0xff]
      %v462 = vld [vmem:[%s5 + $0x78] sm:$0xff]
      %v463 = vld [vmem:[%s5 + $0x80] sm:$0xff]
      %v464 = vld [vmem:[%s5 + $0x88] sm:$0xff]
      %v465 = vld [vmem:[%s5 + $0x90] sm:$0xff]
      %v466 = vld [vmem:[%s5 + $0x98] sm:$0xff]
      %v467 = vld [vmem:[%s5 + $0xa0] sm:$0xff]
      %v468 = vld [vmem:[%s5 + $0xa8] sm:$0xff]
      %v469 = vld [vmem:[%s5 + $0xb0] sm:$0xff]
      %v470 = vld [vmem:[%s5 + $0xb8] sm:$0xff]
      %v471 = vld [vmem:[%s5 + $0xc0] sm:$0xff]
      %v472 = vld [vmem:[%s5 + $0xc8] sm:$0xff]
      %v473 = vld [vmem:[%s5 + $0xd0] sm:$0xff]
      %v474 = vld [vmem:[%s5 + $0xd8] sm:$0xff]
      %v475 = vld [vmem:[%s5 + $0xe0] sm:$0xff]
      %v476 = vld [vmem:[%s5 + $0xe8] sm:$0xff]
      %v477 = vld [vmem:[%s5 + $0xf0] sm:$0xff]
      %v478 = vld [vmem:[%s5 + $0xf8] sm:$0xff]
      %v479 = vld [vmem:[%s5 + $0x100] sm:$0xff]
      %v480 = vld [vmem:[%s5 + $0x108] sm:$0xff]
      %v481 = vld [vmem:[%s5 + $0x110] sm:$0xff]
      %v482 = vld [vmem:[%s5 + $0x118] sm:$0xff]
      %v483 = vld [vmem:[%s5 + $0x120] sm:$0xff]
      %v484 = vld [vmem:[%s5 + $0x128] sm:$0xff]
      %v485 = vld [vmem:[%s5 + $0x130] sm:$0xff]
      %v486 = vld [vmem:[%s5 + $0x138] sm:$0xff]
      %v487 = vld [vmem:[%s5 + $0x140] sm:$0xff]
      %v488 = vld [vmem:[%s5 + $0x148] sm:$0xff]
      %vm489 = vcmask 392192
      %v491 = vsel %vm489, %v446, 0
      %493 = vmatprep.subr.mxu0 0.0
      %494 = vmatpush1.msra.mxu0 0.0
      %495 = vmatprep.subr.mxu0 0.0
      %496 = vmatpush1.msra.mxu0 0.0
      %497 = vmatprep.subr.mxu0 0.0
      %498 = vmatpush1.msra.mxu0 0.0
      %499 = vmatprep.subr.mxu0 0.0
      %500 = vmatpush1.msra.mxu0 0.0
      %501 = vmatprep.subr.mxu0 0.0
      %502 = vmatpush1.msra.mxu0 0.0
      %503 = vmatprep.subr.mxu0 0.0
      %504 = vmatpush1.msra.mxu0 0.0
      %505 = vmatprep.subr.mxu0 0.0
      %506 = vmatpush1.msra.mxu0 0.0
      %507 = vmatprep.subr.mxu0 0.0
      %508 = vmatpush1.msra.mxu0 0.0
      %509 = vmatprep.subr.mxu0 0.0
      %510 = vmatpush1.msra.mxu0 0.0
      %511 = vmatprep.subr.mxu0 0.0
      %512 = vmatpush1.msra.mxu0 0.0
      %513 = vmatprep.subr.mxu0 %v483
      %514 = vmatpush1.msra.mxu0 %v482
      %515 = vmatprep.subr.mxu0 %v476
      %516 = vmatpush1.msra.mxu0 %v475
      %517 = vmatprep.subr.mxu0 %v469
      %518 = vmatpush1.msra.mxu0 %v468
      %519 = vmatprep.subr.mxu0 %v462
      %520 = vmatpush1.msra.mxu0 %v461
      %521 = vmatprep.subr.mxu0 %v455
      %522 = vmatpush1.msra.mxu0 %v454
      %523 = vmatprep.subr.mxu0 %v448
      %524 = vmatpush1.msra.mxu0 %v447
      %525 = vmatprep.subr.mxu0 0.0
      %526 = vmatpush2.msra.mxu0 0.0
      %527 = vmatprep.subr.mxu0 0.0
      %528 = vmatpush2.msra.mxu0 0.0
      %529 = vmatprep.subr.mxu0 0.0
      %530 = vmatpush2.msra.mxu0 0.0
      %531 = vmatprep.subr.mxu0 0.0
      %532 = vmatpush2.msra.mxu0 0.0
      %533 = vmatprep.subr.mxu0 0.0
      %534 = vmatpush2.msra.mxu0 0.0
      %535 = vmatprep.subr.mxu0 0.0
      %536 = vmatpush2.msra.mxu0 0.0
      %537 = vmatprep.subr.mxu0 0.0
      %538 = vmatpush2.msra.mxu0 0.0
      %539 = vmatprep.subr.mxu0 0.0
      %540 = vmatpush2.msra.mxu0 0.0
      %541 = vmatprep.subr.mxu0 0.0
      %542 = vmatpush2.msra.mxu0 0.0
      %543 = vmatprep.subr.mxu0 0.0
      %544 = vmatpush2.msra.mxu0 0.0
      %545 = vmatprep.subr.mxu0 0.0
      %546 = vmatpush2.msra.mxu0 0.0
      %547 = vmatprep.subr.mxu0 0.0
      %548 = vmatpush2.msra.mxu0 0.0
      %549 = vmatprep.subr.mxu0 0.0
      %550 = vmatpush2.msra.mxu0 0.0
      %551 = vmatprep.subr.mxu0 0.0
      %552 = vmatpush2.msra.mxu0 0.0
      %553 = vmatprep.subr.mxu0 0.0
      %554 = vmatpush2.msra.mxu0 0.0
      %555 = vmatprep.subr.mxu0 0.0
      %556 = vmatpush2.msra.mxu0 0.0
      %557 = vmatprep.mubr.f32.mxu0 0.0
      %558 = vmatmul.mubr.f32.gmra.mxu0 %v491
      %v559 = vpop.f32.mrf.mxu0
      %v560 = vadd.f32 0.0, %v559
      %v561 = vpop.f32.mrf.mxu0
      %v562 = vadd.f32 0.0, %v561
      %563 = vdwg.mxu0
      %564 = vmatprep.subr.mxu0 0.0
      %565 = vmatpush1.msra.mxu0 0.0
      %566 = vmatprep.subr.mxu0 0.0
      %567 = vmatpush1.msra.mxu0 0.0
      %568 = vmatprep.subr.mxu0 0.0
      %569 = vmatpush1.msra.mxu0 0.0
      %570 = vmatprep.subr.mxu0 0.0
      %571 = vmatpush1.msra.mxu0 0.0
      %572 = vmatprep.subr.mxu0 0.0
      %573 = vmatpush1.msra.mxu0 0.0
      %574 = vmatprep.subr.mxu0 0.0
      %575 = vmatpush1.msra.mxu0 0.0
      %576 = vmatprep.subr.mxu0 0.0
      %577 = vmatpush1.msra.mxu0 0.0
      %578 = vmatprep.subr.mxu0 0.0
      %579 = vmatpush1.msra.mxu0 0.0
      %580 = vmatprep.subr.mxu0 0.0
      %581 = vmatpush1.msra.mxu0 0.0
      %582 = vmatprep.subr.mxu0 0.0
      %583 = vmatpush1.msra.mxu0 0.0
      %584 = vmatprep.subr.mxu0 %v485
      %585 = vmatpush1.msra.mxu0 %v484
      %586 = vmatprep.subr.mxu0 %v478
      %587 = vmatpush1.msra.mxu0 %v477
      %588 = vmatprep.subr.mxu0 %v471
      %589 = vmatpush1.msra.mxu0 %v470
      %590 = vmatprep.subr.mxu0 %v464
      %591 = vmatpush1.msra.mxu0 %v463
      %592 = vmatprep.subr.mxu0 %v457
      %593 = vmatpush1.msra.mxu0 %v456
      %594 = vmatprep.subr.mxu0 %v450
      %595 = vmatpush1.msra.mxu0 %v449
      %596 = vmatprep.subr.mxu0 0.0
      %597 = vmatpush2.msra.mxu0 0.0
      %598 = vmatprep.subr.mxu0 0.0
      %599 = vmatpush2.msra.mxu0 0.0
      %600 = vmatprep.subr.mxu0 0.0
      %601 = vmatpush2.msra.mxu0 0.0
      %602 = vmatprep.subr.mxu0 0.0
      %603 = vmatpush2.msra.mxu0 0.0
      %604 = vmatprep.subr.mxu0 0.0
      %605 = vmatpush2.msra.mxu0 0.0
      %606 = vmatprep.subr.mxu0 0.0
      %607 = vmatpush2.msra.mxu0 0.0
      %608 = vmatprep.subr.mxu0 0.0
      %609 = vmatpush2.msra.mxu0 0.0
      %610 = vmatprep.subr.mxu0 0.0
      %611 = vmatpush2.msra.mxu0 0.0
      %612 = vmatprep.subr.mxu0 0.0
      %613 = vmatpush2.msra.mxu0 0.0
      %614 = vmatprep.subr.mxu0 0.0
      %615 = vmatpush2.msra.mxu0 0.0
      %616 = vmatprep.subr.mxu0 0.0
      %617 = vmatpush2.msra.mxu0 0.0
      %618 = vmatprep.subr.mxu0 0.0
      %619 = vmatpush2.msra.mxu0 0.0
      %620 = vmatprep.subr.mxu0 0.0
      %621 = vmatpush2.msra.mxu0 0.0
      %622 = vmatprep.subr.mxu0 0.0
      %623 = vmatpush2.msra.mxu0 0.0
      %624 = vmatprep.subr.mxu0 0.0
      %625 = vmatpush2.msra.mxu0 0.0
      %626 = vmatprep.subr.mxu0 0.0
      %627 = vmatpush2.msra.mxu0 0.0
      %628 = vmatprep.mubr.f32.mxu0 0.0
      %629 = vmatmul.mubr.f32.gmra.mxu0 %v491
      %v630 = vpop.f32.mrf.mxu0
      %v631 = vadd.f32 0.0, %v630
      %v632 = vpop.f32.mrf.mxu0
      %v633 = vadd.f32 0.0, %v632
      %634 = vdwg.mxu0
      %635 = vmatprep.subr.mxu0 0.0
      %636 = vmatpush1.msra.mxu0 0.0
      %637 = vmatprep.subr.mxu0 0.0
      %638 = vmatpush1.msra.mxu0 0.0
      %639 = vmatprep.subr.mxu0 0.0
      %640 = vmatpush1.msra.mxu0 0.0
      %641 = vmatprep.subr.mxu0 0.0
      %642 = vmatpush1.msra.mxu0 0.0
      %643 = vmatprep.subr.mxu0 0.0
      %644 = vmatpush1.msra.mxu0 0.0
      %645 = vmatprep.subr.mxu0 0.0
      %646 = vmatpush1.msra.mxu0 0.0
      %647 = vmatprep.subr.mxu0 0.0
      %648 = vmatpush1.msra.mxu0 0.0
      %649 = vmatprep.subr.mxu0 0.0
      %650 = vmatpush1.msra.mxu0 0.0
      %651 = vmatprep.subr.mxu0 0.0
      %652 = vmatpush1.msra.mxu0 0.0
      %653 = vmatprep.subr.mxu0 0.0
      %654 = vmatpush1.msra.mxu0 0.0
      %655 = vmatprep.subr.mxu0 %v487
      %656 = vmatpush1.msra.mxu0 %v486
      %657 = vmatprep.subr.mxu0 %v480
      %658 = vmatpush1.msra.mxu0 %v479
      %659 = vmatprep.subr.mxu0 %v473
      %660 = vmatpush1.msra.mxu0 %v472
      %661 = vmatprep.subr.mxu0 %v466
      %662 = vmatpush1.msra.mxu0 %v465
      %663 = vmatprep.subr.mxu0 %v459
      %664 = vmatpush1.msra.mxu0 %v458
      %665 = vmatprep.subr.mxu0 %v452
      %666 = vmatpush1.msra.mxu0 %v451
      %667 = vmatprep.subr.mxu0 0.0
      %668 = vmatpush2.msra.mxu0 0.0
      %669 = vmatprep.subr.mxu0 0.0
      %670 = vmatpush2.msra.mxu0 0.0
      %671 = vmatprep.subr.mxu0 0.0
      %672 = vmatpush2.msra.mxu0 0.0
      %673 = vmatprep.subr.mxu0 0.0
      %674 = vmatpush2.msra.mxu0 0.0
      %675 = vmatprep.subr.mxu0 0.0
      %676 = vmatpush2.msra.mxu0 0.0
      %677 = vmatprep.subr.mxu0 0.0
      %678 = vmatpush2.msra.mxu0 0.0
      %679 = vmatprep.subr.mxu0 0.0
      %680 = vmatpush2.msra.mxu0 0.0
      %681 = vmatprep.subr.mxu0 0.0
      %682 = vmatpush2.msra.mxu0 0.0
      %683 = vmatprep.subr.mxu0 0.0
      %684 = vmatpush2.msra.mxu0 0.0
      %685 = vmatprep.subr.mxu0 0.0
      %686 = vmatpush2.msra.mxu0 0.0
      %687 = vmatprep.subr.mxu0 0.0
      %688 = vmatpush2.msra.mxu0 0.0
      %689 = vmatprep.subr.mxu0 0.0
      %690 = vmatpush2.msra.mxu0 0.0
      %691 = vmatprep.subr.mxu0 0.0
      %692 = vmatpush2.msra.mxu0 0.0
      %693 = vmatprep.subr.mxu0 0.0
      %694 = vmatpush2.msra.mxu0 0.0
      %695 = vmatprep.subr.mxu0 0.0
      %696 = vmatpush2.msra.mxu0 0.0
      %697 = vmatprep.subr.mxu0 0.0
      %698 = vmatpush2.msra.mxu0 0.0
      %699 = vmatprep.mubr.f32.mxu0 0.0
      %700 = vmatmul.mubr.f32.gmra.mxu0 %v491
      %v701 = vpop.f32.mrf.mxu0
      %v702 = vadd.f32 0.0, %v701
      %v703 = vpop.f32.mrf.mxu0
      %v704 = vadd.f32 0.0, %v703
      %705 = vdwg.mxu0
      %706 = vmatprep.subr.mxu0 0.0
      %707 = vmatpush1.msra.mxu0 0.0
      %708 = vmatprep.subr.mxu0 0.0
      %709 = vmatpush1.msra.mxu0 0.0
      %710 = vmatprep.subr.mxu0 0.0
      %711 = vmatpush1.msra.mxu0 0.0
      %712 = vmatprep.subr.mxu0 0.0
      %713 = vmatpush1.msra.mxu0 0.0
      %714 = vmatprep.subr.mxu0 0.0
      %715 = vmatpush1.msra.mxu0 0.0
      %716 = vmatprep.subr.mxu0 0.0
      %717 = vmatpush1.msra.mxu0 0.0
      %718 = vmatprep.subr.mxu0 0.0
      %719 = vmatpush1.msra.mxu0 0.0
      %720 = vmatprep.subr.mxu0 0.0
      %721 = vmatpush1.msra.mxu0 0.0
      %722 = vmatprep.subr.mxu0 0.0
      %723 = vmatpush1.msra.mxu0 0.0
      %724 = vmatprep.subr.mxu0 0.0
      %725 = vmatpush1.msra.mxu0 0.0
      %726 = vmatprep.subr.mxu0 0.0
      %727 = vmatpush1.msra.mxu0 %v488
      %728 = vmatprep.subr.mxu0 0.0
      %729 = vmatpush1.msra.mxu0 %v481
      %730 = vmatprep.subr.mxu0 0.0
      %731 = vmatpush1.msra.mxu0 %v474
      %732 = vmatprep.subr.mxu0 0.0
      %733 = vmatpush1.msra.mxu0 %v467
      %734 = vmatprep.subr.mxu0 0.0
      %735 = vmatpush1.msra.mxu0 %v460
      %736 = vmatprep.subr.mxu0 0.0
      %737 = vmatpush1.msra.mxu0 %v453
      %738 = vmatprep.subr.mxu0 0.0
      %739 = vmatpush2.msra.mxu0 0.0
      %740 = vmatprep.subr.mxu0 0.0
      %741 = vmatpush2.msra.mxu0 0.0
      %742 = vmatprep.subr.mxu0 0.0
      %743 = vmatpush2.msra.mxu0 0.0
      %744 = vmatprep.subr.mxu0 0.0
      %745 = vmatpush2.msra.mxu0 0.0
      %746 = vmatprep.subr.mxu0 0.0
      %747 = vmatpush2.msra.mxu0 0.0
      %748 = vmatprep.subr.mxu0 0.0
      %749 = vmatpush2.msra.mxu0 0.0
      %750 = vmatprep.subr.mxu0 0.0
      %751 = vmatpush2.msra.mxu0 0.0
      %752 = vmatprep.subr.mxu0 0.0
      %753 = vmatpush2.msra.mxu0 0.0
      %754 = vmatprep.subr.mxu0 0.0
      %755 = vmatpush2.msra.mxu0 0.0
      %756 = vmatprep.subr.mxu0 0.0
      %757 = vmatpush2.msra.mxu0 0.0
      %758 = vmatprep.subr.mxu0 0.0
      %759 = vmatpush2.msra.mxu0 0.0
      %760 = vmatprep.subr.mxu0 0.0
      %761 = vmatpush2.msra.mxu0 0.0
      %762 = vmatprep.subr.mxu0 0.0
      %763 = vmatpush2.msra.mxu0 0.0
      %764 = vmatprep.subr.mxu0 0.0
      %765 = vmatpush2.msra.mxu0 0.0
      %766 = vmatprep.subr.mxu0 0.0
      %767 = vmatpush2.msra.mxu0 0.0
      %768 = vmatprep.subr.mxu0 0.0
      %769 = vmatpush2.msra.mxu0 0.0
      %770 = vmatprep.mubr.f32.mxu0 0.0
      %771 = vmatmul.mubr.f32.gmra.mxu0 %v491
      %v772 = vpop.f32.mrf.mxu0
      %v773 = vadd.f32 0.0, %v772
      %v774 = vpop.f32.mrf.mxu0
      %775 = vdwg.mxu0
      %v782 = vcombine.low %v560, %v562
      %v783 = vcombine.low %v631, %v633
      %v784 = vcombine.low %v702, %v704
      %v788 = vadd.f32 %v442, %v782
      %v789 = vadd.f32 %v443, %v783
      %v790 = vadd.f32 %v444, %v784
      %v791 = vadd.f32 %v445, %v773
      %v792 = vld [vmem:[%s426] sm:$0x77]
      %v793 = vld [vmem:[%s426 + $0x8] sm:$0x77]
      %v794 = vld [vmem:[%s426 + $0x10] sm:$0x77]
      %v795 = vld [vmem:[%s426 + $0x18] sm:$0x7]
      %v796 = vadd.f32 %v788, %v792
      %v797 = vadd.f32 %v789, %v793
      %v798 = vadd.f32 %v790, %v794
      %v799 = vadd.f32 %v791, %v795
      %v800 = vld [vmem:[%s416] sm:$0x77]
      %v801 = vld [vmem:[%s416 + $0x8] sm:$0x77]
      %v802 = vld [vmem:[%s416 + $0x10] sm:$0x7]
      %v803 = vld [vmem:[%s6] sm:$0xff]
      %v804 = vld [vmem:[%s6 + $0x8] sm:$0xff]
      %v805 = vld [vmem:[%s6 + $0x10] sm:$0xff]
      %v806 = vld [vmem:[%s6 + $0x18] sm:$0xff]
      %v807 = vld [vmem:[%s6 + $0x20] sm:$0xff]
      %v808 = vld [vmem:[%s6 + $0x28] sm:$0xff]
      %v809 = vld [vmem:[%s6 + $0x30] sm:$0xff]
      %v810 = vld [vmem:[%s6 + $0x38] sm:$0xff]
      %v811 = vld [vmem:[%s6 + $0x40] sm:$0xff]
      %v812 = vld [vmem:[%s6 + $0x48] sm:$0xff]
      %v813 = vld [vmem:[%s6 + $0x50] sm:$0xff]
      %v814 = vld [vmem:[%s6 + $0x58] sm:$0xff]
      %v815 = vld [vmem:[%s6 + $0x60] sm:$0xff]
      %v816 = vld [vmem:[%s6 + $0x68] sm:$0xff]
      %v817 = vld [vmem:[%s6 + $0x70] sm:$0xff]
      %v818 = vld [vmem:[%s6 + $0x78] sm:$0xff]
      %v819 = vld [vmem:[%s6 + $0x80] sm:$0xff]
      %v820 = vld [vmem:[%s6 + $0x88] sm:$0xff]
      %v821 = vld [vmem:[%s6 + $0x90] sm:$0xff]
      %v822 = vld [vmem:[%s6 + $0x98] sm:$0xff]
      %v823 = vld [vmem:[%s6 + $0xa0] sm:$0xff]
      %v824 = vld [vmem:[%s6 + $0xa8] sm:$0xff]
      %v825 = vld [vmem:[%s6 + $0xb0] sm:$0xff]
      %v826 = vld [vmem:[%s6 + $0xb8] sm:$0xff]
      %v827 = vld [vmem:[%s6 + $0xc0] sm:$0xff]
      %v828 = vld [vmem:[%s6 + $0xc8] sm:$0xff]
      %v829 = vld [vmem:[%s6 + $0xd0] sm:$0xff]
      %v830 = vld [vmem:[%s6 + $0xd8] sm:$0xff]
      %v831 = vld [vmem:[%s6 + $0xe0] sm:$0xff]
      %v832 = vld [vmem:[%s6 + $0xe8] sm:$0xff]
      %v833 = vld [vmem:[%s6 + $0xf0] sm:$0xff]
      %v834 = vld [vmem:[%s6 + $0xf8] sm:$0xff]
      %v835 = vld [vmem:[%s6 + $0x100] sm:$0xff]
      %v836 = vld [vmem:[%s6 + $0x108] sm:$0xff]
      %v837 = vld [vmem:[%s6 + $0x110] sm:$0xff]
      %v838 = vld [vmem:[%s6 + $0x118] sm:$0xff]
      %v839 = vld [vmem:[%s6 + $0x120] sm:$0xff]
      %v840 = vld [vmem:[%s6 + $0x128] sm:$0xff]
      %v841 = vld [vmem:[%s6 + $0x130] sm:$0xff]
      %v842 = vld [vmem:[%s6 + $0x138] sm:$0xff]
      %v843 = vld [vmem:[%s6 + $0x140] sm:$0xff]
      %v844 = vld [vmem:[%s6 + $0x148] sm:$0xff]
      %v845 = vld [vmem:[%s6 + $0x150] sm:$0xff]
      %v846 = vld [vmem:[%s6 + $0x158] sm:$0xff]
      %v847 = vld [vmem:[%s6 + $0x160] sm:$0xff]
      %v848 = vld [vmem:[%s6 + $0x168] sm:$0xff]
      %v849 = vld [vmem:[%s6 + $0x170] sm:$0xff]
      %v850 = vld [vmem:[%s6 + $0x178] sm:$0xff]
      %v851 = vld [vmem:[%s6 + $0x180] sm:$0xff]
      %v852 = vld [vmem:[%s6 + $0x188] sm:$0xff]
      %v853 = vld [vmem:[%s6 + $0x190] sm:$0xff]
      %v854 = vld [vmem:[%s6 + $0x198] sm:$0xff]
      %v855 = vld [vmem:[%s6 + $0x1a0] sm:$0xff]
      %v856 = vld [vmem:[%s6 + $0x1a8] sm:$0xff]
      %v857 = vld [vmem:[%s6 + $0x1b0] sm:$0xff]
      %v858 = vld [vmem:[%s6 + $0x1b8] sm:$0xff]
      %v859 = vld [vmem:[%s6 + $0x1c0] sm:$0xff]
      %v860 = vld [vmem:[%s6 + $0x1c8] sm:$0xff]
      %v861 = vld [vmem:[%s6 + $0x1d0] sm:$0xff]
      %v862 = vld [vmem:[%s6 + $0x1d8] sm:$0xff]
      %v863 = vld [vmem:[%s6 + $0x1e0] sm:$0xff]
      %v864 = vld [vmem:[%s6 + $0x1e8] sm:$0xff]
      %v865 = vld [vmem:[%s6 + $0x1f0] sm:$0xff]
      %v866 = vld [vmem:[%s6 + $0x1f8] sm:$0xff]
      %v867 = vld [vmem:[%s6 + $0x200] sm:$0xff]
      %v868 = vld [vmem:[%s6 + $0x208] sm:$0xff]
      %v869 = vld [vmem:[%s6 + $0x210] sm:$0xff]
      %v870 = vld [vmem:[%s6 + $0x218] sm:$0xff]
      %v871 = vld [vmem:[%s6 + $0x220] sm:$0xff]
      %v872 = vld [vmem:[%s6 + $0x228] sm:$0xff]
      %v873 = vld [vmem:[%s6 + $0x230] sm:$0xff]
      %v874 = vld [vmem:[%s6 + $0x238] sm:$0xff]
      %v875 = vld [vmem:[%s6 + $0x240] sm:$0xff]
      %v876 = vld [vmem:[%s6 + $0x248] sm:$0xff]
      %v877 = vld [vmem:[%s6 + $0x250] sm:$0xff]
      %v878 = vld [vmem:[%s6 + $0x258] sm:$0xff]
      %v879 = vld [vmem:[%s6 + $0x260] sm:$0xff]
      %v880 = vld [vmem:[%s6 + $0x268] sm:$0xff]
      %v881 = vld [vmem:[%s6 + $0x270] sm:$0xff]
      %v882 = vld [vmem:[%s6 + $0x278] sm:$0xff]
      %v883 = vld [vmem:[%s6 + $0x280] sm:$0xff]
      %v884 = vld [vmem:[%s6 + $0x288] sm:$0xff]
      %v885 = vld [vmem:[%s6 + $0x290] sm:$0xff]
      %v886 = vld [vmem:[%s6 + $0x298] sm:$0xff]
      %v887 = vld [vmem:[%s6 + $0x2a0] sm:$0xff]
      %v888 = vld [vmem:[%s6 + $0x2a8] sm:$0xff]
      %v889 = vld [vmem:[%s6 + $0x2b0] sm:$0xff]
      %v890 = vld [vmem:[%s6 + $0x2b8] sm:$0xff]
      %v891 = vld [vmem:[%s6 + $0x2c0] sm:$0xff]
      %v892 = vld [vmem:[%s6 + $0x2c8] sm:$0xff]
      %v893 = vld [vmem:[%s6 + $0x2d0] sm:$0xff]
      %v894 = vld [vmem:[%s6 + $0x2d8] sm:$0xff]
      %v895 = vld [vmem:[%s6 + $0x2e0] sm:$0xff]
      %v896 = vld [vmem:[%s6 + $0x2e8] sm:$0xff]
      %v897 = vld [vmem:[%s6 + $0x2f0] sm:$0xff]
      %v898 = vld [vmem:[%s6 + $0x2f8] sm:$0xff]
      %v899 = vld [vmem:[%s6 + $0x300] sm:$0xff]
      %v900 = vld [vmem:[%s6 + $0x308] sm:$0xff]
      %v901 = vld [vmem:[%s6 + $0x310] sm:$0xff]
      %v902 = vld [vmem:[%s6 + $0x318] sm:$0xff]
      %v903 = vld [vmem:[%s6 + $0x320] sm:$0xff]
      %v904 = vld [vmem:[%s6 + $0x328] sm:$0xff]
      %v905 = vld [vmem:[%s6 + $0x330] sm:$0xff]
      %v906 = vld [vmem:[%s6 + $0x338] sm:$0xff]
      %v907 = vld [vmem:[%s6 + $0x340] sm:$0xff]
      %v908 = vld [vmem:[%s6 + $0x348] sm:$0xff]
      %v909 = vld [vmem:[%s6 + $0x350] sm:$0xff]
      %v910 = vld [vmem:[%s6 + $0x358] sm:$0xff]
      %v911 = vld [vmem:[%s6 + $0x360] sm:$0xff]
      %v912 = vld [vmem:[%s6 + $0x368] sm:$0xff]
      %v913 = vld [vmem:[%s6 + $0x370] sm:$0xff]
      %v914 = vld [vmem:[%s6 + $0x378] sm:$0xff]
      %v915 = vld [vmem:[%s6 + $0x380] sm:$0xff]
      %v916 = vld [vmem:[%s6 + $0x388] sm:$0xff]
      %v917 = vld [vmem:[%s6 + $0x390] sm:$0xff]
      %v918 = vld [vmem:[%s6 + $0x398] sm:$0xff]
      %v919 = vld [vmem:[%s6 + $0x3a0] sm:$0xff]
      %v920 = vld [vmem:[%s6 + $0x3a8] sm:$0xff]
      %v921 = vld [vmem:[%s6 + $0x3b0] sm:$0xff]
      %v922 = vld [vmem:[%s6 + $0x3b8] sm:$0xff]
      %v923 = vld [vmem:[%s6 + $0x3c0] sm:$0xff]
      %v924 = vld [vmem:[%s6 + $0x3c8] sm:$0xff]
      %v925 = vld [vmem:[%s6 + $0x3d0] sm:$0xff]
      %v926 = vld [vmem:[%s6 + $0x3d8] sm:$0xff]
      %v927 = vld [vmem:[%s6 + $0x3e0] sm:$0xff]
      %v928 = vld [vmem:[%s6 + $0x3e8] sm:$0xff]
      %v929 = vld [vmem:[%s6 + $0x3f0] sm:$0xff]
      %v930 = vld [vmem:[%s6 + $0x3f8] sm:$0xff]
      %v931 = vld [vmem:[%s6 + $0x400] sm:$0xff]
      %v932 = vld [vmem:[%s6 + $0x408] sm:$0xff]
      %v933 = vld [vmem:[%s6 + $0x410] sm:$0xff]
      %v934 = vld [vmem:[%s6 + $0x418] sm:$0xff]
      %v935 = vld [vmem:[%s6 + $0x420] sm:$0xff]
      %v936 = vld [vmem:[%s6 + $0x428] sm:$0xff]
      %v937 = vld [vmem:[%s6 + $0x430] sm:$0xff]
      %v938 = vld [vmem:[%s6 + $0x438] sm:$0xff]
      %v939 = vld [vmem:[%s6 + $0x440] sm:$0xff]
      %v940 = vld [vmem:[%s6 + $0x448] sm:$0xff]
      %v941 = vld [vmem:[%s6 + $0x450] sm:$0xff]
      %v942 = vld [vmem:[%s6 + $0x458] sm:$0xff]
      %v943 = vld [vmem:[%s6 + $0x460] sm:$0xff]
      %v944 = vld [vmem:[%s6 + $0x468] sm:$0xff]
      %v945 = vld [vmem:[%s6 + $0x470] sm:$0xff]
      %v946 = vld [vmem:[%s6 + $0x478] sm:$0xff]
      %v947 = vld [vmem:[%s6 + $0x480] sm:$0xff]
      %v948 = vld [vmem:[%s6 + $0x488] sm:$0xff]
      %v949 = vld [vmem:[%s6 + $0x490] sm:$0xff]
      %v950 = vld [vmem:[%s6 + $0x498] sm:$0xff]
      %v951 = vld [vmem:[%s6 + $0x4a0] sm:$0xff]
      %v952 = vld [vmem:[%s6 + $0x4a8] sm:$0xff]
      %v953 = vld [vmem:[%s6 + $0x4b0] sm:$0xff]
      %v954 = vld [vmem:[%s6 + $0x4b8] sm:$0xff]
      %v955 = vld [vmem:[%s6 + $0x4c0] sm:$0xff]
      %v956 = vld [vmem:[%s6 + $0x4c8] sm:$0xff]
      %v957 = vld [vmem:[%s6 + $0x4d0] sm:$0xff]
      %v958 = vld [vmem:[%s6 + $0x4d8] sm:$0xff]
      %v959 = vld [vmem:[%s6 + $0x4e0] sm:$0xff]
      %v960 = vld [vmem:[%s6 + $0x4e8] sm:$0xff]
      %v961 = vld [vmem:[%s6 + $0x4f0] sm:$0xff]
      %v962 = vld [vmem:[%s6 + $0x4f8] sm:$0xff]
      %v963 = vld [vmem:[%s6 + $0x500] sm:$0xff]
      %v964 = vld [vmem:[%s6 + $0x508] sm:$0xff]
      %v965 = vld [vmem:[%s6 + $0x510] sm:$0xff]
      %v966 = vld [vmem:[%s6 + $0x518] sm:$0xff]
      %v967 = vld [vmem:[%s6 + $0x520] sm:$0xff]
      %v968 = vld [vmem:[%s6 + $0x528] sm:$0xff]
      %v969 = vld [vmem:[%s6 + $0x530] sm:$0xff]
      %v970 = vld [vmem:[%s6 + $0x538] sm:$0xff]
      %v971 = vld [vmem:[%s6 + $0x540] sm:$0xff]
      %v972 = vld [vmem:[%s6 + $0x548] sm:$0xff]
      %v973 = vld [vmem:[%s6 + $0x550] sm:$0xff]
      %v974 = vld [vmem:[%s6 + $0x558] sm:$0xff]
      %v975 = vld [vmem:[%s6 + $0x560] sm:$0xff]
      %v976 = vld [vmem:[%s6 + $0x568] sm:$0xff]
      %v977 = vld [vmem:[%s6 + $0x570] sm:$0xff]
      %v978 = vld [vmem:[%s6 + $0x578] sm:$0xff]
      %v979 = vld [vmem:[%s6 + $0x580] sm:$0xff]
      %v980 = vld [vmem:[%s6 + $0x588] sm:$0xff]
      %v981 = vld [vmem:[%s6 + $0x590] sm:$0xff]
      %v982 = vld [vmem:[%s6 + $0x598] sm:$0xff]
      %v983 = vld [vmem:[%s6 + $0x5a0] sm:$0xff]
      %v984 = vld [vmem:[%s6 + $0x5a8] sm:$0xff]
      %v985 = vld [vmem:[%s6 + $0x5b0] sm:$0xff]
      %v986 = vld [vmem:[%s6 + $0x5b8] sm:$0xff]
      %v987 = vld [vmem:[%s6 + $0x5c0] sm:$0xff]
      %v988 = vld [vmem:[%s6 + $0x5c8] sm:$0xff]
      %v989 = vld [vmem:[%s6 + $0x5d0] sm:$0xff]
      %v990 = vld [vmem:[%s6 + $0x5d8] sm:$0xff]
      %v991 = vld [vmem:[%s6 + $0x5e0] sm:$0xff]
      %v992 = vld [vmem:[%s6 + $0x5e8] sm:$0xff]
      %v993 = vld [vmem:[%s6 + $0x5f0] sm:$0xff]
      %v994 = vld [vmem:[%s6 + $0x5f8] sm:$0xff]
      %v995 = vld [vmem:[%s6 + $0x600] sm:$0xff]
      %v996 = vld [vmem:[%s6 + $0x608] sm:$0xff]
      %v997 = vld [vmem:[%s6 + $0x610] sm:$0xff]
      %v998 = vld [vmem:[%s6 + $0x618] sm:$0xff]
      %v999 = vld [vmem:[%s6 + $0x620] sm:$0xff]
      %v1000 = vld [vmem:[%s6 + $0x628] sm:$0xff]
      %v1001 = vld [vmem:[%s6 + $0x630] sm:$0xff]
      %v1002 = vld [vmem:[%s6 + $0x638] sm:$0xff]
      %v1003 = vld [vmem:[%s6 + $0x640] sm:$0xff]
      %v1004 = vld [vmem:[%s6 + $0x648] sm:$0xff]
      %v1005 = vld [vmem:[%s6 + $0x650] sm:$0xff]
      %v1006 = vld [vmem:[%s6 + $0x658] sm:$0xff]
      %v1007 = vld [vmem:[%s6 + $0x660] sm:$0xff]
      %v1008 = vld [vmem:[%s6 + $0x668] sm:$0xff]
      %v1009 = vld [vmem:[%s6 + $0x670] sm:$0xff]
      %v1010 = vld [vmem:[%s6 + $0x678] sm:$0xff]
      %v1011 = vld [vmem:[%s6 + $0x680] sm:$0xff]
      %v1012 = vld [vmem:[%s6 + $0x688] sm:$0xff]
      %v1013 = vld [vmem:[%s6 + $0x690] sm:$0xff]
      %v1014 = vld [vmem:[%s6 + $0x698] sm:$0xff]
      %v1015 = vld [vmem:[%s6 + $0x6a0] sm:$0xff]
      %v1016 = vld [vmem:[%s6 + $0x6a8] sm:$0xff]
      %v1017 = vld [vmem:[%s6 + $0x6b0] sm:$0xff]
      %v1018 = vld [vmem:[%s6 + $0x6b8] sm:$0xff]
      %v1019 = vld [vmem:[%s6 + $0x6c0] sm:$0xff]
      %v1020 = vld [vmem:[%s6 + $0x6c8] sm:$0xff]
      %v1021 = vld [vmem:[%s6 + $0x6d0] sm:$0xff]
      %v1022 = vld [vmem:[%s6 + $0x6d8] sm:$0xff]
      %v1023 = vld [vmem:[%s6 + $0x6e0] sm:$0xff]
      %v1024 = vld [vmem:[%s6 + $0x6e8] sm:$0xff]
      %v1025 = vld [vmem:[%s6 + $0x6f0] sm:$0xff]
      %v1026 = vld [vmem:[%s6 + $0x6f8] sm:$0xff]
      %v1027 = vld [vmem:[%s6 + $0x700] sm:$0xff]
      %v1028 = vld [vmem:[%s6 + $0x708] sm:$0xff]
      %v1029 = vld [vmem:[%s6 + $0x710] sm:$0xff]
      %v1030 = vld [vmem:[%s6 + $0x718] sm:$0xff]
      %v1031 = vld [vmem:[%s6 + $0x720] sm:$0xff]
      %v1032 = vld [vmem:[%s6 + $0x728] sm:$0xff]
      %v1033 = vld [vmem:[%s6 + $0x730] sm:$0xff]
      %v1034 = vld [vmem:[%s6 + $0x738] sm:$0xff]
      %v1035 = vld [vmem:[%s6 + $0x740] sm:$0xff]
      %v1036 = vld [vmem:[%s6 + $0x748] sm:$0xff]
      %v1037 = vld [vmem:[%s6 + $0x750] sm:$0xff]
      %v1038 = vld [vmem:[%s6 + $0x758] sm:$0xff]
      %v1039 = vld [vmem:[%s6 + $0x760] sm:$0xff]
      %v1040 = vld [vmem:[%s6 + $0x768] sm:$0xff]
      %v1041 = vld [vmem:[%s6 + $0x770] sm:$0xff]
      %v1042 = vld [vmem:[%s6 + $0x778] sm:$0xff]
      %v1043 = vld [vmem:[%s6 + $0x780] sm:$0xff]
      %v1044 = vld [vmem:[%s6 + $0x788] sm:$0xff]
      %v1045 = vld [vmem:[%s6 + $0x790] sm:$0xff]
      %v1046 = vld [vmem:[%s6 + $0x798] sm:$0xff]
      %v1047 = vld [vmem:[%s6 + $0x7a0] sm:$0xff]
      %v1048 = vld [vmem:[%s6 + $0x7a8] sm:$0xff]
      %v1049 = vld [vmem:[%s6 + $0x7b0] sm:$0xff]
      %v1050 = vld [vmem:[%s6 + $0x7b8] sm:$0xff]
      %v1051 = vld [vmem:[%s6 + $0x7c0] sm:$0xff]
      %v1052 = vld [vmem:[%s6 + $0x7c8] sm:$0xff]
      %v1053 = vld [vmem:[%s6 + $0x7d0] sm:$0xff]
      %v1054 = vld [vmem:[%s6 + $0x7d8] sm:$0xff]
      %v1055 = vld [vmem:[%s6 + $0x7e0] sm:$0xff]
      %v1056 = vld [vmem:[%s6 + $0x7e8] sm:$0xff]
      %v1057 = vld [vmem:[%s6 + $0x7f0] sm:$0xff]
      %v1058 = vld [vmem:[%s6 + $0x7f8] sm:$0xff]
      %v1059 = vld [vmem:[%s6 + $0x800] sm:$0xff]
      %v1060 = vld [vmem:[%s6 + $0x808] sm:$0xff]
      %v1061 = vld [vmem:[%s6 + $0x810] sm:$0xff]
      %v1062 = vld [vmem:[%s6 + $0x818] sm:$0xff]
      %v1063 = vld [vmem:[%s6 + $0x820] sm:$0xff]
      %v1064 = vld [vmem:[%s6 + $0x828] sm:$0xff]
      %v1065 = vld [vmem:[%s6 + $0x830] sm:$0xff]
      %v1066 = vld [vmem:[%s6 + $0x838] sm:$0xff]
      %v1067 = vld [vmem:[%s6 + $0x840] sm:$0xff]
      %v1068 = vld [vmem:[%s6 + $0x848] sm:$0xff]
      %v1069 = vld [vmem:[%s6 + $0x850] sm:$0xff]
      %v1070 = vld [vmem:[%s6 + $0x858] sm:$0xff]
      %v1071 = vld [vmem:[%s6 + $0x860] sm:$0xff]
      %v1072 = vld [vmem:[%s6 + $0x868] sm:$0xff]
      %v1073 = vld [vmem:[%s6 + $0x870] sm:$0xff]
      %v1074 = vld [vmem:[%s6 + $0x878] sm:$0xff]
      %v1075 = vld [vmem:[%s6 + $0x880] sm:$0xff]
      %v1076 = vld [vmem:[%s6 + $0x888] sm:$0xff]
      %v1077 = vld [vmem:[%s6 + $0x890] sm:$0xff]
      %v1078 = vld [vmem:[%s6 + $0x898] sm:$0xff]
      %v1079 = vld [vmem:[%s6 + $0x8a0] sm:$0xff]
      %v1080 = vld [vmem:[%s6 + $0x8a8] sm:$0xff]
      %v1081 = vld [vmem:[%s6 + $0x8b0] sm:$0xff]
      %v1082 = vld [vmem:[%s6 + $0x8b8] sm:$0xff]
      %v1083 = vld [vmem:[%s6 + $0x8c0] sm:$0xff]
      %v1084 = vld [vmem:[%s6 + $0x8c8] sm:$0xff]
      %v1085 = vld [vmem:[%s6 + $0x8d0] sm:$0xff]
      %v1086 = vld [vmem:[%s6 + $0x8d8] sm:$0xff]
      %v1087 = vld [vmem:[%s6 + $0x8e0] sm:$0xff]
      %v1088 = vld [vmem:[%s6 + $0x8e8] sm:$0xff]
      %v1089 = vld [vmem:[%s6 + $0x8f0] sm:$0xff]
      %v1090 = vld [vmem:[%s6 + $0x8f8] sm:$0xff]
      %v1091 = vld [vmem:[%s6 + $0x900] sm:$0xff]
      %v1092 = vld [vmem:[%s6 + $0x908] sm:$0xff]
      %v1093 = vld [vmem:[%s6 + $0x910] sm:$0xff]
      %v1094 = vld [vmem:[%s6 + $0x918] sm:$0xff]
      %v1095 = vld [vmem:[%s6 + $0x920] sm:$0xff]
      %v1096 = vld [vmem:[%s6 + $0x928] sm:$0xff]
      %v1097 = vld [vmem:[%s6 + $0x930] sm:$0xff]
      %v1098 = vld [vmem:[%s6 + $0x938] sm:$0xff]
      %v1099 = vld [vmem:[%s6 + $0x940] sm:$0xff]
      %v1100 = vld [vmem:[%s6 + $0x948] sm:$0xff]
      %v1101 = vld [vmem:[%s6 + $0x950] sm:$0xff]
      %v1102 = vld [vmem:[%s6 + $0x958] sm:$0xff]
      %v1103 = vld [vmem:[%s6 + $0x960] sm:$0xff]
      %v1104 = vld [vmem:[%s6 + $0x968] sm:$0xff]
      %v1105 = vld [vmem:[%s6 + $0x970] sm:$0xff]
      %v1106 = vld [vmem:[%s6 + $0x978] sm:$0xff]
      %v1107 = vld [vmem:[%s6 + $0x980] sm:$0xff]
      %v1108 = vld [vmem:[%s6 + $0x988] sm:$0xff]
      %v1109 = vld [vmem:[%s6 + $0x990] sm:$0xff]
      %v1110 = vld [vmem:[%s6 + $0x998] sm:$0xff]
      %v1111 = vld [vmem:[%s6 + $0x9a0] sm:$0xff]
      %v1112 = vld [vmem:[%s6 + $0x9a8] sm:$0xff]
      %v1113 = vld [vmem:[%s6 + $0x9b0] sm:$0xff]
      %v1114 = vld [vmem:[%s6 + $0x9b8] sm:$0xff]
      %v1115 = vld [vmem:[%s6 + $0x9c0] sm:$0xff]
      %v1116 = vld [vmem:[%s6 + $0x9c8] sm:$0xff]
      %v1117 = vld [vmem:[%s6 + $0x9d0] sm:$0xff]
      %v1118 = vld [vmem:[%s6 + $0x9d8] sm:$0xff]
      %v1119 = vld [vmem:[%s6 + $0x9e0] sm:$0xff]
      %v1120 = vld [vmem:[%s6 + $0x9e8] sm:$0xff]
      %v1121 = vld [vmem:[%s6 + $0x9f0] sm:$0xff]
      %v1122 = vld [vmem:[%s6 + $0x9f8] sm:$0xff]
      %v1123 = vld [vmem:[%s6 + $0xa00] sm:$0xff]
      %v1124 = vld [vmem:[%s6 + $0xa08] sm:$0xff]
      %v1125 = vld [vmem:[%s6 + $0xa10] sm:$0xff]
      %v1126 = vld [vmem:[%s6 + $0xa18] sm:$0xff]
      %v1127 = vld [vmem:[%s6 + $0xa20] sm:$0xff]
      %v1128 = vld [vmem:[%s6 + $0xa28] sm:$0xff]
      %v1129 = vld [vmem:[%s6 + $0xa30] sm:$0xff]
      %v1130 = vld [vmem:[%s6 + $0xa38] sm:$0xff]
      %v1131 = vld [vmem:[%s6 + $0xa40] sm:$0xff]
      %v1132 = vld [vmem:[%s6 + $0xa48] sm:$0xff]
      %v1133 = vld [vmem:[%s6 + $0xa50] sm:$0xff]
      %v1134 = vld [vmem:[%s6 + $0xa58] sm:$0xff]
      %v1135 = vld [vmem:[%s6 + $0xa60] sm:$0xff]
      %v1136 = vld [vmem:[%s6 + $0xa68] sm:$0xff]
      %v1137 = vld [vmem:[%s6 + $0xa70] sm:$0xff]
      %v1138 = vld [vmem:[%s6 + $0xa78] sm:$0xff]
      %v1139 = vld [vmem:[%s6 + $0xa80] sm:$0xff]
      %v1140 = vld [vmem:[%s6 + $0xa88] sm:$0xff]
      %v1141 = vld [vmem:[%s6 + $0xa90] sm:$0xff]
      %v1142 = vld [vmem:[%s6 + $0xa98] sm:$0xff]
      %v1143 = vld [vmem:[%s6 + $0xaa0] sm:$0xff]
      %v1144 = vld [vmem:[%s6 + $0xaa8] sm:$0xff]
      %v1145 = vld [vmem:[%s6 + $0xab0] sm:$0xff]
      %v1146 = vld [vmem:[%s6 + $0xab8] sm:$0xff]
      %v1147 = vld [vmem:[%s6 + $0xac0] sm:$0xff]
      %v1148 = vld [vmem:[%s6 + $0xac8] sm:$0xff]
      %v1149 = vld [vmem:[%s6 + $0xad0] sm:$0xff]
      %v1150 = vld [vmem:[%s6 + $0xad8] sm:$0xff]
      %v1151 = vld [vmem:[%s6 + $0xae0] sm:$0xff]
      %v1152 = vld [vmem:[%s6 + $0xae8] sm:$0xff]
      %v1153 = vld [vmem:[%s6 + $0xaf0] sm:$0xff]
      %v1154 = vld [vmem:[%s6 + $0xaf8] sm:$0xff]
      %v1155 = vld [vmem:[%s6 + $0xb00] sm:$0xff]
      %v1156 = vld [vmem:[%s6 + $0xb08] sm:$0xff]
      %v1157 = vld [vmem:[%s6 + $0xb10] sm:$0xff]
      %v1158 = vld [vmem:[%s6 + $0xb18] sm:$0xff]
      %v1159 = vld [vmem:[%s6 + $0xb20] sm:$0xff]
      %v1160 = vld [vmem:[%s6 + $0xb28] sm:$0xff]
      %v1161 = vld [vmem:[%s6 + $0xb30] sm:$0xff]
      %v1162 = vld [vmem:[%s6 + $0xb38] sm:$0xff]
      %v1163 = vld [vmem:[%s6 + $0xb40] sm:$0xff]
      %v1164 = vld [vmem:[%s6 + $0xb48] sm:$0xff]
      %v1165 = vld [vmem:[%s6 + $0xb50] sm:$0xff]
      %v1166 = vld [vmem:[%s6 + $0xb58] sm:$0xff]
      %v1167 = vld [vmem:[%s6 + $0xb60] sm:$0xff]
      %v1168 = vld [vmem:[%s6 + $0xb68] sm:$0xff]
      %v1169 = vld [vmem:[%s6 + $0xb70] sm:$0xff]
      %v1170 = vld [vmem:[%s6 + $0xb78] sm:$0xff]
      %v1171 = vld [vmem:[%s6 + $0xb80] sm:$0xff]
      %v1172 = vld [vmem:[%s6 + $0xb88] sm:$0xff]
      %v1173 = vld [vmem:[%s6 + $0xb90] sm:$0xff]
      %v1174 = vld [vmem:[%s6 + $0xb98] sm:$0xff]
      %v1175 = vld [vmem:[%s6 + $0xba0] sm:$0xff]
      %v1176 = vld [vmem:[%s6 + $0xba8] sm:$0xff]
      %v1177 = vld [vmem:[%s6 + $0xbb0] sm:$0xff]
      %v1178 = vld [vmem:[%s6 + $0xbb8] sm:$0xff]
      %v1179 = vld [vmem:[%s6 + $0xbc0] sm:$0xff]
      %v1180 = vld [vmem:[%s6 + $0xbc8] sm:$0xff]
      %v1181 = vld [vmem:[%s6 + $0xbd0] sm:$0xff]
      %v1182 = vld [vmem:[%s6 + $0xbd8] sm:$0xff]
      %v1183 = vld [vmem:[%s6 + $0xbe0] sm:$0xff]
      %v1184 = vld [vmem:[%s6 + $0xbe8] sm:$0xff]
      %v1185 = vld [vmem:[%s6 + $0xbf0] sm:$0xff]
      %v1186 = vld [vmem:[%s6 + $0xbf8] sm:$0xff]
      %v1187 = vld [vmem:[%s6 + $0xc00] sm:$0xff]
      %v1188 = vld [vmem:[%s6 + $0xc08] sm:$0xff]
      %v1189 = vld [vmem:[%s6 + $0xc10] sm:$0xff]
      %v1190 = vld [vmem:[%s6 + $0xc18] sm:$0xff]
      %v1191 = vld [vmem:[%s6 + $0xc20] sm:$0xff]
      %v1192 = vld [vmem:[%s6 + $0xc28] sm:$0xff]
      %v1193 = vld [vmem:[%s6 + $0xc30] sm:$0xff]
      %v1194 = vld [vmem:[%s6 + $0xc38] sm:$0xff]
      %v1195 = vld [vmem:[%s6 + $0xc40] sm:$0xff]
      %v1196 = vld [vmem:[%s6 + $0xc48] sm:$0xff]
      %v1197 = vld [vmem:[%s6 + $0xc50] sm:$0xff]
      %v1198 = vld [vmem:[%s6 + $0xc58] sm:$0xff]
      %v1199 = vld [vmem:[%s6 + $0xc60] sm:$0xff]
      %v1200 = vld [vmem:[%s6 + $0xc68] sm:$0xff]
      %v1201 = vld [vmem:[%s6 + $0xc70] sm:$0xff]
      %v1202 = vld [vmem:[%s6 + $0xc78] sm:$0xff]
      %v1203 = vld [vmem:[%s6 + $0xc80] sm:$0xff]
      %v1204 = vld [vmem:[%s6 + $0xc88] sm:$0xff]
      %v1205 = vld [vmem:[%s6 + $0xc90] sm:$0xff]
      %v1206 = vld [vmem:[%s6 + $0xc98] sm:$0xff]
      %v1207 = vld [vmem:[%s6 + $0xca0] sm:$0xff]
      %v1208 = vld [vmem:[%s6 + $0xca8] sm:$0xff]
      %v1209 = vld [vmem:[%s6 + $0xcb0] sm:$0xff]
      %v1210 = vld [vmem:[%s6 + $0xcb8] sm:$0xff]
      %v1211 = vld [vmem:[%s6 + $0xcc0] sm:$0xff]
      %v1212 = vld [vmem:[%s6 + $0xcc8] sm:$0xff]
      %v1213 = vld [vmem:[%s6 + $0xcd0] sm:$0xff]
      %v1214 = vld [vmem:[%s6 + $0xcd8] sm:$0xff]
      %v1215 = vld [vmem:[%s6 + $0xce0] sm:$0xff]
      %v1216 = vld [vmem:[%s6 + $0xce8] sm:$0xff]
      %v1217 = vld [vmem:[%s6 + $0xcf0] sm:$0xff]
      %v1218 = vld [vmem:[%s6 + $0xcf8] sm:$0xff]
      %v1219 = vld [vmem:[%s6 + $0xd00] sm:$0xff]
      %v1220 = vld [vmem:[%s6 + $0xd08] sm:$0xff]
      %v1221 = vld [vmem:[%s6 + $0xd10] sm:$0xff]
      %v1222 = vld [vmem:[%s6 + $0xd18] sm:$0xff]
      %v1223 = vld [vmem:[%s6 + $0xd20] sm:$0xff]
      %v1224 = vld [vmem:[%s6 + $0xd28] sm:$0xff]
      %v1225 = vld [vmem:[%s6 + $0xd30] sm:$0xff]
      %v1226 = vld [vmem:[%s6 + $0xd38] sm:$0xff]
      %v1227 = vld [vmem:[%s6 + $0xd40] sm:$0xff]
      %v1228 = vld [vmem:[%s6 + $0xd48] sm:$0xff]
      %v1229 = vld [vmem:[%s6 + $0xd50] sm:$0xff]
      %v1230 = vld [vmem:[%s6 + $0xd58] sm:$0xff]
      %v1231 = vld [vmem:[%s6 + $0xd60] sm:$0xff]
      %v1232 = vld [vmem:[%s6 + $0xd68] sm:$0xff]
      %v1233 = vld [vmem:[%s6 + $0xd70] sm:$0xff]
      %v1234 = vld [vmem:[%s6 + $0xd78] sm:$0xff]
      %v1235 = vld [vmem:[%s6 + $0xd80] sm:$0xff]
      %v1236 = vld [vmem:[%s6 + $0xd88] sm:$0xff]
      %v1237 = vld [vmem:[%s6 + $0xd90] sm:$0xff]
      %v1238 = vld [vmem:[%s6 + $0xd98] sm:$0xff]
      %v1239 = vld [vmem:[%s6 + $0xda0] sm:$0xff]
      %v1240 = vld [vmem:[%s6 + $0xda8] sm:$0xff]
      %v1241 = vld [vmem:[%s6 + $0xdb0] sm:$0xff]
      %v1242 = vld [vmem:[%s6 + $0xdb8] sm:$0xff]
      %v1243 = vld [vmem:[%s6 + $0xdc0] sm:$0xff]
      %v1244 = vld [vmem:[%s6 + $0xdc8] sm:$0xff]
      %v1245 = vld [vmem:[%s6 + $0xdd0] sm:$0xff]
      %v1246 = vld [vmem:[%s6 + $0xdd8] sm:$0xff]
      %v1247 = vld [vmem:[%s6 + $0xde0] sm:$0xff]
      %v1248 = vld [vmem:[%s6 + $0xde8] sm:$0xff]
      %v1249 = vld [vmem:[%s6 + $0xdf0] sm:$0xff]
      %v1250 = vld [vmem:[%s6 + $0xdf8] sm:$0xff]
      %v1251 = vld [vmem:[%s6 + $0xe00] sm:$0xff]
      %v1252 = vld [vmem:[%s6 + $0xe08] sm:$0xff]
      %v1253 = vld [vmem:[%s6 + $0xe10] sm:$0xff]
      %v1254 = vld [vmem:[%s6 + $0xe18] sm:$0xff]
      %v1255 = vld [vmem:[%s6 + $0xe20] sm:$0xff]
      %v1256 = vld [vmem:[%s6 + $0xe28] sm:$0xff]
      %v1257 = vld [vmem:[%s6 + $0xe30] sm:$0xff]
      %v1258 = vld [vmem:[%s6 + $0xe38] sm:$0xff]
      %v1259 = vld [vmem:[%s6 + $0xe40] sm:$0xff]
      %v1260 = vld [vmem:[%s6 + $0xe48] sm:$0xff]
      %v1261 = vld [vmem:[%s6 + $0xe50] sm:$0xff]
      %v1262 = vld [vmem:[%s6 + $0xe58] sm:$0xff]
      %v1263 = vld [vmem:[%s6 + $0xe60] sm:$0xff]
      %v1264 = vld [vmem:[%s6 + $0xe68] sm:$0xff]
      %v1265 = vld [vmem:[%s6 + $0xe70] sm:$0xff]
      %v1266 = vld [vmem:[%s6 + $0xe78] sm:$0xff]
      %v1267 = vld [vmem:[%s6 + $0xe80] sm:$0xff]
      %v1268 = vld [vmem:[%s6 + $0xe88] sm:$0xff]
      %v1269 = vld [vmem:[%s6 + $0xe90] sm:$0xff]
      %v1270 = vld [vmem:[%s6 + $0xe98] sm:$0xff]
      %v1271 = vld [vmem:[%s6 + $0xea0] sm:$0xff]
      %v1272 = vld [vmem:[%s6 + $0xea8] sm:$0xff]
      %v1273 = vld [vmem:[%s6 + $0xeb0] sm:$0xff]
      %v1274 = vld [vmem:[%s6 + $0xeb8] sm:$0xff]
      %v1275 = vld [vmem:[%s6 + $0xec0] sm:$0xff]
      %v1276 = vld [vmem:[%s6 + $0xec8] sm:$0xff]
      %v1277 = vld [vmem:[%s6 + $0xed0] sm:$0xff]
      %v1278 = vld [vmem:[%s6 + $0xed8] sm:$0xff]
      %v1279 = vld [vmem:[%s6 + $0xee0] sm:$0xff]
      %v1280 = vld [vmem:[%s6 + $0xee8] sm:$0xff]
      %v1281 = vld [vmem:[%s6 + $0xef0] sm:$0xff]
      %v1282 = vld [vmem:[%s6 + $0xef8] sm:$0xff]
      %v1283 = vld [vmem:[%s6 + $0xf00] sm:$0xff]
      %v1284 = vld [vmem:[%s6 + $0xf08] sm:$0xff]
      %v1285 = vld [vmem:[%s6 + $0xf10] sm:$0xff]
      %v1286 = vld [vmem:[%s6 + $0xf18] sm:$0xff]
      %v1287 = vld [vmem:[%s6 + $0xf20] sm:$0xff]
      %v1288 = vld [vmem:[%s6 + $0xf28] sm:$0xff]
      %v1289 = vld [vmem:[%s6 + $0xf30] sm:$0xff]
      %v1290 = vld [vmem:[%s6 + $0xf38] sm:$0xff]
      %v1291 = vld [vmem:[%s6 + $0xf40] sm:$0xff]
      %v1292 = vld [vmem:[%s6 + $0xf48] sm:$0xff]
      %v1293 = vld [vmem:[%s6 + $0xf50] sm:$0xff]
      %v1294 = vld [vmem:[%s6 + $0xf58] sm:$0xff]
      %v1295 = vld [vmem:[%s6 + $0xf60] sm:$0xff]
      %v1296 = vld [vmem:[%s6 + $0xf68] sm:$0xff]
      %v1297 = vld [vmem:[%s6 + $0xf70] sm:$0xff]
      %v1298 = vld [vmem:[%s6 + $0xf78] sm:$0xff]
      %v1299 = vld [vmem:[%s6 + $0xf80] sm:$0xff]
      %v1300 = vld [vmem:[%s6 + $0xf88] sm:$0xff]
      %v1301 = vld [vmem:[%s6 + $0xf90] sm:$0xff]
      %v1302 = vld [vmem:[%s6 + $0xf98] sm:$0xff]
      %v1303 = vld [vmem:[%s6 + $0xfa0] sm:$0xff]
      %v1304 = vld [vmem:[%s6 + $0xfa8] sm:$0xff]
      %v1305 = vld [vmem:[%s6 + $0xfb0] sm:$0xff]
      %v1306 = vld [vmem:[%s6 + $0xfb8] sm:$0xff]
      %v1307 = vld [vmem:[%s6 + $0xfc0] sm:$0xff]
      %v1308 = vld [vmem:[%s6 + $0xfc8] sm:$0xff]
      %v1309 = vld [vmem:[%s6 + $0xfd0] sm:$0xff]
      %v1310 = vld [vmem:[%s6 + $0xfd8] sm:$0xff]
      %v1311 = vld [vmem:[%s6 + $0xfe0] sm:$0xff]
      %v1312 = vld [vmem:[%s6 + $0xfe8] sm:$0xff]
      %v1313 = vld [vmem:[%s6 + $0xff0] sm:$0xff]
      %v1314 = vld [vmem:[%s6 + $0xff8] sm:$0xff]
      %v1315 = vld [vmem:[%s6 + $0x1000] sm:$0xff]
      %v1316 = vld [vmem:[%s6 + $0x1008] sm:$0xff]
      %v1317 = vld [vmem:[%s6 + $0x1010] sm:$0xff]
      %v1318 = vld [vmem:[%s6 + $0x1018] sm:$0xff]
      %v1319 = vld [vmem:[%s6 + $0x1020] sm:$0xff]
      %v1320 = vld [vmem:[%s6 + $0x1028] sm:$0xff]
      %v1321 = vld [vmem:[%s6 + $0x1030] sm:$0xff]
      %v1322 = vld [vmem:[%s6 + $0x1038] sm:$0xff]
      %v1323 = vld [vmem:[%s6 + $0x1040] sm:$0xff]
      %v1324 = vld [vmem:[%s6 + $0x1048] sm:$0xff]
      %v1325 = vld [vmem:[%s6 + $0x1050] sm:$0xff]
      %v1326 = vld [vmem:[%s6 + $0x1058] sm:$0xff]
      %v1327 = vld [vmem:[%s6 + $0x1060] sm:$0xff]
      %v1328 = vld [vmem:[%s6 + $0x1068] sm:$0xff]
      %v1329 = vld [vmem:[%s6 + $0x1070] sm:$0xff]
      %v1330 = vld [vmem:[%s6 + $0x1078] sm:$0xff]
      %v1331 = vld [vmem:[%s6 + $0x1080] sm:$0xff]
      %v1332 = vld [vmem:[%s6 + $0x1088] sm:$0xff]
      %v1333 = vld [vmem:[%s6 + $0x1090] sm:$0xff]
      %v1334 = vld [vmem:[%s6 + $0x1098] sm:$0xff]
      %v1335 = vld [vmem:[%s6 + $0x10a0] sm:$0xff]
      %v1336 = vld [vmem:[%s6 + $0x10a8] sm:$0xff]
      %v1337 = vld [vmem:[%s6 + $0x10b0] sm:$0xff]
      %v1338 = vld [vmem:[%s6 + $0x10b8] sm:$0xff]
      %v1339 = vld [vmem:[%s6 + $0x10c0] sm:$0xff]
      %v1340 = vld [vmem:[%s6 + $0x10c8] sm:$0xff]
      %v1341 = vld [vmem:[%s6 + $0x10d0] sm:$0xff]
      %v1342 = vld [vmem:[%s6 + $0x10d8] sm:$0xff]
      %v1343 = vld [vmem:[%s6 + $0x10e0] sm:$0xff]
      %v1344 = vld [vmem:[%s6 + $0x10e8] sm:$0xff]
      %v1345 = vld [vmem:[%s6 + $0x10f0] sm:$0xff]
      %v1346 = vld [vmem:[%s6 + $0x10f8] sm:$0xff]
      %v1347 = vld [vmem:[%s6 + $0x1100] sm:$0xff]
      %v1348 = vld [vmem:[%s6 + $0x1108] sm:$0xff]
      %v1352 = vcombine.high %v800, %v800
      %v1353 = vcombine.high %v801, %v801
      %vm1356 = vcmask 916480
      %v1357 = vsel %vm1356, %v802, 0
      %1359 = vmatprep.subr.mxu0 %v909
      %1360 = vmatpush1.msra.mxu0 %v908
      %1361 = vmatprep.subr.mxu0 %v902
      %1362 = vmatpush1.msra.mxu0 %v901
      %1363 = vmatprep.subr.mxu0 %v895
      %1364 = vmatpush1.msra.mxu0 %v894
      %1365 = vmatprep.subr.mxu0 %v888
      %1366 = vmatpush1.msra.mxu0 %v887
      %1367 = vmatprep.subr.mxu0 %v881
      %1368 = vmatpush1.msra.mxu0 %v880
      %1369 = vmatprep.subr.mxu0 %v874
      %1370 = vmatpush1.msra.mxu0 %v873
      %1371 = vmatprep.subr.mxu0 %v867
      %1372 = vmatpush1.msra.mxu0 %v866
      %1373 = vmatprep.subr.mxu0 %v860
      %1374 = vmatpush1.msra.mxu0 %v859
      %1375 = vmatprep.subr.mxu0 %v853
      %1376 = vmatpush1.msra.mxu0 %v852
      %1377 = vmatprep.subr.mxu0 %v846
      %1378 = vmatpush1.msra.mxu0 %v845
      %1379 = vmatprep.subr.mxu0 %v839
      %1380 = vmatpush1.msra.mxu0 %v838
      %1381 = vmatprep.subr.mxu0 %v832
      %1382 = vmatpush1.msra.mxu0 %v831
      %1383 = vmatprep.subr.mxu0 %v825
      %1384 = vmatpush1.msra.mxu0 %v824
      %1385 = vmatprep.subr.mxu0 %v818
      %1386 = vmatpush1.msra.mxu0 %v817
      %1387 = vmatprep.subr.mxu0 %v811
      %1388 = vmatpush1.msra.mxu0 %v810
      %1389 = vmatprep.subr.mxu0 %v804
      %1390 = vmatpush1.msra.mxu0 %v803
      %1391 = vmatprep.subr.mxu0 %v1021
      %1392 = vmatpush2.msra.mxu0 %v1020
      %1393 = vmatprep.subr.mxu0 %v1014
      %1394 = vmatpush2.msra.mxu0 %v1013
      %1395 = vmatprep.subr.mxu0 %v1007
      %1396 = vmatpush2.msra.mxu0 %v1006
      %1397 = vmatprep.subr.mxu0 %v1000
      %1398 = vmatpush2.msra.mxu0 %v999
      %1399 = vmatprep.subr.mxu0 %v993
      %1400 = vmatpush2.msra.mxu0 %v992
      %1401 = vmatprep.subr.mxu0 %v986
      %1402 = vmatpush2.msra.mxu0 %v985
      %1403 = vmatprep.subr.mxu0 %v979
      %1404 = vmatpush2.msra.mxu0 %v978
      %1405 = vmatprep.subr.mxu0 %v972
      %1406 = vmatpush2.msra.mxu0 %v971
      %1407 = vmatprep.subr.mxu0 %v965
      %1408 = vmatpush2.msra.mxu0 %v964
      %1409 = vmatprep.subr.mxu0 %v958
      %1410 = vmatpush2.msra.mxu0 %v957
      %1411 = vmatprep.subr.mxu0 %v951
      %1412 = vmatpush2.msra.mxu0 %v950
      %1413 = vmatprep.subr.mxu0 %v944
      %1414 = vmatpush2.msra.mxu0 %v943
      %1415 = vmatprep.subr.mxu0 %v937
      %1416 = vmatpush2.msra.mxu0 %v936
      %1417 = vmatprep.subr.mxu0 %v930
      %1418 = vmatpush2.msra.mxu0 %v929
      %1419 = vmatprep.subr.mxu0 %v923
      %1420 = vmatpush2.msra.mxu0 %v922
      %1421 = vmatprep.subr.mxu0 %v916
      %1422 = vmatpush2.msra.mxu0 %v915
      %1423 = vmatprep.mubr.f32.mxu0 %v1352
      %1424 = vmatmul.mubr.f32.gmra.mxu0 %v800
      %v1425 = vpop.f32.mrf.mxu0
      %v1426 = vadd.f32 0.0, %v1425
      %v1427 = vpop.f32.mrf.mxu0
      %v1428 = vadd.f32 0.0, %v1427
      %1429 = vdwg.mxu0
      %1430 = vmatprep.subr.mxu0 %v1133
      %1431 = vmatpush1.msra.mxu0 %v1132
      %1432 = vmatprep.subr.mxu0 %v1126
      %1433 = vmatpush1.msra.mxu0 %v1125
      %1434 = vmatprep.subr.mxu0 %v1119
      %1435 = vmatpush1.msra.mxu0 %v1118
      %1436 = vmatprep.subr.mxu0 %v1112
      %1437 = vmatpush1.msra.mxu0 %v1111
      %1438 = vmatprep.subr.mxu0 %v1105
      %1439 = vmatpush1.msra.mxu0 %v1104
      %1440 = vmatprep.subr.mxu0 %v1098
      %1441 = vmatpush1.msra.mxu0 %v1097
      %1442 = vmatprep.subr.mxu0 %v1091
      %1443 = vmatpush1.msra.mxu0 %v1090
      %1444 = vmatprep.subr.mxu0 %v1084
      %1445 = vmatpush1.msra.mxu0 %v1083
      %1446 = vmatprep.subr.mxu0 %v1077
      %1447 = vmatpush1.msra.mxu0 %v1076
      %1448 = vmatprep.subr.mxu0 %v1070
      %1449 = vmatpush1.msra.mxu0 %v1069
      %1450 = vmatprep.subr.mxu0 %v1063
      %1451 = vmatpush1.msra.mxu0 %v1062
      %1452 = vmatprep.subr.mxu0 %v1056
      %1453 = vmatpush1.msra.mxu0 %v1055
      %1454 = vmatprep.subr.mxu0 %v1049
      %1455 = vmatpush1.msra.mxu0 %v1048
      %1456 = vmatprep.subr.mxu0 %v1042
      %1457 = vmatpush1.msra.mxu0 %v1041
      %1458 = vmatprep.subr.mxu0 %v1035
      %1459 = vmatpush1.msra.mxu0 %v1034
      %1460 = vmatprep.subr.mxu0 %v1028
      %1461 = vmatpush1.msra.mxu0 %v1027
      %1462 = vmatprep.subr.mxu0 %v1245
      %1463 = vmatpush2.msra.mxu0 %v1244
      %1464 = vmatprep.subr.mxu0 %v1238
      %1465 = vmatpush2.msra.mxu0 %v1237
      %1466 = vmatprep.subr.mxu0 %v1231
      %1467 = vmatpush2.msra.mxu0 %v1230
      %1468 = vmatprep.subr.mxu0 %v1224
      %1469 = vmatpush2.msra.mxu0 %v1223
      %1470 = vmatprep.subr.mxu0 %v1217
      %1471 = vmatpush2.msra.mxu0 %v1216
      %1472 = vmatprep.subr.mxu0 %v1210
      %1473 = vmatpush2.msra.mxu0 %v1209
      %1474 = vmatprep.subr.mxu0 %v1203
      %1475 = vmatpush2.msra.mxu0 %v1202
      %1476 = vmatprep.subr.mxu0 %v1196
      %1477 = vmatpush2.msra.mxu0 %v1195
      %1478 = vmatprep.subr.mxu0 %v1189
      %1479 = vmatpush2.msra.mxu0 %v1188
      %1480 = vmatprep.subr.mxu0 %v1182
      %1481 = vmatpush2.msra.mxu0 %v1181
      %1482 = vmatprep.subr.mxu0 %v1175
      %1483 = vmatpush2.msra.mxu0 %v1174
      %1484 = vmatprep.subr.mxu0 %v1168
      %1485 = vmatpush2.msra.mxu0 %v1167
      %1486 = vmatprep.subr.mxu0 %v1161
      %1487 = vmatpush2.msra.mxu0 %v1160
      %1488 = vmatprep.subr.mxu0 %v1154
      %1489 = vmatpush2.msra.mxu0 %v1153
      %1490 = vmatprep.subr.mxu0 %v1147
      %1491 = vmatpush2.msra.mxu0 %v1146
      %1492 = vmatprep.subr.mxu0 %v1140
      %1493 = vmatpush2.msra.mxu0 %v1139
      %1494 = vmatprep.mubr.f32.mxu0 %v1353
      %1495 = vmatmul.mubr.f32.gmra.mxu0 %v801
      %v1496 = vpop.f32.mrf.mxu0
      %v1497 = vadd.f32 %v1426, %v1496
      %v1498 = vpop.f32.mrf.mxu0
      %v1499 = vadd.f32 %v1428, %v1498
      %1500 = vdwg.mxu0
      %1501 = vmatprep.subr.mxu0 0.0
      %1502 = vmatpush1.msra.mxu0 0.0
      %1503 = vmatprep.subr.mxu0 0.0
      %1504 = vmatpush1.msra.mxu0 0.0
      %1505 = vmatprep.subr.mxu0 %v1343
      %1506 = vmatpush1.msra.mxu0 %v1342
      %1507 = vmatprep.subr.mxu0 %v1336
      %1508 = vmatpush1.msra.mxu0 %v1335
      %1509 = vmatprep.subr.mxu0 %v1329
      %1510 = vmatpush1.msra.mxu0 %v1328
      %1511 = vmatprep.subr.mxu0 %v1322
      %1512 = vmatpush1.msra.mxu0 %v1321
      %1513 = vmatprep.subr.mxu0 %v1315
      %1514 = vmatpush1.msra.mxu0 %v1314
      %1515 = vmatprep.subr.mxu0 %v1308
      %1516 = vmatpush1.msra.mxu0 %v1307
      %1517 = vmatprep.subr.mxu0 %v1301
      %1518 = vmatpush1.msra.mxu0 %v1300
      %1519 = vmatprep.subr.mxu0 %v1294
      %1520 = vmatpush1.msra.mxu0 %v1293
      %1521 = vmatprep.subr.mxu0 %v1287
      %1522 = vmatpush1.msra.mxu0 %v1286
      %1523 = vmatprep.subr.mxu0 %v1280
      %1524 = vmatpush1.msra.mxu0 %v1279
      %1525 = vmatprep.subr.mxu0 %v1273
      %1526 = vmatpush1.msra.mxu0 %v1272
      %1527 = vmatprep.subr.mxu0 %v1266
      %1528 = vmatpush1.msra.mxu0 %v1265
      %1529 = vmatprep.subr.mxu0 %v1259
      %1530 = vmatpush1.msra.mxu0 %v1258
      %1531 = vmatprep.subr.mxu0 %v1252
      %1532 = vmatpush1.msra.mxu0 %v1251
      %1533 = vmatprep.subr.mxu0 0.0
      %1534 = vmatpush2.msra.mxu0 0.0
      %1535 = vmatprep.subr.mxu0 0.0
      %1536 = vmatpush2.msra.mxu0 0.0
      %1537 = vmatprep.subr.mxu0 0.0
      %1538 = vmatpush2.msra.mxu0 0.0
      %1539 = vmatprep.subr.mxu0 0.0
      %1540 = vmatpush2.msra.mxu0 0.0
      %1541 = vmatprep.subr.mxu0 0.0
      %1542 = vmatpush2.msra.mxu0 0.0
      %1543 = vmatprep.subr.mxu0 0.0
      %1544 = vmatpush2.msra.mxu0 0.0
      %1545 = vmatprep.subr.mxu0 0.0
      %1546 = vmatpush2.msra.mxu0 0.0
      %1547 = vmatprep.subr.mxu0 0.0
      %1548 = vmatpush2.msra.mxu0 0.0
      %1549 = vmatprep.subr.mxu0 0.0
      %1550 = vmatpush2.msra.mxu0 0.0
      %1551 = vmatprep.subr.mxu0 0.0
      %1552 = vmatpush2.msra.mxu0 0.0
      %1553 = vmatprep.subr.mxu0 0.0
      %1554 = vmatpush2.msra.mxu0 0.0
      %1555 = vmatprep.subr.mxu0 0.0
      %1556 = vmatpush2.msra.mxu0 0.0
      %1557 = vmatprep.subr.mxu0 0.0
      %1558 = vmatpush2.msra.mxu0 0.0
      %1559 = vmatprep.subr.mxu0 0.0
      %1560 = vmatpush2.msra.mxu0 0.0
      %1561 = vmatprep.subr.mxu0 0.0
      %1562 = vmatpush2.msra.mxu0 0.0
      %1563 = vmatprep.subr.mxu0 0.0
      %1564 = vmatpush2.msra.mxu0 0.0
      %1565 = vmatprep.mubr.f32.mxu0 0.0
      %1566 = vmatmul.mubr.f32.gmra.mxu0 %v1357
      %v1567 = vpop.f32.mrf.mxu0
      %v1568 = vadd.f32 %v1497, %v1567
      %v1569 = vpop.f32.mrf.mxu0
      %v1570 = vadd.f32 %v1499, %v1569
      %1571 = vdwg.mxu0
      %1572 = vmatprep.subr.mxu0 %v911
      %1573 = vmatpush1.msra.mxu0 %v910
      %1574 = vmatprep.subr.mxu0 %v904
      %1575 = vmatpush1.msra.mxu0 %v903
      %1576 = vmatprep.subr.mxu0 %v897
      %1577 = vmatpush1.msra.mxu0 %v896
      %1578 = vmatprep.subr.mxu0 %v890
      %1579 = vmatpush1.msra.mxu0 %v889
      %1580 = vmatprep.subr.mxu0 %v883
      %1581 = vmatpush1.msra.mxu0 %v882
      %1582 = vmatprep.subr.mxu0 %v876
      %1583 = vmatpush1.msra.mxu0 %v875
      %1584 = vmatprep.subr.mxu0 %v869
      %1585 = vmatpush1.msra.mxu0 %v868
      %1586 = vmatprep.subr.mxu0 %v862
      %1587 = vmatpush1.msra.mxu0 %v861
      %1588 = vmatprep.subr.mxu0 %v855
      %1589 = vmatpush1.msra.mxu0 %v854
      %1590 = vmatprep.subr.mxu0 %v848
      %1591 = vmatpush1.msra.mxu0 %v847
      %1592 = vmatprep.subr.mxu0 %v841
      %1593 = vmatpush1.msra.mxu0 %v840
      %1594 = vmatprep.subr.mxu0 %v834
      %1595 = vmatpush1.msra.mxu0 %v833
      %1596 = vmatprep.subr.mxu0 %v827
      %1597 = vmatpush1.msra.mxu0 %v826
      %1598 = vmatprep.subr.mxu0 %v820
      %1599 = vmatpush1.msra.mxu0 %v819
      %1600 = vmatprep.subr.mxu0 %v813
      %1601 = vmatpush1.msra.mxu0 %v812
      %1602 = vmatprep.subr.mxu0 %v806
      %1603 = vmatpush1.msra.mxu0 %v805
      %1604 = vmatprep.subr.mxu0 %v1023
      %1605 = vmatpush2.msra.mxu0 %v1022
      %1606 = vmatprep.subr.mxu0 %v1016
      %1607 = vmatpush2.msra.mxu0 %v1015
      %1608 = vmatprep.subr.mxu0 %v1009
      %1609 = vmatpush2.msra.mxu0 %v1008
      %1610 = vmatprep.subr.mxu0 %v1002
      %1611 = vmatpush2.msra.mxu0 %v1001
      %1612 = vmatprep.subr.mxu0 %v995
      %1613 = vmatpush2.msra.mxu0 %v994
      %1614 = vmatprep.subr.mxu0 %v988
      %1615 = vmatpush2.msra.mxu0 %v987
      %1616 = vmatprep.subr.mxu0 %v981
      %1617 = vmatpush2.msra.mxu0 %v980
      %1618 = vmatprep.subr.mxu0 %v974
      %1619 = vmatpush2.msra.mxu0 %v973
      %1620 = vmatprep.subr.mxu0 %v967
      %1621 = vmatpush2.msra.mxu0 %v966
      %1622 = vmatprep.subr.mxu0 %v960
      %1623 = vmatpush2.msra.mxu0 %v959
      %1624 = vmatprep.subr.mxu0 %v953
      %1625 = vmatpush2.msra.mxu0 %v952
      %1626 = vmatprep.subr.mxu0 %v946
      %1627 = vmatpush2.msra.mxu0 %v945
      %1628 = vmatprep.subr.mxu0 %v939
      %1629 = vmatpush2.msra.mxu0 %v938
      %1630 = vmatprep.subr.mxu0 %v932
      %1631 = vmatpush2.msra.mxu0 %v931
      %1632 = vmatprep.subr.mxu0 %v925
      %1633 = vmatpush2.msra.mxu0 %v924
      %1634 = vmatprep.subr.mxu0 %v918
      %1635 = vmatpush2.msra.mxu0 %v917
      %1636 = vmatprep.mubr.f32.mxu0 %v1352
      %1637 = vmatmul.mubr.f32.gmra.mxu0 %v800
      %v1638 = vpop.f32.mrf.mxu0
      %v1639 = vadd.f32 0.0, %v1638
      %v1640 = vpop.f32.mrf.mxu0
      %v1641 = vadd.f32 0.0, %v1640
      %1642 = vdwg.mxu0
      %1643 = vmatprep.subr.mxu0 %v1135
      %1644 = vmatpush1.msra.mxu0 %v1134
      %1645 = vmatprep.subr.mxu0 %v1128
      %1646 = vmatpush1.msra.mxu0 %v1127
      %1647 = vmatprep.subr.mxu0 %v1121
      %1648 = vmatpush1.msra.mxu0 %v1120
      %1649 = vmatprep.subr.mxu0 %v1114
      %1650 = vmatpush1.msra.mxu0 %v1113
      %1651 = vmatprep.subr.mxu0 %v1107
      %1652 = vmatpush1.msra.mxu0 %v1106
      %1653 = vmatprep.subr.mxu0 %v1100
      %1654 = vmatpush1.msra.mxu0 %v1099
      %1655 = vmatprep.subr.mxu0 %v1093
      %1656 = vmatpush1.msra.mxu0 %v1092
      %1657 = vmatprep.subr.mxu0 %v1086
      %1658 = vmatpush1.msra.mxu0 %v1085
      %1659 = vmatprep.subr.mxu0 %v1079
      %1660 = vmatpush1.msra.mxu0 %v1078
      %1661 = vmatprep.subr.mxu0 %v1072
      %1662 = vmatpush1.msra.mxu0 %v1071
      %1663 = vmatprep.subr.mxu0 %v1065
      %1664 = vmatpush1.msra.mxu0 %v1064
      %1665 = vmatprep.subr.mxu0 %v1058
      %1666 = vmatpush1.msra.mxu0 %v1057
      %1667 = vmatprep.subr.mxu0 %v1051
      %1668 = vmatpush1.msra.mxu0 %v1050
      %1669 = vmatprep.subr.mxu0 %v1044
      %1670 = vmatpush1.msra.mxu0 %v1043
      %1671 = vmatprep.subr.mxu0 %v1037
      %1672 = vmatpush1.msra.mxu0 %v1036
      %1673 = vmatprep.subr.mxu0 %v1030
      %1674 = vmatpush1.msra.mxu0 %v1029
      %1675 = vmatprep.subr.mxu0 %v1247
      %1676 = vmatpush2.msra.mxu0 %v1246
      %1677 = vmatprep.subr.mxu0 %v1240
      %1678 = vmatpush2.msra.mxu0 %v1239
      %1679 = vmatprep.subr.mxu0 %v1233
      %1680 = vmatpush2.msra.mxu0 %v1232
      %1681 = vmatprep.subr.mxu0 %v1226
      %1682 = vmatpush2.msra.mxu0 %v1225
      %1683 = vmatprep.subr.mxu0 %v1219
      %1684 = vmatpush2.msra.mxu0 %v1218
      %1685 = vmatprep.subr.mxu0 %v1212
      %1686 = vmatpush2.msra.mxu0 %v1211
      %1687 = vmatprep.subr.mxu0 %v1205
      %1688 = vmatpush2.msra.mxu0 %v1204
      %1689 = vmatprep.subr.mxu0 %v1198
      %1690 = vmatpush2.msra.mxu0 %v1197
      %1691 = vmatprep.subr.mxu0 %v1191
      %1692 = vmatpush2.msra.mxu0 %v1190
      %1693 = vmatprep.subr.mxu0 %v1184
      %1694 = vmatpush2.msra.mxu0 %v1183
      %1695 = vmatprep.subr.mxu0 %v1177
      %1696 = vmatpush2.msra.mxu0 %v1176
      %1697 = vmatprep.subr.mxu0 %v1170
      %1698 = vmatpush2.msra.mxu0 %v1169
      %1699 = vmatprep.subr.mxu0 %v1163
      %1700 = vmatpush2.msra.mxu0 %v1162
      %1701 = vmatprep.subr.mxu0 %v1156
      %1702 = vmatpush2.msra.mxu0 %v1155
      %1703 = vmatprep.subr.mxu0 %v1149
      %1704 = vmatpush2.msra.mxu0 %v1148
      %1705 = vmatprep.subr.mxu0 %v1142
      %1706 = vmatpush2.msra.mxu0 %v1141
      %1707 = vmatprep.mubr.f32.mxu0 %v1353
      %1708 = vmatmul.mubr.f32.gmra.mxu0 %v801
      %v1709 = vpop.f32.mrf.mxu0
      %v1710 = vadd.f32 %v1639, %v1709
      %v1711 = vpop.f32.mrf.mxu0
      %v1712 = vadd.f32 %v1641, %v1711
      %1713 = vdwg.mxu0
      %1714 = vmatprep.subr.mxu0 0.0
      %1715 = vmatpush1.msra.mxu0 0.0
      %1716 = vmatprep.subr.mxu0 0.0
      %1717 = vmatpush1.msra.mxu0 0.0
      %1718 = vmatprep.subr.mxu0 %v1345
      %1719 = vmatpush1.msra.mxu0 %v1344
      %1720 = vmatprep.subr.mxu0 %v1338
      %1721 = vmatpush1.msra.mxu0 %v1337
      %1722 = vmatprep.subr.mxu0 %v1331
      %1723 = vmatpush1.msra.mxu0 %v1330
      %1724 = vmatprep.subr.mxu0 %v1324
      %1725 = vmatpush1.msra.mxu0 %v1323
      %1726 = vmatprep.subr.mxu0 %v1317
      %1727 = vmatpush1.msra.mxu0 %v1316
      %1728 = vmatprep.subr.mxu0 %v1310
      %1729 = vmatpush1.msra.mxu0 %v1309
      %1730 = vmatprep.subr.mxu0 %v1303
      %1731 = vmatpush1.msra.mxu0 %v1302
      %1732 = vmatprep.subr.mxu0 %v1296
      %1733 = vmatpush1.msra.mxu0 %v1295
      %1734 = vmatprep.subr.mxu0 %v1289
      %1735 = vmatpush1.msra.mxu0 %v1288
      %1736 = vmatprep.subr.mxu0 %v1282
      %1737 = vmatpush1.msra.mxu0 %v1281
      %1738 = vmatprep.subr.mxu0 %v1275
      %1739 = vmatpush1.msra.mxu0 %v1274
      %1740 = vmatprep.subr.mxu0 %v1268
      %1741 = vmatpush1.msra.mxu0 %v1267
      %1742 = vmatprep.subr.mxu0 %v1261
      %1743 = vmatpush1.msra.mxu0 %v1260
      %1744 = vmatprep.subr.mxu0 %v1254
      %1745 = vmatpush1.msra.mxu0 %v1253
      %1746 = vmatprep.subr.mxu0 0.0
      %1747 = vmatpush2.msra.mxu0 0.0
      %1748 = vmatprep.subr.mxu0 0.0
      %1749 = vmatpush2.msra.mxu0 0.0
      %1750 = vmatprep.subr.mxu0 0.0
      %1751 = vmatpush2.msra.mxu0 0.0
      %1752 = vmatprep.subr.mxu0 0.0
      %1753 = vmatpush2.msra.mxu0 0.0
      %1754 = vmatprep.subr.mxu0 0.0
      %1755 = vmatpush2.msra.mxu0 0.0
      %1756 = vmatprep.subr.mxu0 0.0
      %1757 = vmatpush2.msra.mxu0 0.0
      %1758 = vmatprep.subr.mxu0 0.0
      %1759 = vmatpush2.msra.mxu0 0.0
      %1760 = vmatprep.subr.mxu0 0.0
      %1761 = vmatpush2.msra.mxu0 0.0
      %1762 = vmatprep.subr.mxu0 0.0
      %1763 = vmatpush2.msra.mxu0 0.0
      %1764 = vmatprep.subr.mxu0 0.0
      %1765 = vmatpush2.msra.mxu0 0.0
      %1766 = vmatprep.subr.mxu0 0.0
      %1767 = vmatpush2.msra.mxu0 0.0
      %1768 = vmatprep.subr.mxu0 0.0
      %1769 = vmatpush2.msra.mxu0 0.0
      %1770 = vmatprep.subr.mxu0 0.0
      %1771 = vmatpush2.msra.mxu0 0.0
      %1772 = vmatprep.subr.mxu0 0.0
      %1773 = vmatpush2.msra.mxu0 0.0
      %1774 = vmatprep.subr.mxu0 0.0
      %1775 = vmatpush2.msra.mxu0 0.0
      %1776 = vmatprep.subr.mxu0 0.0
      %1777 = vmatpush2.msra.mxu0 0.0
      %1778 = vmatprep.mubr.f32.mxu0 0.0
      %1779 = vmatmul.mubr.f32.gmra.mxu0 %v1357
      %v1780 = vpop.f32.mrf.mxu0
      %v1781 = vadd.f32 %v1710, %v1780
      %v1782 = vpop.f32.mrf.mxu0
      %v1783 = vadd.f32 %v1712, %v1782
      %1784 = vdwg.mxu0
      %1785 = vmatprep.subr.mxu0 %v913
      %1786 = vmatpush1.msra.mxu0 %v912
      %1787 = vmatprep.subr.mxu0 %v906
      %1788 = vmatpush1.msra.mxu0 %v905
      %1789 = vmatprep.subr.mxu0 %v899
      %1790 = vmatpush1.msra.mxu0 %v898
      %1791 = vmatprep.subr.mxu0 %v892
      %1792 = vmatpush1.msra.mxu0 %v891
      %1793 = vmatprep.subr.mxu0 %v885
      %1794 = vmatpush1.msra.mxu0 %v884
      %1795 = vmatprep.subr.mxu0 %v878
      %1796 = vmatpush1.msra.mxu0 %v877
      %1797 = vmatprep.subr.mxu0 %v871
      %1798 = vmatpush1.msra.mxu0 %v870
      %1799 = vmatprep.subr.mxu0 %v864
      %1800 = vmatpush1.msra.mxu0 %v863
      %1801 = vmatprep.subr.mxu0 %v857
      %1802 = vmatpush1.msra.mxu0 %v856
      %1803 = vmatprep.subr.mxu0 %v850
      %1804 = vmatpush1.msra.mxu0 %v849
      %1805 = vmatprep.subr.mxu0 %v843
      %1806 = vmatpush1.msra.mxu0 %v842
      %1807 = vmatprep.subr.mxu0 %v836
      %1808 = vmatpush1.msra.mxu0 %v835
      %1809 = vmatprep.subr.mxu0 %v829
      %1810 = vmatpush1.msra.mxu0 %v828
      %1811 = vmatprep.subr.mxu0 %v822
      %1812 = vmatpush1.msra.mxu0 %v821
      %1813 = vmatprep.subr.mxu0 %v815
      %1814 = vmatpush1.msra.mxu0 %v814
      %1815 = vmatprep.subr.mxu0 %v808
      %1816 = vmatpush1.msra.mxu0 %v807
      %1817 = vmatprep.subr.mxu0 %v1025
      %1818 = vmatpush2.msra.mxu0 %v1024
      %1819 = vmatprep.subr.mxu0 %v1018
      %1820 = vmatpush2.msra.mxu0 %v1017
      %1821 = vmatprep.subr.mxu0 %v1011
      %1822 = vmatpush2.msra.mxu0 %v1010
      %1823 = vmatprep.subr.mxu0 %v1004
      %1824 = vmatpush2.msra.mxu0 %v1003
      %1825 = vmatprep.subr.mxu0 %v997
      %1826 = vmatpush2.msra.mxu0 %v996
      %1827 = vmatprep.subr.mxu0 %v990
      %1828 = vmatpush2.msra.mxu0 %v989
      %1829 = vmatprep.subr.mxu0 %v983
      %1830 = vmatpush2.msra.mxu0 %v982
      %1831 = vmatprep.subr.mxu0 %v976
      %1832 = vmatpush2.msra.mxu0 %v975
      %1833 = vmatprep.subr.mxu0 %v969
      %1834 = vmatpush2.msra.mxu0 %v968
      %1835 = vmatprep.subr.mxu0 %v962
      %1836 = vmatpush2.msra.mxu0 %v961
      %1837 = vmatprep.subr.mxu0 %v955
      %1838 = vmatpush2.msra.mxu0 %v954
      %1839 = vmatprep.subr.mxu0 %v948
      %1840 = vmatpush2.msra.mxu0 %v947
      %1841 = vmatprep.subr.mxu0 %v941
      %1842 = vmatpush2.msra.mxu0 %v940
      %1843 = vmatprep.subr.mxu0 %v934
      %1844 = vmatpush2.msra.mxu0 %v933
      %1845 = vmatprep.subr.mxu0 %v927
      %1846 = vmatpush2.msra.mxu0 %v926
      %1847 = vmatprep.subr.mxu0 %v920
      %1848 = vmatpush2.msra.mxu0 %v919
      %1849 = vmatprep.mubr.f32.mxu0 %v1352
      %1850 = vmatmul.mubr.f32.gmra.mxu0 %v800
      %v1851 = vpop.f32.mrf.mxu0
      %v1852 = vadd.f32 0.0, %v1851
      %v1853 = vpop.f32.mrf.mxu0
      %v1854 = vadd.f32 0.0, %v1853
      %1855 = vdwg.mxu0
      %1856 = vmatprep.subr.mxu0 %v1137
      %1857 = vmatpush1.msra.mxu0 %v1136
      %1858 = vmatprep.subr.mxu0 %v1130
      %1859 = vmatpush1.msra.mxu0 %v1129
      %1860 = vmatprep.subr.mxu0 %v1123
      %1861 = vmatpush1.msra.mxu0 %v1122
      %1862 = vmatprep.subr.mxu0 %v1116
      %1863 = vmatpush1.msra.mxu0 %v1115
      %1864 = vmatprep.subr.mxu0 %v1109
      %1865 = vmatpush1.msra.mxu0 %v1108
      %1866 = vmatprep.subr.mxu0 %v1102
      %1867 = vmatpush1.msra.mxu0 %v1101
      %1868 = vmatprep.subr.mxu0 %v1095
      %1869 = vmatpush1.msra.mxu0 %v1094
      %1870 = vmatprep.subr.mxu0 %v1088
      %1871 = vmatpush1.msra.mxu0 %v1087
      %1872 = vmatprep.subr.mxu0 %v1081
      %1873 = vmatpush1.msra.mxu0 %v1080
      %1874 = vmatprep.subr.mxu0 %v1074
      %1875 = vmatpush1.msra.mxu0 %v1073
      %1876 = vmatprep.subr.mxu0 %v1067
      %1877 = vmatpush1.msra.mxu0 %v1066
      %1878 = vmatprep.subr.mxu0 %v1060
      %1879 = vmatpush1.msra.mxu0 %v1059
      %1880 = vmatprep.subr.mxu0 %v1053
      %1881 = vmatpush1.msra.mxu0 %v1052
      %1882 = vmatprep.subr.mxu0 %v1046
      %1883 = vmatpush1.msra.mxu0 %v1045
      %1884 = vmatprep.subr.mxu0 %v1039
      %1885 = vmatpush1.msra.mxu0 %v1038
      %1886 = vmatprep.subr.mxu0 %v1032
      %1887 = vmatpush1.msra.mxu0 %v1031
      %1888 = vmatprep.subr.mxu0 %v1249
      %1889 = vmatpush2.msra.mxu0 %v1248
      %1890 = vmatprep.subr.mxu0 %v1242
      %1891 = vmatpush2.msra.mxu0 %v1241
      %1892 = vmatprep.subr.mxu0 %v1235
      %1893 = vmatpush2.msra.mxu0 %v1234
      %1894 = vmatprep.subr.mxu0 %v1228
      %1895 = vmatpush2.msra.mxu0 %v1227
      %1896 = vmatprep.subr.mxu0 %v1221
      %1897 = vmatpush2.msra.mxu0 %v1220
      %1898 = vmatprep.subr.mxu0 %v1214
      %1899 = vmatpush2.msra.mxu0 %v1213
      %1900 = vmatprep.subr.mxu0 %v1207
      %1901 = vmatpush2.msra.mxu0 %v1206
      %1902 = vmatprep.subr.mxu0 %v1200
      %1903 = vmatpush2.msra.mxu0 %v1199
      %1904 = vmatprep.subr.mxu0 %v1193
      %1905 = vmatpush2.msra.mxu0 %v1192
      %1906 = vmatprep.subr.mxu0 %v1186
      %1907 = vmatpush2.msra.mxu0 %v1185
      %1908 = vmatprep.subr.mxu0 %v1179
      %1909 = vmatpush2.msra.mxu0 %v1178
      %1910 = vmatprep.subr.mxu0 %v1172
      %1911 = vmatpush2.msra.mxu0 %v1171
      %1912 = vmatprep.subr.mxu0 %v1165
      %1913 = vmatpush2.msra.mxu0 %v1164
      %1914 = vmatprep.subr.mxu0 %v1158
      %1915 = vmatpush2.msra.mxu0 %v1157
      %1916 = vmatprep.subr.mxu0 %v1151
      %1917 = vmatpush2.msra.mxu0 %v1150
      %1918 = vmatprep.subr.mxu0 %v1144
      %1919 = vmatpush2.msra.mxu0 %v1143
      %1920 = vmatprep.mubr.f32.mxu0 %v1353
      %1921 = vmatmul.mubr.f32.gmra.mxu0 %v801
      %v1922 = vpop.f32.mrf.mxu0
      %v1923 = vadd.f32 %v1852, %v1922
      %v1924 = vpop.f32.mrf.mxu0
      %v1925 = vadd.f32 %v1854, %v1924
      %1926 = vdwg.mxu0
      %1927 = vmatprep.subr.mxu0 0.0
      %1928 = vmatpush1.msra.mxu0 0.0
      %1929 = vmatprep.subr.mxu0 0.0
      %1930 = vmatpush1.msra.mxu0 0.0
      %1931 = vmatprep.subr.mxu0 %v1347
      %1932 = vmatpush1.msra.mxu0 %v1346
      %1933 = vmatprep.subr.mxu0 %v1340
      %1934 = vmatpush1.msra.mxu0 %v1339
      %1935 = vmatprep.subr.mxu0 %v1333
      %1936 = vmatpush1.msra.mxu0 %v1332
      %1937 = vmatprep.subr.mxu0 %v1326
      %1938 = vmatpush1.msra.mxu0 %v1325
      %1939 = vmatprep.subr.mxu0 %v1319
      %1940 = vmatpush1.msra.mxu0 %v1318
      %1941 = vmatprep.subr.mxu0 %v1312
      %1942 = vmatpush1.msra.mxu0 %v1311
      %1943 = vmatprep.subr.mxu0 %v1305
      %1944 = vmatpush1.msra.mxu0 %v1304
      %1945 = vmatprep.subr.mxu0 %v1298
      %1946 = vmatpush1.msra.mxu0 %v1297
      %1947 = vmatprep.subr.mxu0 %v1291
      %1948 = vmatpush1.msra.mxu0 %v1290
      %1949 = vmatprep.subr.mxu0 %v1284
      %1950 = vmatpush1.msra.mxu0 %v1283
      %1951 = vmatprep.subr.mxu0 %v1277
      %1952 = vmatpush1.msra.mxu0 %v1276
      %1953 = vmatprep.subr.mxu0 %v1270
      %1954 = vmatpush1.msra.mxu0 %v1269
      %1955 = vmatprep.subr.mxu0 %v1263
      %1956 = vmatpush1.msra.mxu0 %v1262
      %1957 = vmatprep.subr.mxu0 %v1256
      %1958 = vmatpush1.msra.mxu0 %v1255
      %1959 = vmatprep.subr.mxu0 0.0
      %1960 = vmatpush2.msra.mxu0 0.0
      %1961 = vmatprep.subr.mxu0 0.0
      %1962 = vmatpush2.msra.mxu0 0.0
      %1963 = vmatprep.subr.mxu0 0.0
      %1964 = vmatpush2.msra.mxu0 0.0
      %1965 = vmatprep.subr.mxu0 0.0
      %1966 = vmatpush2.msra.mxu0 0.0
      %1967 = vmatprep.subr.mxu0 0.0
      %1968 = vmatpush2.msra.mxu0 0.0
      %1969 = vmatprep.subr.mxu0 0.0
      %1970 = vmatpush2.msra.mxu0 0.0
      %1971 = vmatprep.subr.mxu0 0.0
      %1972 = vmatpush2.msra.mxu0 0.0
      %1973 = vmatprep.subr.mxu0 0.0
      %1974 = vmatpush2.msra.mxu0 0.0
      %1975 = vmatprep.subr.mxu0 0.0
      %1976 = vmatpush2.msra.mxu0 0.0
      %1977 = vmatprep.subr.mxu0 0.0
      %1978 = vmatpush2.msra.mxu0 0.0
      %1979 = vmatprep.subr.mxu0 0.0
      %1980 = vmatpush2.msra.mxu0 0.0
      %1981 = vmatprep.subr.mxu0 0.0
      %1982 = vmatpush2.msra.mxu0 0.0
      %1983 = vmatprep.subr.mxu0 0.0
      %1984 = vmatpush2.msra.mxu0 0.0
      %1985 = vmatprep.subr.mxu0 0.0
      %1986 = vmatpush2.msra.mxu0 0.0
      %1987 = vmatprep.subr.mxu0 0.0
      %1988 = vmatpush2.msra.mxu0 0.0
      %1989 = vmatprep.subr.mxu0 0.0
      %1990 = vmatpush2.msra.mxu0 0.0
      %1991 = vmatprep.mubr.f32.mxu0 0.0
      %1992 = vmatmul.mubr.f32.gmra.mxu0 %v1357
      %v1993 = vpop.f32.mrf.mxu0
      %v1994 = vadd.f32 %v1923, %v1993
      %v1995 = vpop.f32.mrf.mxu0
      %v1996 = vadd.f32 %v1925, %v1995
      %1997 = vdwg.mxu0
      %1998 = vmatprep.subr.mxu0 0.0
      %1999 = vmatpush1.msra.mxu0 %v914
      %2000 = vmatprep.subr.mxu0 0.0
      %2001 = vmatpush1.msra.mxu0 %v907
      %2002 = vmatprep.subr.mxu0 0.0
      %2003 = vmatpush1.msra.mxu0 %v900
      %2004 = vmatprep.subr.mxu0 0.0
      %2005 = vmatpush1.msra.mxu0 %v893
      %2006 = vmatprep.subr.mxu0 0.0
      %2007 = vmatpush1.msra.mxu0 %v886
      %2008 = vmatprep.subr.mxu0 0.0
      %2009 = vmatpush1.msra.mxu0 %v879
      %2010 = vmatprep.subr.mxu0 0.0
      %2011 = vmatpush1.msra.mxu0 %v872
      %2012 = vmatprep.subr.mxu0 0.0
      %2013 = vmatpush1.msra.mxu0 %v865
      %2014 = vmatprep.subr.mxu0 0.0
      %2015 = vmatpush1.msra.mxu0 %v858
      %2016 = vmatprep.subr.mxu0 0.0
      %2017 = vmatpush1.msra.mxu0 %v851
      %2018 = vmatprep.subr.mxu0 0.0
      %2019 = vmatpush1.msra.mxu0 %v844
      %2020 = vmatprep.subr.mxu0 0.0
      %2021 = vmatpush1.msra.mxu0 %v837
      %2022 = vmatprep.subr.mxu0 0.0
      %2023 = vmatpush1.msra.mxu0 %v830
      %2024 = vmatprep.subr.mxu0 0.0
      %2025 = vmatpush1.msra.mxu0 %v823
      %2026 = vmatprep.subr.mxu0 0.0
      %2027 = vmatpush1.msra.mxu0 %v816
      %2028 = vmatprep.subr.mxu0 0.0
      %2029 = vmatpush1.msra.mxu0 %v809
      %2030 = vmatprep.subr.mxu0 0.0
      %2031 = vmatpush2.msra.mxu0 %v1026
      %2032 = vmatprep.subr.mxu0 0.0
      %2033 = vmatpush2.msra.mxu0 %v1019
      %2034 = vmatprep.subr.mxu0 0.0
      %2035 = vmatpush2.msra.mxu0 %v1012
      %2036 = vmatprep.subr.mxu0 0.0
      %2037 = vmatpush2.msra.mxu0 %v1005
      %2038 = vmatprep.subr.mxu0 0.0
      %2039 = vmatpush2.msra.mxu0 %v998
      %2040 = vmatprep.subr.mxu0 0.0
      %2041 = vmatpush2.msra.mxu0 %v991
      %2042 = vmatprep.subr.mxu0 0.0
      %2043 = vmatpush2.msra.mxu0 %v984
      %2044 = vmatprep.subr.mxu0 0.0
      %2045 = vmatpush2.msra.mxu0 %v977
      %2046 = vmatprep.subr.mxu0 0.0
      %2047 = vmatpush2.msra.mxu0 %v970
      %2048 = vmatprep.subr.mxu0 0.0
      %2049 = vmatpush2.msra.mxu0 %v963
      %2050 = vmatprep.subr.mxu0 0.0
      %2051 = vmatpush2.msra.mxu0 %v956
      %2052 = vmatprep.subr.mxu0 0.0
      %2053 = vmatpush2.msra.mxu0 %v949
      %2054 = vmatprep.subr.mxu0 0.0
      %2055 = vmatpush2.msra.mxu0 %v942
      %2056 = vmatprep.subr.mxu0 0.0
      %2057 = vmatpush2.msra.mxu0 %v935
      %2058 = vmatprep.subr.mxu0 0.0
      %2059 = vmatpush2.msra.mxu0 %v928
      %2060 = vmatprep.subr.mxu0 0.0
      %2061 = vmatpush2.msra.mxu0 %v921
      %2062 = vmatprep.mubr.f32.mxu0 %v1352
      %2063 = vmatmul.mubr.f32.gmra.mxu0 %v800
      %v2064 = vpop.f32.mrf.mxu0
      %v2065 = vadd.f32 0.0, %v2064
      %v2066 = vpop.f32.mrf.mxu0
      %2067 = vdwg.mxu0
      %2068 = vmatprep.subr.mxu0 0.0
      %2069 = vmatpush1.msra.mxu0 %v1138
      %2070 = vmatprep.subr.mxu0 0.0
      %2071 = vmatpush1.msra.mxu0 %v1131
      %2072 = vmatprep.subr.mxu0 0.0
      %2073 = vmatpush1.msra.mxu0 %v1124
      %2074 = vmatprep.subr.mxu0 0.0
      %2075 = vmatpush1.msra.mxu0 %v1117
      %2076 = vmatprep.subr.mxu0 0.0
      %2077 = vmatpush1.msra.mxu0 %v1110
      %2078 = vmatprep.subr.mxu0 0.0
      %2079 = vmatpush1.msra.mxu0 %v1103
      %2080 = vmatprep.subr.mxu0 0.0
      %2081 = vmatpush1.msra.mxu0 %v1096
      %2082 = vmatprep.subr.mxu0 0.0
      %2083 = vmatpush1.msra.mxu0 %v1089
      %2084 = vmatprep.subr.mxu0 0.0
      %2085 = vmatpush1.msra.mxu0 %v1082
      %2086 = vmatprep.subr.mxu0 0.0
      %2087 = vmatpush1.msra.mxu0 %v1075
      %2088 = vmatprep.subr.mxu0 0.0
      %2089 = vmatpush1.msra.mxu0 %v1068
      %2090 = vmatprep.subr.mxu0 0.0
      %2091 = vmatpush1.msra.mxu0 %v1061
      %2092 = vmatprep.subr.mxu0 0.0
      %2093 = vmatpush1.msra.mxu0 %v1054
      %2094 = vmatprep.subr.mxu0 0.0
      %2095 = vmatpush1.msra.mxu0 %v1047
      %2096 = vmatprep.subr.mxu0 0.0
      %2097 = vmatpush1.msra.mxu0 %v1040
      %2098 = vmatprep.subr.mxu0 0.0
      %2099 = vmatpush1.msra.mxu0 %v1033
      %2100 = vmatprep.subr.mxu0 0.0
      %2101 = vmatpush2.msra.mxu0 %v1250
      %2102 = vmatprep.subr.mxu0 0.0
      %2103 = vmatpush2.msra.mxu0 %v1243
      %2104 = vmatprep.subr.mxu0 0.0
      %2105 = vmatpush2.msra.mxu0 %v1236
      %2106 = vmatprep.subr.mxu0 0.0
      %2107 = vmatpush2.msra.mxu0 %v1229
      %2108 = vmatprep.subr.mxu0 0.0
      %2109 = vmatpush2.msra.mxu0 %v1222
      %2110 = vmatprep.subr.mxu0 0.0
      %2111 = vmatpush2.msra.mxu0 %v1215
      %2112 = vmatprep.subr.mxu0 0.0
      %2113 = vmatpush2.msra.mxu0 %v1208
      %2114 = vmatprep.subr.mxu0 0.0
      %2115 = vmatpush2.msra.mxu0 %v1201
      %2116 = vmatprep.subr.mxu0 0.0
      %2117 = vmatpush2.msra.mxu0 %v1194
      %2118 = vmatprep.subr.mxu0 0.0
      %2119 = vmatpush2.msra.mxu0 %v1187
      %2120 = vmatprep.subr.mxu0 0.0
      %2121 = vmatpush2.msra.mxu0 %v1180
      %2122 = vmatprep.subr.mxu0 0.0
      %2123 = vmatpush2.msra.mxu0 %v1173
      %2124 = vmatprep.subr.mxu0 0.0
      %2125 = vmatpush2.msra.mxu0 %v1166
      %2126 = vmatprep.subr.mxu0 0.0
      %2127 = vmatpush2.msra.mxu0 %v1159
      %2128 = vmatprep.subr.mxu0 0.0
      %2129 = vmatpush2.msra.mxu0 %v1152
      %2130 = vmatprep.subr.mxu0 0.0
      %2131 = vmatpush2.msra.mxu0 %v1145
      %2132 = vmatprep.mubr.f32.mxu0 %v1353
      %2133 = vmatmul.mubr.f32.gmra.mxu0 %v801
      %v2134 = vpop.f32.mrf.mxu0
      %v2135 = vadd.f32 %v2065, %v2134
      %v2136 = vpop.f32.mrf.mxu0
      %2137 = vdwg.mxu0
      %2138 = vmatprep.subr.mxu0 0.0
      %2139 = vmatpush1.msra.mxu0 0.0
      %2140 = vmatprep.subr.mxu0 0.0
      %2141 = vmatpush1.msra.mxu0 0.0
      %2142 = vmatprep.subr.mxu0 0.0
      %2143 = vmatpush1.msra.mxu0 %v1348
      %2144 = vmatprep.subr.mxu0 0.0
      %2145 = vmatpush1.msra.mxu0 %v1341
      %2146 = vmatprep.subr.mxu0 0.0
      %2147 = vmatpush1.msra.mxu0 %v1334
      %2148 = vmatprep.subr.mxu0 0.0
      %2149 = vmatpush1.msra.mxu0 %v1327
      %2150 = vmatprep.subr.mxu0 0.0
      %2151 = vmatpush1.msra.mxu0 %v1320
      %2152 = vmatprep.subr.mxu0 0.0
      %2153 = vmatpush1.msra.mxu0 %v1313
      %2154 = vmatprep.subr.mxu0 0.0
      %2155 = vmatpush1.msra.mxu0 %v1306
      %2156 = vmatprep.subr.mxu0 0.0
      %2157 = vmatpush1.msra.mxu0 %v1299
      %2158 = vmatprep.subr.mxu0 0.0
      %2159 = vmatpush1.msra.mxu0 %v1292
      %2160 = vmatprep.subr.mxu0 0.0
      %2161 = vmatpush1.msra.mxu0 %v1285
      %2162 = vmatprep.subr.mxu0 0.0
      %2163 = vmatpush1.msra.mxu0 %v1278
      %2164 = vmatprep.subr.mxu0 0.0
      %2165 = vmatpush1.msra.mxu0 %v1271
      %2166 = vmatprep.subr.mxu0 0.0
      %2167 = vmatpush1.msra.mxu0 %v1264
      %2168 = vmatprep.subr.mxu0 0.0
      %2169 = vmatpush1.msra.mxu0 %v1257
      %2170 = vmatprep.subr.mxu0 0.0
      %2171 = vmatpush2.msra.mxu0 0.0
      %2172 = vmatprep.subr.mxu0 0.0
      %2173 = vmatpush2.msra.mxu0 0.0
      %2174 = vmatprep.subr.mxu0 0.0
      %2175 = vmatpush2.msra.mxu0 0.0
      %2176 = vmatprep.subr.mxu0 0.0
      %2177 = vmatpush2.msra.mxu0 0.0
      %2178 = vmatprep.subr.mxu0 0.0
      %2179 = vmatpush2.msra.mxu0 0.0
      %2180 = vmatprep.subr.mxu0 0.0
      %2181 = vmatpush2.msra.mxu0 0.0
      %2182 = vmatprep.subr.mxu0 0.0
      %2183 = vmatpush2.msra.mxu0 0.0
      %2184 = vmatprep.subr.mxu0 0.0
      %2185 = vmatpush2.msra.mxu0 0.0
      %2186 = vmatprep.subr.mxu0 0.0
      %2187 = vmatpush2.msra.mxu0 0.0
      %2188 = vmatprep.subr.mxu0 0.0
      %2189 = vmatpush2.msra.mxu0 0.0
      %2190 = vmatprep.subr.mxu0 0.0
      %2191 = vmatpush2.msra.mxu0 0.0
      %2192 = vmatprep.subr.mxu0 0.0
      %2193 = vmatpush2.msra.mxu0 0.0
      %2194 = vmatprep.subr.mxu0 0.0
      %2195 = vmatpush2.msra.mxu0 0.0
      %2196 = vmatprep.subr.mxu0 0.0
      %2197 = vmatpush2.msra.mxu0 0.0
      %2198 = vmatprep.subr.mxu0 0.0
      %2199 = vmatpush2.msra.mxu0 0.0
      %2200 = vmatprep.subr.mxu0 0.0
      %2201 = vmatpush2.msra.mxu0 0.0
      %2202 = vmatprep.mubr.f32.mxu0 0.0
      %2203 = vmatmul.mubr.f32.gmra.mxu0 %v1357
      %v2204 = vpop.f32.mrf.mxu0
      %v2205 = vadd.f32 %v2135, %v2204
      %v2206 = vpop.f32.mrf.mxu0
      %2207 = vdwg.mxu0
      %v2214 = vcombine.low %v1568, %v1570
      %v2215 = vcombine.low %v1781, %v1783
      %v2216 = vcombine.low %v1994, %v1996
      %v2220 = vadd.f32 %v796, %v2214
      %v2221 = vadd.f32 %v797, %v2215
      %v2222 = vadd.f32 %v798, %v2216
      %v2223 = vadd.f32 %v799, %v2205
      %2224 = vst [vmem:[%s431] sm:$0x77] %v788
      %2225 = vst [vmem:[%s431 + $0x8] sm:$0x77] %v789
      %2226 = vst [vmem:[%s431 + $0x10] sm:$0x77] %v790
      %2227 = vst [vmem:[%s431 + $0x18] sm:$0x7] %v791
      %2228 = vst [vmem:[%s436] sm:$0x77] %v796
      %2229 = vst [vmem:[%s436 + $0x8] sm:$0x77] %v797
      %2230 = vst [vmem:[%s436 + $0x10] sm:$0x77] %v798
      %2231 = vst [vmem:[%s436 + $0x18] sm:$0x7] %v799
      %v2232 = vld [vmem:[%s421] sm:$0xff]
      %v2233 = vld [vmem:[%s421 + $0x8] sm:$0xff]
      %v2234 = vld [vmem:[%s7] sm:$0xff]
      %v2235 = vld [vmem:[%s7 + $0x8] sm:$0xff]
      %v2236 = vld [vmem:[%s7 + $0x10] sm:$0xff]
      %v2237 = vld [vmem:[%s7 + $0x18] sm:$0xff]
      %v2238 = vld [vmem:[%s7 + $0x20] sm:$0xff]
      %v2239 = vld [vmem:[%s7 + $0x28] sm:$0xff]
      %v2240 = vld [vmem:[%s7 + $0x30] sm:$0xff]
      %v2241 = vld [vmem:[%s7 + $0x38] sm:$0xff]
      %v2242 = vld [vmem:[%s7 + $0x40] sm:$0xff]
      %v2243 = vld [vmem:[%s7 + $0x48] sm:$0xff]
      %v2244 = vld [vmem:[%s7 + $0x50] sm:$0xff]
      %v2245 = vld [vmem:[%s7 + $0x58] sm:$0xff]
      %v2246 = vld [vmem:[%s7 + $0x60] sm:$0xff]
      %v2247 = vld [vmem:[%s7 + $0x68] sm:$0xff]
      %v2248 = vld [vmem:[%s7 + $0x70] sm:$0xff]
      %v2249 = vld [vmem:[%s7 + $0x78] sm:$0xff]
      %v2250 = vld [vmem:[%s7 + $0x80] sm:$0xff]
      %v2251 = vld [vmem:[%s7 + $0x88] sm:$0xff]
      %v2252 = vld [vmem:[%s7 + $0x90] sm:$0xff]
      %v2253 = vld [vmem:[%s7 + $0x98] sm:$0xff]
      %v2254 = vld [vmem:[%s7 + $0xa0] sm:$0xff]
      %v2255 = vld [vmem:[%s7 + $0xa8] sm:$0xff]
      %v2256 = vld [vmem:[%s7 + $0xb0] sm:$0xff]
      %v2257 = vld [vmem:[%s7 + $0xb8] sm:$0xff]
      %v2258 = vld [vmem:[%s7 + $0xc0] sm:$0xff]
      %v2259 = vld [vmem:[%s7 + $0xc8] sm:$0xff]
      %v2260 = vld [vmem:[%s7 + $0xd0] sm:$0xff]
      %v2261 = vld [vmem:[%s7 + $0xd8] sm:$0xff]
      %vm2262 = vcmask 261120
      %v2264 = vsel %vm2262, %v2232, 0
      %v2267 = vsel %vm2262, %v2233, 0
      %2269 = vmatprep.subr.mxu0 0.0
      %2270 = vmatpush1.msra.mxu0 0.0
      %2271 = vmatprep.subr.mxu0 0.0
      %2272 = vmatpush1.msra.mxu0 0.0
      %2273 = vmatprep.subr.mxu0 0.0
      %2274 = vmatpush1.msra.mxu0 0.0
      %2275 = vmatprep.subr.mxu0 0.0
      %2276 = vmatpush1.msra.mxu0 0.0
      %2277 = vmatprep.subr.mxu0 0.0
      %2278 = vmatpush1.msra.mxu0 0.0
      %2279 = vmatprep.subr.mxu0 0.0
      %2280 = vmatpush1.msra.mxu0 0.0
      %2281 = vmatprep.subr.mxu0 0.0
      %2282 = vmatpush1.msra.mxu0 0.0
      %2283 = vmatprep.subr.mxu0 0.0
      %2284 = vmatpush1.msra.mxu0 0.0
      %2285 = vmatprep.subr.mxu0 0.0
      %2286 = vmatpush1.msra.mxu0 0.0
      %2287 = vmatprep.subr.mxu0 0.0
      %2288 = vmatpush1.msra.mxu0 0.0
      %2289 = vmatprep.subr.mxu0 0.0
      %2290 = vmatpush1.msra.mxu0 0.0
      %2291 = vmatprep.subr.mxu0 0.0
      %2292 = vmatpush1.msra.mxu0 0.0
      %2293 = vmatprep.subr.mxu0 %v2256
      %2294 = vmatpush1.msra.mxu0 %v2255
      %2295 = vmatprep.subr.mxu0 %v2249
      %2296 = vmatpush1.msra.mxu0 %v2248
      %2297 = vmatprep.subr.mxu0 %v2242
      %2298 = vmatpush1.msra.mxu0 %v2241
      %2299 = vmatprep.subr.mxu0 %v2235
      %2300 = vmatpush1.msra.mxu0 %v2234
      %2301 = vmatprep.subr.mxu0 0.0
      %2302 = vmatpush2.msra.mxu0 0.0
      %2303 = vmatprep.subr.mxu0 0.0
      %2304 = vmatpush2.msra.mxu0 0.0
      %2305 = vmatprep.subr.mxu0 0.0
      %2306 = vmatpush2.msra.mxu0 0.0
      %2307 = vmatprep.subr.mxu0 0.0
      %2308 = vmatpush2.msra.mxu0 0.0
      %2309 = vmatprep.subr.mxu0 0.0
      %2310 = vmatpush2.msra.mxu0 0.0
      %2311 = vmatprep.subr.mxu0 0.0
      %2312 = vmatpush2.msra.mxu0 0.0
      %2313 = vmatprep.subr.mxu0 0.0
      %2314 = vmatpush2.msra.mxu0 0.0
      %2315 = vmatprep.subr.mxu0 0.0
      %2316 = vmatpush2.msra.mxu0 0.0
      %2317 = vmatprep.subr.mxu0 0.0
      %2318 = vmatpush2.msra.mxu0 0.0
      %2319 = vmatprep.subr.mxu0 0.0
      %2320 = vmatpush2.msra.mxu0 0.0
      %2321 = vmatprep.subr.mxu0 0.0
      %2322 = vmatpush2.msra.mxu0 0.0
      %2323 = vmatprep.subr.mxu0 0.0
      %2324 = vmatpush2.msra.mxu0 0.0
      %2325 = vmatprep.subr.mxu0 0.0
      %2326 = vmatpush2.msra.mxu0 0.0
      %2327 = vmatprep.subr.mxu0 0.0
      %2328 = vmatpush2.msra.mxu0 0.0
      %2329 = vmatprep.subr.mxu0 0.0
      %2330 = vmatpush2.msra.mxu0 0.0
      %2331 = vmatprep.subr.mxu0 0.0
      %2332 = vmatpush2.msra.mxu0 0.0
      %2333 = vmatprep.mubr.f32.mxu0 0.0
      %2334 = vmatmul.mubr.f32.gmra.mxu0 %v2264
      %v2335 = vpop.f32.mrf.mxu0
      %v2336 = vadd.f32 0.0, %v2335
      %v2337 = vpop.f32.mrf.mxu0
      %v2338 = vadd.f32 0.0, %v2337
      %2339 = vmatprep.mubr.f32.mxu0 0.0
      %2340 = vmatmul.mubr.f32.gmra.mxu0 %v2267
      %v2341 = vpop.f32.mrf.mxu0
      %v2342 = vadd.f32 0.0, %v2341
      %v2343 = vpop.f32.mrf.mxu0
      %v2344 = vadd.f32 0.0, %v2343
      %2345 = vdwg.mxu0
      %2346 = vmatprep.subr.mxu0 0.0
      %2347 = vmatpush1.msra.mxu0 0.0
      %2348 = vmatprep.subr.mxu0 0.0
      %2349 = vmatpush1.msra.mxu0 0.0
      %2350 = vmatprep.subr.mxu0 0.0
      %2351 = vmatpush1.msra.mxu0 0.0
      %2352 = vmatprep.subr.mxu0 0.0
      %2353 = vmatpush1.msra.mxu0 0.0
      %2354 = vmatprep.subr.mxu0 0.0
      %2355 = vmatpush1.msra.mxu0 0.0
      %2356 = vmatprep.subr.mxu0 0.0
      %2357 = vmatpush1.msra.mxu0 0.0
      %2358 = vmatprep.subr.mxu0 0.0
      %2359 = vmatpush1.msra.mxu0 0.0
      %2360 = vmatprep.subr.mxu0 0.0
      %2361 = vmatpush1.msra.mxu0 0.0
      %2362 = vmatprep.subr.mxu0 0.0
      %2363 = vmatpush1.msra.mxu0 0.0
      %2364 = vmatprep.subr.mxu0 0.0
      %2365 = vmatpush1.msra.mxu0 0.0
      %2366 = vmatprep.subr.mxu0 0.0
      %2367 = vmatpush1.msra.mxu0 0.0
      %2368 = vmatprep.subr.mxu0 0.0
      %2369 = vmatpush1.msra.mxu0 0.0
      %2370 = vmatprep.subr.mxu0 %v2258
      %2371 = vmatpush1.msra.mxu0 %v2257
      %2372 = vmatprep.subr.mxu0 %v2251
      %2373 = vmatpush1.msra.mxu0 %v2250
      %2374 = vmatprep.subr.mxu0 %v2244
      %2375 = vmatpush1.msra.mxu0 %v2243
      %2376 = vmatprep.subr.mxu0 %v2237
      %2377 = vmatpush1.msra.mxu0 %v2236
      %2378 = vmatprep.subr.mxu0 0.0
      %2379 = vmatpush2.msra.mxu0 0.0
      %2380 = vmatprep.subr.mxu0 0.0
      %2381 = vmatpush2.msra.mxu0 0.0
      %2382 = vmatprep.subr.mxu0 0.0
      %2383 = vmatpush2.msra.mxu0 0.0
      %2384 = vmatprep.subr.mxu0 0.0
      %2385 = vmatpush2.msra.mxu0 0.0
      %2386 = vmatprep.subr.mxu0 0.0
      %2387 = vmatpush2.msra.mxu0 0.0
      %2388 = vmatprep.subr.mxu0 0.0
      %2389 = vmatpush2.msra.mxu0 0.0
      %2390 = vmatprep.subr.mxu0 0.0
      %2391 = vmatpush2.msra.mxu0 0.0
      %2392 = vmatprep.subr.mxu0 0.0
      %2393 = vmatpush2.msra.mxu0 0.0
      %2394 = vmatprep.subr.mxu0 0.0
      %2395 = vmatpush2.msra.mxu0 0.0
      %2396 = vmatprep.subr.mxu0 0.0
      %2397 = vmatpush2.msra.mxu0 0.0
      %2398 = vmatprep.subr.mxu0 0.0
      %2399 = vmatpush2.msra.mxu0 0.0
      %2400 = vmatprep.subr.mxu0 0.0
      %2401 = vmatpush2.msra.mxu0 0.0
      %2402 = vmatprep.subr.mxu0 0.0
      %2403 = vmatpush2.msra.mxu0 0.0
      %2404 = vmatprep.subr.mxu0 0.0
      %2405 = vmatpush2.msra.mxu0 0.0
      %2406 = vmatprep.subr.mxu0 0.0
      %2407 = vmatpush2.msra.mxu0 0.0
      %2408 = vmatprep.subr.mxu0 0.0
      %2409 = vmatpush2.msra.mxu0 0.0
      %2410 = vmatprep.mubr.f32.mxu0 0.0
      %2411 = vmatmul.mubr.f32.gmra.mxu0 %v2264
      %v2412 = vpop.f32.mrf.mxu0
      %v2413 = vadd.f32 0.0, %v2412
      %v2414 = vpop.f32.mrf.mxu0
      %v2415 = vadd.f32 0.0, %v2414
      %2416 = vmatprep.mubr.f32.mxu0 0.0
      %2417 = vmatmul.mubr.f32.gmra.mxu0 %v2267
      %v2418 = vpop.f32.mrf.mxu0
      %v2419 = vadd.f32 0.0, %v2418
      %v2420 = vpop.f32.mrf.mxu0
      %v2421 = vadd.f32 0.0, %v2420
      %2422 = vdwg.mxu0
      %2423 = vmatprep.subr.mxu0 0.0
      %2424 = vmatpush1.msra.mxu0 0.0
      %2425 = vmatprep.subr.mxu0 0.0
      %2426 = vmatpush1.msra.mxu0 0.0
      %2427 = vmatprep.subr.mxu0 0.0
      %2428 = vmatpush1.msra.mxu0 0.0
      %2429 = vmatprep.subr.mxu0 0.0
      %2430 = vmatpush1.msra.mxu0 0.0
      %2431 = vmatprep.subr.mxu0 0.0
      %2432 = vmatpush1.msra.mxu0 0.0
      %2433 = vmatprep.subr.mxu0 0.0
      %2434 = vmatpush1.msra.mxu0 0.0
      %2435 = vmatprep.subr.mxu0 0.0
      %2436 = vmatpush1.msra.mxu0 0.0
      %2437 = vmatprep.subr.mxu0 0.0
      %2438 = vmatpush1.msra.mxu0 0.0
      %2439 = vmatprep.subr.mxu0 0.0
      %2440 = vmatpush1.msra.mxu0 0.0
      %2441 = vmatprep.subr.mxu0 0.0
      %2442 = vmatpush1.msra.mxu0 0.0
      %2443 = vmatprep.subr.mxu0 0.0
      %2444 = vmatpush1.msra.mxu0 0.0
      %2445 = vmatprep.subr.mxu0 0.0
      %2446 = vmatpush1.msra.mxu0 0.0
      %2447 = vmatprep.subr.mxu0 %v2260
      %2448 = vmatpush1.msra.mxu0 %v2259
      %2449 = vmatprep.subr.mxu0 %v2253
      %2450 = vmatpush1.msra.mxu0 %v2252
      %2451 = vmatprep.subr.mxu0 %v2246
      %2452 = vmatpush1.msra.mxu0 %v2245
      %2453 = vmatprep.subr.mxu0 %v2239
      %2454 = vmatpush1.msra.mxu0 %v2238
      %2455 = vmatprep.subr.mxu0 0.0
      %2456 = vmatpush2.msra.mxu0 0.0
      %2457 = vmatprep.subr.mxu0 0.0
      %2458 = vmatpush2.msra.mxu0 0.0
      %2459 = vmatprep.subr.mxu0 0.0
      %2460 = vmatpush2.msra.mxu0 0.0
      %2461 = vmatprep.subr.mxu0 0.0
      %2462 = vmatpush2.msra.mxu0 0.0
      %2463 = vmatprep.subr.mxu0 0.0
      %2464 = vmatpush2.msra.mxu0 0.0
      %2465 = vmatprep.subr.mxu0 0.0
      %2466 = vmatpush2.msra.mxu0 0.0
      %2467 = vmatprep.subr.mxu0 0.0
      %2468 = vmatpush2.msra.mxu0 0.0
      %2469 = vmatprep.subr.mxu0 0.0
      %2470 = vmatpush2.msra.mxu0 0.0
      %2471 = vmatprep.subr.mxu0 0.0
      %2472 = vmatpush2.msra.mxu0 0.0
      %2473 = vmatprep.subr.mxu0 0.0
      %2474 = vmatpush2.msra.mxu0 0.0
      %2475 = vmatprep.subr.mxu0 0.0
      %2476 = vmatpush2.msra.mxu0 0.0
      %2477 = vmatprep.subr.mxu0 0.0
      %2478 = vmatpush2.msra.mxu0 0.0
      %2479 = vmatprep.subr.mxu0 0.0
      %2480 = vmatpush2.msra.mxu0 0.0
      %2481 = vmatprep.subr.mxu0 0.0
      %2482 = vmatpush2.msra.mxu0 0.0
      %2483 = vmatprep.subr.mxu0 0.0
      %2484 = vmatpush2.msra.mxu0 0.0
      %2485 = vmatprep.subr.mxu0 0.0
      %2486 = vmatpush2.msra.mxu0 0.0
      %2487 = vmatprep.mubr.f32.mxu0 0.0
      %2488 = vmatmul.mubr.f32.gmra.mxu0 %v2264
      %v2489 = vpop.f32.mrf.mxu0
      %v2490 = vadd.f32 0.0, %v2489
      %v2491 = vpop.f32.mrf.mxu0
      %v2492 = vadd.f32 0.0, %v2491
      %2493 = vmatprep.mubr.f32.mxu0 0.0
      %2494 = vmatmul.mubr.f32.gmra.mxu0 %v2267
      %v2495 = vpop.f32.mrf.mxu0
      %v2496 = vadd.f32 0.0, %v2495
      %v2497 = vpop.f32.mrf.mxu0
      %v2498 = vadd.f32 0.0, %v2497
      %2499 = vdwg.mxu0
      %2500 = vmatprep.subr.mxu0 0.0
      %2501 = vmatpush1.msra.mxu0 0.0
      %2502 = vmatprep.subr.mxu0 0.0
      %2503 = vmatpush1.msra.mxu0 0.0
      %2504 = vmatprep.subr.mxu0 0.0
      %2505 = vmatpush1.msra.mxu0 0.0
      %2506 = vmatprep.subr.mxu0 0.0
      %2507 = vmatpush1.msra.mxu0 0.0
      %2508 = vmatprep.subr.mxu0 0.0
      %2509 = vmatpush1.msra.mxu0 0.0
      %2510 = vmatprep.subr.mxu0 0.0
      %2511 = vmatpush1.msra.mxu0 0.0
      %2512 = vmatprep.subr.mxu0 0.0
      %2513 = vmatpush1.msra.mxu0 0.0
      %2514 = vmatprep.subr.mxu0 0.0
      %2515 = vmatpush1.msra.mxu0 0.0
      %2516 = vmatprep.subr.mxu0 0.0
      %2517 = vmatpush1.msra.mxu0 0.0
      %2518 = vmatprep.subr.mxu0 0.0
      %2519 = vmatpush1.msra.mxu0 0.0
      %2520 = vmatprep.subr.mxu0 0.0
      %2521 = vmatpush1.msra.mxu0 0.0
      %2522 = vmatprep.subr.mxu0 0.0
      %2523 = vmatpush1.msra.mxu0 0.0
      %2524 = vmatprep.subr.mxu0 0.0
      %2525 = vmatpush1.msra.mxu0 %v2261
      %2526 = vmatprep.subr.mxu0 0.0
      %2527 = vmatpush1.msra.mxu0 %v2254
      %2528 = vmatprep.subr.mxu0 0.0
      %2529 = vmatpush1.msra.mxu0 %v2247
      %2530 = vmatprep.subr.mxu0 0.0
      %2531 = vmatpush1.msra.mxu0 %v2240
      %2532 = vmatprep.subr.mxu0 0.0
      %2533 = vmatpush2.msra.mxu0 0.0
      %2534 = vmatprep.subr.mxu0 0.0
      %2535 = vmatpush2.msra.mxu0 0.0
      %2536 = vmatprep.subr.mxu0 0.0
      %2537 = vmatpush2.msra.mxu0 0.0
      %2538 = vmatprep.subr.mxu0 0.0
      %2539 = vmatpush2.msra.mxu0 0.0
      %2540 = vmatprep.subr.mxu0 0.0
      %2541 = vmatpush2.msra.mxu0 0.0
      %2542 = vmatprep.subr.mxu0 0.0
      %2543 = vmatpush2.msra.mxu0 0.0
      %2544 = vmatprep.subr.mxu0 0.0
      %2545 = vmatpush2.msra.mxu0 0.0
      %2546 = vmatprep.subr.mxu0 0.0
      %2547 = vmatpush2.msra.mxu0 0.0
      %2548 = vmatprep.subr.mxu0 0.0
      %2549 = vmatpush2.msra.mxu0 0.0
      %2550 = vmatprep.subr.mxu0 0.0
      %2551 = vmatpush2.msra.mxu0 0.0
      %2552 = vmatprep.subr.mxu0 0.0
      %2553 = vmatpush2.msra.mxu0 0.0
      %2554 = vmatprep.subr.mxu0 0.0
      %2555 = vmatpush2.msra.mxu0 0.0
      %2556 = vmatprep.subr.mxu0 0.0
      %2557 = vmatpush2.msra.mxu0 0.0
      %2558 = vmatprep.subr.mxu0 0.0
      %2559 = vmatpush2.msra.mxu0 0.0
      %2560 = vmatprep.subr.mxu0 0.0
      %2561 = vmatpush2.msra.mxu0 0.0
      %2562 = vmatprep.subr.mxu0 0.0
      %2563 = vmatpush2.msra.mxu0 0.0
      %2564 = vmatprep.mubr.f32.mxu0 0.0
      %2565 = vmatmul.mubr.f32.gmra.mxu0 %v2264
      %v2566 = vpop.f32.mrf.mxu0
      %v2567 = vadd.f32 0.0, %v2566
      %v2568 = vpop.f32.mrf.mxu0
      %2569 = vmatprep.mubr.f32.mxu0 0.0
      %2570 = vmatmul.mubr.f32.gmra.mxu0 %v2267
      %v2571 = vpop.f32.mrf.mxu0
      %v2572 = vadd.f32 0.0, %v2571
      %v2573 = vpop.f32.mrf.mxu0
      %2574 = vdwg.mxu0
      %v2579 = vlaneseq
      %v2580 = vshrl.u32 %v2579, 7
      %v2581 = vsub.s32 0, %v2580
      %v2582 = vrot.slane %v2220, %v2581
      %v2583 = vlaneseq
      %v2584 = vshrl.u32 %v2583, 7
      %v2585 = vsub.s32 4, %v2584
      %v2586 = vrot.slane %v2220, %v2585
      %v2587 = vlaneseq
      %v2588 = vshrl.u32 %v2587, 7
      %v2589 = vsub.s32 0, %v2588
      %v2590 = vrot.slane %v2221, %v2589
      %v2591 = vlaneseq
      %v2592 = vshrl.u32 %v2591, 7
      %v2593 = vsub.s32 4, %v2592
      %v2594 = vrot.slane %v2221, %v2593
      %v2595 = vlaneseq
      %v2596 = vshrl.u32 %v2595, 7
      %v2597 = vsub.s32 0, %v2596
      %v2598 = vrot.slane %v2222, %v2597
      %v2599 = vlaneseq
      %v2600 = vshrl.u32 %v2599, 7
      %v2601 = vsub.s32 4, %v2600
      %v2602 = vrot.slane %v2222, %v2601
      %v2603 = vlaneseq
      %v2604 = vshrl.u32 %v2603, 7
      %v2605 = vsub.s32 0, %v2604
      %v2606 = vrot.slane %v2223, %v2605
      %v2614 = vmul.f32 %v2336, %v2582
      %v2615 = vmul.f32 %v2338, %v2586
      %v2616 = vmul.f32 %v2413, %v2590
      %v2617 = vmul.f32 %v2415, %v2594
      %v2618 = vmul.f32 %v2490, %v2598
      %v2619 = vmul.f32 %v2492, %v2602
      %v2620 = vmul.f32 %v2567, %v2606
      %v2621 = vlaneseq
      %v2622 = vshrl.u32 %v2621, 7
      %v2623 = vsub.s32 1, %v2622
      %v2624 = vrot.slane %v2220, %v2623
      %v2625 = vlaneseq
      %v2626 = vshrl.u32 %v2625, 7
      %v2627 = vsub.s32 5, %v2626
      %v2628 = vrot.slane %v2220, %v2627
      %v2629 = vlaneseq
      %v2630 = vshrl.u32 %v2629, 7
      %v2631 = vsub.s32 1, %v2630
      %v2632 = vrot.slane %v2221, %v2631
      %v2633 = vlaneseq
      %v2634 = vshrl.u32 %v2633, 7
      %v2635 = vsub.s32 5, %v2634
      %v2636 = vrot.slane %v2221, %v2635
      %v2637 = vlaneseq
      %v2638 = vshrl.u32 %v2637, 7
      %v2639 = vsub.s32 1, %v2638
      %v2640 = vrot.slane %v2222, %v2639
      %v2641 = vlaneseq
      %v2642 = vshrl.u32 %v2641, 7
      %v2643 = vsub.s32 5, %v2642
      %v2644 = vrot.slane %v2222, %v2643
      %v2645 = vlaneseq
      %v2646 = vshrl.u32 %v2645, 7
      %v2647 = vsub.s32 1, %v2646
      %v2648 = vrot.slane %v2223, %v2647
      %v2656 = vmul.f32 %v2336, %v2624
      %v2657 = vmul.f32 %v2338, %v2628
      %v2658 = vmul.f32 %v2413, %v2632
      %v2659 = vmul.f32 %v2415, %v2636
      %v2660 = vmul.f32 %v2490, %v2640
      %v2661 = vmul.f32 %v2492, %v2644
      %v2662 = vmul.f32 %v2567, %v2648
      %v2670 = vrot.slane %v2656, 1
      %v2671 = vrot.slane %v2657, 1
      %v2672 = vrot.slane %v2658, 1
      %v2673 = vrot.slane %v2659, 1
      %v2674 = vrot.slane %v2660, 1
      %v2675 = vrot.slane %v2661, 1
      %v2676 = vrot.slane %v2662, 1
      %v2684 = vadd.f32 %v2614, %v2670
      %v2685 = vadd.f32 %v2615, %v2671
      %v2686 = vadd.f32 %v2616, %v2672
      %v2687 = vadd.f32 %v2617, %v2673
      %v2688 = vadd.f32 %v2618, %v2674
      %v2689 = vadd.f32 %v2619, %v2675
      %v2690 = vadd.f32 %v2620, %v2676
      %v2691 = vlaneseq
      %v2692 = vshrl.u32 %v2691, 7
      %v2693 = vsub.s32 2, %v2692
      %v2694 = vrot.slane %v2220, %v2693
      %v2695 = vlaneseq
      %v2696 = vshrl.u32 %v2695, 7
      %v2697 = vsub.s32 6, %v2696
      %v2698 = vrot.slane %v2220, %v2697
      %v2699 = vlaneseq
      %v2700 = vshrl.u32 %v2699, 7
      %v2701 = vsub.s32 2, %v2700
      %v2702 = vrot.slane %v2221, %v2701
      %v2703 = vlaneseq
      %v2704 = vshrl.u32 %v2703, 7
      %v2705 = vsub.s32 6, %v2704
      %v2706 = vrot.slane %v2221, %v2705
      %v2707 = vlaneseq
      %v2708 = vshrl.u32 %v2707, 7
      %v2709 = vsub.s32 2, %v2708
      %v2710 = vrot.slane %v2222, %v2709
      %v2711 = vlaneseq
      %v2712 = vshrl.u32 %v2711, 7
      %v2713 = vsub.s32 6, %v2712
      %v2714 = vrot.slane %v2222, %v2713
      %v2715 = vlaneseq
      %v2716 = vshrl.u32 %v2715, 7
      %v2717 = vsub.s32 2, %v2716
      %v2718 = vrot.slane %v2223, %v2717
      %v2726 = vmul.f32 %v2336, %v2694
      %v2727 = vmul.f32 %v2338, %v2698
      %v2728 = vmul.f32 %v2413, %v2702
      %v2729 = vmul.f32 %v2415, %v2706
      %v2730 = vmul.f32 %v2490, %v2710
      %v2731 = vmul.f32 %v2492, %v2714
      %v2732 = vmul.f32 %v2567, %v2718
      %v2740 = vrot.slane %v2726, 2
      %v2741 = vrot.slane %v2727, 2
      %v2742 = vrot.slane %v2728, 2
      %v2743 = vrot.slane %v2729, 2
      %v2744 = vrot.slane %v2730, 2
      %v2745 = vrot.slane %v2731, 2
      %v2746 = vrot.slane %v2732, 2
      %v2754 = vadd.f32 %v2684, %v2740
      %v2755 = vadd.f32 %v2685, %v2741
      %v2756 = vadd.f32 %v2686, %v2742
      %v2757 = vadd.f32 %v2687, %v2743
      %v2758 = vadd.f32 %v2688, %v2744
      %v2759 = vadd.f32 %v2689, %v2745
      %v2760 = vadd.f32 %v2690, %v2746
      %v2768 = vrot.slane %v2336, 3
      %v2769 = vrot.slane %v2338, 3
      %v2770 = vrot.slane %v2413, 3
      %v2771 = vrot.slane %v2415, 3
      %v2772 = vrot.slane %v2490, 3
      %v2773 = vrot.slane %v2492, 3
      %v2774 = vrot.slane %v2567, 3
      %v2782 = vadd.f32 %v2754, %v2768
      %v2783 = vadd.f32 %v2755, %v2769
      %v2784 = vadd.f32 %v2756, %v2770
      %v2785 = vadd.f32 %v2757, %v2771
      %v2786 = vadd.f32 %v2758, %v2772
      %v2787 = vadd.f32 %v2759, %v2773
      %v2788 = vadd.f32 %v2760, %v2774
      %v2789 = vmul.f32 %v2342, %v2582
      %v2790 = vmul.f32 %v2344, %v2586
      %v2791 = vmul.f32 %v2419, %v2590
      %v2792 = vmul.f32 %v2421, %v2594
      %v2793 = vmul.f32 %v2496, %v2598
      %v2794 = vmul.f32 %v2498, %v2602
      %v2795 = vmul.f32 %v2572, %v2606
      %v2796 = vmul.f32 %v2342, %v2624
      %v2797 = vmul.f32 %v2344, %v2628
      %v2798 = vmul.f32 %v2419, %v2632
      %v2799 = vmul.f32 %v2421, %v2636
      %v2800 = vmul.f32 %v2496, %v2640
      %v2801 = vmul.f32 %v2498, %v2644
      %v2802 = vmul.f32 %v2572, %v2648
      %v2810 = vrot.slane %v2796, 1
      %v2811 = vrot.slane %v2797, 1
      %v2812 = vrot.slane %v2798, 1
      %v2813 = vrot.slane %v2799, 1
      %v2814 = vrot.slane %v2800, 1
      %v2815 = vrot.slane %v2801, 1
      %v2816 = vrot.slane %v2802, 1
      %v2824 = vadd.f32 %v2789, %v2810
      %v2825 = vadd.f32 %v2790, %v2811
      %v2826 = vadd.f32 %v2791, %v2812
      %v2827 = vadd.f32 %v2792, %v2813
      %v2828 = vadd.f32 %v2793, %v2814
      %v2829 = vadd.f32 %v2794, %v2815
      %v2830 = vadd.f32 %v2795, %v2816
      %v2831 = vmul.f32 %v2342, %v2694
      %v2832 = vmul.f32 %v2344, %v2698
      %v2833 = vmul.f32 %v2419, %v2702
      %v2834 = vmul.f32 %v2421, %v2706
      %v2835 = vmul.f32 %v2496, %v2710
      %v2836 = vmul.f32 %v2498, %v2714
      %v2837 = vmul.f32 %v2572, %v2718
      %v2845 = vrot.slane %v2831, 2
      %v2846 = vrot.slane %v2832, 2
      %v2847 = vrot.slane %v2833, 2
      %v2848 = vrot.slane %v2834, 2
      %v2849 = vrot.slane %v2835, 2
      %v2850 = vrot.slane %v2836, 2
      %v2851 = vrot.slane %v2837, 2
      %v2859 = vadd.f32 %v2824, %v2845
      %v2860 = vadd.f32 %v2825, %v2846
      %v2861 = vadd.f32 %v2826, %v2847
      %v2862 = vadd.f32 %v2827, %v2848
      %v2863 = vadd.f32 %v2828, %v2849
      %v2864 = vadd.f32 %v2829, %v2850
      %v2865 = vadd.f32 %v2830, %v2851
      %v2873 = vrot.slane %v2342, 3
      %v2874 = vrot.slane %v2344, 3
      %v2875 = vrot.slane %v2419, 3
      %v2876 = vrot.slane %v2421, 3
      %v2877 = vrot.slane %v2496, 3
      %v2878 = vrot.slane %v2498, 3
      %v2879 = vrot.slane %v2572, 3
      %v2887 = vadd.f32 %v2859, %v2873
      %v2888 = vadd.f32 %v2860, %v2874
      %v2889 = vadd.f32 %v2861, %v2875
      %v2890 = vadd.f32 %v2862, %v2876
      %v2891 = vadd.f32 %v2863, %v2877
      %v2892 = vadd.f32 %v2864, %v2878
      %v2893 = vadd.f32 %v2865, %v2879
      %v2901 = vrot.slane %v2782, 3
      %v2902 = vrot.slane %v2783, 3
      %v2903 = vrot.slane %v2784, 3
      %v2904 = vrot.slane %v2785, 3
      %v2905 = vrot.slane %v2786, 3
      %v2906 = vrot.slane %v2787, 3
      %v2907 = vrot.slane %v2788, 3
      %v2922 = vrot.slane %v2887, 6
      %v2923 = vrot.slane %v2888, 6
      %v2924 = vrot.slane %v2889, 6
      %v2925 = vrot.slane %v2890, 6
      %v2926 = vrot.slane %v2891, 6
      %v2927 = vrot.slane %v2892, 6
      %v2928 = vrot.slane %v2893, 6
      %vm2936 = vcmask 1040384
      %v2937 = vsel %vm2936, %v2782, %v2901
      %v2938 = vsel %vm2936, %v2783, %v2902
      %v2939 = vsel %vm2936, %v2784, %v2903
      %v2940 = vsel %vm2936, %v2785, %v2904
      %v2941 = vsel %vm2936, %v2786, %v2905
      %v2942 = vsel %vm2936, %v2787, %v2906
      %v2943 = vsel %vm2936, %v2788, %v2907
      %vm2944 = vcmask 1041408
      %v2945 = vsel %vm2944, %v2937, %v2922
      %v2946 = vsel %vm2944, %v2938, %v2923
      %v2947 = vsel %vm2944, %v2939, %v2924
      %v2948 = vsel %vm2944, %v2940, %v2925
      %v2949 = vsel %vm2944, %v2941, %v2926
      %v2950 = vsel %vm2944, %v2942, %v2927
      %v2951 = vsel %vm2944, %v2943, %v2928
      %v2958 = vcombine.low %v2945, %v2946
      %v2959 = vcombine.low %v2947, %v2948
      %v2960 = vcombine.low %v2949, %v2950
      %2964 = vst [vmem:[%s441] sm:$0x77] %v2958
      %2965 = vst [vmem:[%s441 + $0x8] sm:$0x77] %v2959
      %2966 = vst [vmem:[%s441 + $0x10] sm:$0x77] %v2960
      %2967 = vst [vmem:[%s441 + $0x18] sm:$0x7] %v2951
      %p2968 = scmp.lt.s32.totalorder %s22, 1
      %s2969 = scalar_select %p2968, %s22, 1
      %s2970 = smul.addr %s2969, 7
      %s2971 = smul.addr %s2970, 4
      %s2972 = scalar_lea.vmem %s8, %s2971
      %p2973 = scmp.lt.s32.totalorder %s22, 1
      %s2974 = scalar_select %p2973, %s22, 1
      %s2975 = smul.addr %s2974, 7
      %s2976 = smul.addr %s2975, 4
      %s2977 = scalar_lea.vmem %s9, %s2976
      %p2978 = scmp.lt.s32.totalorder %s22, 1
      %s2979 = scalar_select %p2978, %s22, 1
      %s2980 = smul.addr %s2979, 7
      %s2981 = smul.addr %s2980, 4
      %s2982 = scalar_lea.vmem %s10, %s2981
      // Predicated region
      $region53: #{_lambda_.1} parent=51 // pred_check
        %p2983 = pneg %p228
      $region54: #{_lambda_.1} parent=51 // pred_check_branch
        %2985 = sbr.rel (%p2983) target = $region56
      $region55: #{_lambda_.1} parent=51 // pred_region
        _
      $region56: #{_lambda_.1} parent=51 // pred_fallthru
        _
      // Predicated region
      $region57: #{_lambda_.1} parent=51 // pred_check
        %p2986 = pneg %p254
      $region58: #{_lambda_.1} parent=51 // pred_check_branch
        %2988 = sbr.rel (%p2986) target = $region60
      $region59: #{_lambda_.1} parent=51 // pred_region
        _
      $region60: #{_lambda_.1} parent=51 // pred_fallthru
        _
      // Predicated region
      $region61: #{_lambda_.1} parent=51 // pred_check
        %p2989 = pneg %p280
      $region62: #{_lambda_.1} parent=51 // pred_check_branch
        %2991 = sbr.rel (%p2989) target = $region64
      $region63: #{_lambda_.1} parent=51 // pred_region
        _
      $region64: #{_lambda_.1} parent=51 // pred_fallthru
        _
    $region52: #{_lambda_.1} parent=5 // pred_fallthru
      _
    %p2992 = scmp.le.s32.totalorder 2, %s17
    // Predicated region
    $region65: #{_lambda_.1} parent=5 // pred_check
      %p2993 = pneg %p2992
    $region66: #{_lambda_.1} parent=5 // pred_check_branch
      %2995 = sbr.rel (%p2993) target = $region68
    $region67: #{_lambda_.1} parent=5 // pred_region
      %s2996 = ssub.s32 %s17, 2
      // Predicated region
      $region69: #{_lambda_.1} parent=67 // pred_check
        %p2997 = pneg %p234
      $region70: #{_lambda_.1} parent=67 // pred_check_branch
        %2999 = sbr.rel (%p2997) target = $region72
      $region71: #{_lambda_.1} parent=67 // pred_region
        %p3000 = scmp.lt.s32.totalorder %s23, 1
        %s3001 = scalar_select %p3000, %s23, 1
        %s3002 = smul.addr %s3001, 7
        %s3003 = smul.addr %s3002, 4
        %s3004 = scalar_lea.vmem %s8, %s3003
      $region72: #{_lambda_.1} parent=67 // pred_fallthru
        _
      // Predicated region
      $region73: #{_lambda_.1} parent=67 // pred_check
        %p3005 = pneg %p260
      $region74: #{_lambda_.1} parent=67 // pred_check_branch
        %3007 = sbr.rel (%p3005) target = $region76
      $region75: #{_lambda_.1} parent=67 // pred_region
        %p3008 = scmp.lt.s32.totalorder %s23, 1
        %s3009 = scalar_select %p3008, %s23, 1
        %s3010 = smul.addr %s3009, 7
        %s3011 = smul.addr %s3010, 4
        %s3012 = scalar_lea.vmem %s9, %s3011
      $region76: #{_lambda_.1} parent=67 // pred_fallthru
        _
      // Predicated region
      $region77: #{_lambda_.1} parent=67 // pred_check
        %p3013 = pneg %p286
      $region78: #{_lambda_.1} parent=67 // pred_check_branch
        %3015 = sbr.rel (%p3013) target = $region80
      $region79: #{_lambda_.1} parent=67 // pred_region
        %p3016 = scmp.lt.s32.totalorder %s23, 1
        %s3017 = scalar_select %p3016, %s23, 1
        %s3018 = smul.addr %s3017, 7
        %s3019 = smul.addr %s3018, 4
        %s3020 = scalar_lea.vmem %s10, %s3019
      $region80: #{_lambda_.1} parent=67 // pred_fallthru
        _
    $region68: #{_lambda_.1} parent=5 // pred_fallthru
      _
  $region6: #{_lambda_.1} parent=0 // loop_footer
    %s21 = sadd.s32 1, %s17
  $region7: #{_lambda_.1} parent=0 // loop_footer_branch
    %16 = sbr.rel target = $region3
  $region8: #{_lambda_.1} parent=0 // loop_exit
    _

</llo_original>
